<compile_context>
chip_gen: v7x
topology: tpu7x:2x2x1
jax: 0.10.0
libtpu: 0.0.40
codegen_flags: <defaults>
</compile_context>

<pallas_src>
import functools

import jax
import jax.numpy as jnp
from jax.experimental import pallas as pl
from jax.experimental.pallas import tpu as pltpu


# Matmul operand dtype: bf16 operands + fp32 accumulation (MXU-native on every
# TPU generation, half the weight HBM traffic).  Use jnp.float32 for parity.
MATMUL_DTYPE = jnp.bfloat16


# ----------------------------------------------------------------------------
# Small helpers
# ----------------------------------------------------------------------------
def _round_up(v, m):
    return ((v + m - 1) // m) * m


def _col_tile(n):
    """Lane-aligned column tile (multiple of 128) that divides N, else full N."""
    for t in (256, 128):
        if n % t == 0:
            return t
    return n


def _pick_row_tile(M, K, tn, *, x_bytes, w_bytes, has_ln, has_res,
                   budget=26 * 1024 * 1024):
    """Pick the row tile.  Prefer tm == full (padded) M so every weight column
    tile is DMA'd from HBM exactly once; fall back to smaller tiles only if the
    double-buffered working set would not fit the VMEM budget."""
    ln_bytes = jnp.dtype(MATMUL_DTYPE).itemsize

    def ws(tm):
        s = 2 * tm * K * x_bytes           # double-buffered activation tiles
        s += 2 * K * tn * w_bytes          # double-buffered weight tiles
        s += 2 * tm * tn * 4               # double-buffered output tiles
        if has_res:
            s += 2 * tm * tn * 4           # double-buffered residual tiles
        if has_ln:
            s += tm * K * ln_bytes + 4 * K * 4   # LN scratch + gamma/beta
        s += 4 * tn * 4                    # bias
        return s

    Mp = _round_up(M, 8)
    if ws(Mp) <= budget:
        return Mp, Mp, ws(Mp)
    for t in (512, 256, 128, 64):
        mp = _round_up(M, t)
        if ws(t) <= budget and (mp - M) * 4 <= mp:     # <= 25% padding overhead
            return t, mp, ws(t)
    return 64, _round_up(M, 64), ws(64)


def _row_tile(m, max_rows=512):
    """Sublane-aligned row tile / padded row count (standalone LayerNorm)."""
    m8 = _round_up(m, 8)
    if m8 <= max_rows:
        return m8, m8
    best_t, best_pad = None, None
    for t in (512, 256, 128, 64):
        pad = _round_up(m, t) - m
        if best_pad is None or pad < best_pad:
            best_t, best_pad = t, pad
    return best_t, _round_up(m, best_t)


def _erf(x):
    # Abramowitz & Stegun 7.1.26 polynomial (|err| < 1.5e-7); close to (not
    # bit-identical with) torch.nn.GELU's erf.  Uses only VPU/EUP-friendly ops.
    a1, a2, a3, a4, a5 = 0.254829592, -0.284496736, 1.421413741, -1.453152027, 1.061405429
    p = 0.3275911
    ax = jnp.abs(x)
    t = 1.0 / (1.0 + p * ax)
    poly = ((((a5 * t + a4) * t + a3) * t + a2) * t + a1) * t
    y = 1.0 - poly * jnp.exp(-ax * ax)
    return jnp.where(x >= 0, y, -y)


def _gelu_exact(x):
    return 0.5 * x * (1.0 + _erf(x * 0.7071067811865476))


# ----------------------------------------------------------------------------
# Fused (LayerNorm ->) matmul (+bias, +GELU, +residual) kernel
# ----------------------------------------------------------------------------
def _fused_linear_kernel(*refs, has_ln, has_bias, has_res, activation, eps):
    it = iter(refs)
    x_ref = next(it)
    w_ref = next(it)
    b_ref = next(it) if has_bias else None
    g_ref = next(it) if has_ln else None
    be_ref = next(it) if has_ln else None
    r_ref = next(it) if has_res else None
    o_ref = next(it)
    xn_ref = next(it) if has_ln else None          # VMEM scratch: LN(x) in bf16

    if has_ln:
        # LayerNorm of the resident (tm, K) row block is computed once per row
        # tile (j == 0) and reused for every column tile j.
        @pl.when(pl.program_id(1) == 0)
        def _():
            x = x_ref[...].astype(jnp.float32)
            mean = jnp.mean(x, axis=-1, keepdims=True)
            var = jnp.mean((x - mean) ** 2, axis=-1, keepdims=True)   # biased (torch)
            xh = (x - mean) * jax.lax.rsqrt(var + eps)
            xh = xh * g_ref[...] + be_ref[...]
            xn_ref[...] = xh.astype(xn_ref.dtype)
        xm = xn_ref[...]
    else:
        xm = x_ref[...].astype(MATMUL_DTYPE)

    y = jnp.dot(xm, w_ref[...], preferred_element_type=jnp.float32)   # fp32 acc
    if has_bias:
        y = y + b_ref[...]
    if activation == "gelu":
        y = _gelu_exact(y)
    if has_res:
        y = y + r_ref[...].astype(jnp.float32)
    o_ref[...] = y.astype(o_ref.dtype)


def fused_linear(x, w, b=None, *, ln=None, residual=None, activation=None,
                 eps=1e-5, out_dtype=jnp.float32):
    """out = act( LN(x) @ w + b ) (+ residual).   x: [..., K], w: [K, N]."""
    lead = x.shape[:-1]
    K = x.shape[-1]
    N = w.shape[1]
    x2 = x.reshape(-1, K)
    M = x2.shape[0]
    has_bias = b is not None
    has_ln = ln is not None
    has_res = residual is not None

    # Keep stores lane-dense: pad N to a 128 multiple when large & misaligned
    # (small N uses one full-width block; the masked store is tiny).
    Np = N
    if N > 128 and N % 128 != 0:
        Np = _round_up(N, 128)
        w = jnp.pad(w, ((0, 0), (0, Np - N)))
        if has_bias:
            b = jnp.pad(b, (0, Np - N))
    tn = _col_tile(Np)

    tm, Mp, ws_bytes = _pick_row_tile(
        M, K, tn,
        x_bytes=jnp.dtype(x.dtype).itemsize,
        w_bytes=jnp.dtype(w.dtype).itemsize,
        has_ln=has_ln, has_res=has_res)
    if Mp != M:
        x2 = jnp.pad(x2, ((0, Mp - M), (0, 0)))

    operands = [x2, w]
    in_specs = [pl.BlockSpec((tm, K), lambda i, j: (i, 0)),
                pl.BlockSpec((K, tn), lambda i, j: (0, j))]
    if has_bias:
        operands.append(b.astype(jnp.float32).reshape(1, Np))
        in_specs.append(pl.BlockSpec((1, tn), lambda i, j: (0, j)))
    if has_ln:
        gamma, beta = ln
        operands += [gamma.astype(jnp.float32).reshape(1, K),
                     beta.astype(jnp.float32).reshape(1, K)]
        in_specs += [pl.BlockSpec((1, K), lambda i, j: (0, 0)),
                     pl.BlockSpec((1, K), lambda i, j: (0, 0))]
    if has_res:
        r2 = residual.reshape(-1, N)
        if Mp != M:
            r2 = jnp.pad(r2, ((0, Mp - M), (0, 0)))
        if Np != N:
            r2 = jnp.pad(r2, ((0, 0), (0, Np - N)))
        operands.append(r2)
        in_specs.append(pl.BlockSpec((tm, tn), lambda i, j: (i, j)))

    # With LN the scratch carries across the column axis -> keep j ordered.
    scratch = [pltpu.VMEM((tm, K), MATMUL_DTYPE)] if has_ln else []
    semantics = ("parallel", "arbitrary") if has_ln else ("parallel", "parallel")
    vmem_limit = int(min(max(32 * 1024 * 1024, ws_bytes + 8 * 1024 * 1024),
                         48 * 1024 * 1024))     # explicit; safe on v7x's 64 MiB

    out = pl.pallas_call(
        functools.partial(_fused_linear_kernel, has_ln=has_ln, has_bias=has_bias,
                          has_res=has_res, activation=activation, eps=eps),
        grid=(Mp // tm, Np // tn),
        in_specs=in_specs,
        out_specs=pl.BlockSpec((tm, tn), lambda i, j: (i, j)),
        out_shape=jax.ShapeDtypeStruct((Mp, Np), out_dtype),
        scratch_shapes=scratch,
        compiler_params=pltpu.CompilerParams(
            dimension_semantics=semantics, vmem_limit_bytes=vmem_limit),
    )(*operands)
    if Mp != M:
        out = out[:M]
    if Np != N:
        out = out[:, :N]
    return out.reshape(*lead, N)


# ----------------------------------------------------------------------------
# Standalone tiled LayerNorm (only ln_pre needs it; the rest is fused)
# ----------------------------------------------------------------------------
def _ln_kernel(x_ref, g_ref, b_ref, o_ref, *, eps):
    x = x_ref[...].astype(jnp.float32)
    mean = jnp.mean(x, axis=-1, keepdims=True)
    var = jnp.mean((x - mean) ** 2, axis=-1, keepdims=True)
    y = (x - mean) * jax.lax.rsqrt(var + eps)
    o_ref[...] = (y * g_ref[...] + b_ref[...]).astype(o_ref.dtype)


def pallas_layernorm(x, gamma, beta, eps=1e-5):
    lead = x.shape[:-1]
    D = x.shape[-1]
    x2 = x.reshape(-1, D)
    M = x2.shape[0]
    tm, Mp = _row_tile(M)
    if Mp != M:
        x2 = jnp.pad(x2, ((0, Mp - M), (0, 0)))
    out = pl.pallas_call(
        functools.partial(_ln_kernel, eps=eps),
        grid=(Mp // tm,),
        in_specs=[pl.BlockSpec((tm, D), lambda i: (i, 0)),
                  pl.BlockSpec((1, D), lambda i: (0, 0)),
                  pl.BlockSpec((1, D), lambda i: (0, 0))],
        out_specs=pl.BlockSpec((tm, D), lambda i: (i, 0)),
        out_shape=jax.ShapeDtypeStruct((Mp, D), jnp.float32),
        compiler_params=pltpu.CompilerParams(dimension_semantics=("parallel",)),
    )(x2, gamma.astype(jnp.float32).reshape(1, D),
      beta.astype(jnp.float32).reshape(1, D))
    if Mp != M:
        out = out[:M]
    return out.reshape(*lead, D)


# ----------------------------------------------------------------------------
# Multi-head attention kernels: softmax(q k^T + bias) v, output projection,
# bias and residual all fused; heads looped in-kernel, grid over batch.
# q is pre-scaled by 1/sqrt(head_dim) at parameter-setup time.
# ----------------------------------------------------------------------------
def _mha_core(get_q, get_k, get_v, bias_row, wo_ref, heads, head_dim):
    """sum_h softmax(q_h k_h^T + bias) v_h @ W_out[h*Dh:(h+1)*Dh, :]  (fp32)."""
    acc = None
    for h in range(heads):
        q = get_q(h)                                     # [Lq, Dh]  (bf16)
        k = get_k(h)                                     # [Lk, Dh]
        v = get_v(h)                                     # [Lk, Dh]
        s = jax.lax.dot_general(q, k, (((1,), (1,)), ((), ())),
                                preferred_element_type=jnp.float32)
        if bias_row is not None:
            s = s + bias_row                             # additive float mask [1, Lk]
        s = s - jnp.max(s, axis=-1, keepdims=True)
        p = jnp.exp(s)
        inv = pl.reciprocal(jnp.sum(p, axis=-1, keepdims=True), approx=True)
        o = jnp.dot(p.astype(MATMUL_DTYPE), v,
                    preferred_element_type=jnp.float32) * inv          # [Lq, Dh]
        part = jnp.dot(o.astype(MATMUL_DTYPE),
                       wo_ref[h * head_dim:(h + 1) * head_dim, :],
                       preferred_element_type=jnp.float32)             # [Lq, d]
        acc = part if acc is None else acc + part
    return acc


def _self_attn_kernel(qkv_ref, wo_ref, bo_ref, res_ref, o_ref, *,
                      heads, head_dim, valid_len):
    Lp = qkv_ref.shape[0]
    d = heads * head_dim
    bias = None
    if Lp > valid_len:          # mask padded key rows (tokens >= valid_len)
        key_idx = jax.lax.broadcasted_iota(jnp.int32, (1, Lp), 1)
        bias = jnp.where(key_idx < valid_len, 0.0, -1e30).astype(jnp.float32)
    acc = _mha_core(
        lambda h: qkv_ref[:, h * head_dim:(h + 1) * head_dim],
        lambda h: qkv_ref[:, d + h * head_dim: d + (h + 1) * head_dim],
        lambda h: qkv_ref[:, 2 * d + h * head_dim: 2 * d + (h + 1) * head_dim],
        bias, wo_ref, heads, head_dim)
    o_ref[...] = (acc + bo_ref[...] + res_ref[...].astype(jnp.float32)
                  ).astype(o_ref.dtype)


def _cross_attn_kernel(q_ref, kv_ref, m_ref, wo_ref, bo_ref, res_ref, o_ref, *,
                       heads, head_dim):
    d = heads * head_dim
    bias = m_ref[...].astype(jnp.float32)                # [1, P] broadcast over Lq
    acc = _mha_core(
        lambda h: q_ref[:, h * head_dim:(h + 1) * head_dim],
        lambda h: kv_ref[:, h * head_dim:(h + 1) * head_dim],
        lambda h: kv_ref[:, d + h * head_dim: d + (h + 1) * head_dim],
        bias, wo_ref, heads, head_dim)
    o_ref[...] = (acc + bo_ref[...] + res_ref[...].astype(jnp.float32)
                  ).astype(o_ref.dtype)


def self_attention_block(qkv, w_out, b_out, residual, heads, valid_len):
    """qkv: [B, Lp, 3d] (q|k|v packed, q pre-scaled).  Returns
    residual + attn(qkv) @ w_out + b_out  in fp32 ([B, Lp, d])."""
    B, Lp, d3 = qkv.shape
    d = d3 // 3
    Dh = d // heads
    return pl.pallas_call(
        functools.partial(_self_attn_kernel, heads=heads, head_dim=Dh,
                          valid_len=valid_len),
        grid=(B,),
        in_specs=[pl.BlockSpec((None, Lp, d3), lambda b: (b, 0, 0)),
                  pl.BlockSpec((d, d), lambda b: (0, 0)),
                  pl.BlockSpec((1, d), lambda b: (0, 0)),
                  pl.BlockSpec((None, Lp, d), lambda b: (b, 0, 0))],
        out_specs=pl.BlockSpec((None, Lp, d), lambda b: (b, 0, 0)),
        out_shape=jax.ShapeDtypeStruct((B, Lp, d), jnp.float32),
        compiler_params=pltpu.CompilerParams(dimension_semantics=("parallel",)),
    )(qkv, w_out, b_out.astype(jnp.float32).reshape(1, d), residual)


def cross_attention_block(q, kv, mask, w_out, b_out, residual, heads):
    """q: [B, Lp, d] (pre-scaled); kv: [B, P, 2d] (k|v); mask: [B, 1, P] additive."""
    B, Lp, d = q.shape
    P = kv.shape[1]
    Dh = d // heads
    return pl.pallas_call(
        functools.partial(_cross_attn_kernel, heads=heads, head_dim=Dh),
        grid=(B,),
        in_specs=[pl.BlockSpec((None, Lp, d), lambda b: (b, 0, 0)),
                  pl.BlockSpec((None, P, 2 * d), lambda b: (b, 0, 0)),
                  pl.BlockSpec((None, 1, P), lambda b: (b, 0, 0)),
                  pl.BlockSpec((d, d), lambda b: (0, 0)),
                  pl.BlockSpec((1, d), lambda b: (0, 0)),
                  pl.BlockSpec((None, Lp, d), lambda b: (b, 0, 0))],
        out_specs=pl.BlockSpec((None, Lp, d), lambda b: (b, 0, 0)),
        out_shape=jax.ShapeDtypeStruct((B, Lp, d), jnp.float32),
        compiler_params=pltpu.CompilerParams(dimension_semantics=("parallel",)),
    )(q, kv, mask, w_out, b_out.astype(jnp.float32).reshape(1, d), residual)


# ----------------------------------------------------------------------------
# Model composition (glue in plain JAX, compute in Pallas)
# ----------------------------------------------------------------------------
def prompted_vit_forward(params, x_img, prompt, attn_mask, cfg):
    B = x_img.shape[0]
    p_sz = cfg["patch"]
    width = cfg["width"]
    heads = cfg["heads"]
    gh = x_img.shape[2] // p_sz
    gw = x_img.shape[3] // p_sz
    L = gh * gw + 1
    Lp = _round_up(L, 8)                      # token dim padded ONCE, carried through

    # conv1 (kernel == stride, bias=False) as patchify + matmul; weight is
    # pre-reshaped/transposed at setup.
    patches = (x_img.reshape(B, 3, gh, p_sz, gw, p_sz)
               .transpose(0, 2, 4, 1, 3, 5)
               .reshape(B * gh * gw, 3 * p_sz * p_sz))
    x = fused_linear(patches, params["conv1_w"])              # no bias
    x = x.reshape(B, gh * gw, width)

    # class token + positional embedding, then pad tokens to a sublane multiple.
    cls = jnp.broadcast_to(params["class_embedding"].reshape(1, 1, width), (B, 1, width))
    x = jnp.concatenate([cls, x], axis=1) + params["positional_embedding"][None]
    if Lp != L:
        x = jnp.pad(x, ((0, 0), (0, Lp - L), (0, 0)))

    # text projector on the prompt
    prompt_proj = fused_linear(prompt, params["text_proj_w"], params["text_proj_b"])

    # cross-attention block (prompt as K/V): LN fused into the Q / KV projections,
    # output projection + bias + residual fused into the attention kernel,
    # additive float mask broadcast in-kernel.
    cr = params["cross"]
    q = fused_linear(x, cr["attn"]["w_q"], cr["attn"]["b_q"], ln=cr["ln_1"],
                     out_dtype=MATMUL_DTYPE)
    kv = fused_linear(prompt_proj, cr["attn"]["w_kv"], cr["attn"]["b_kv"],
                      ln=cr["ln_1_kv"], out_dtype=MATMUL_DTYPE)
    mask = attn_mask.astype(jnp.float32)[:, None, :]           # [B, 1, P]
    x = cross_attention_block(q, kv, mask, cr["attn"]["w_out"], cr["attn"]["b_out"],
                              x, heads)
    h = fused_linear(x, cr["w_fc"], cr["b_fc"], ln=cr["ln_2"], activation="gelu",
                     out_dtype=MATMUL_DTYPE)
    x = fused_linear(h, cr["w_proj"], cr["b_proj"], residual=x)

    # patch_dropout == Identity (eval / prob=0); LayerScale == Identity; ln_pre
    # feeds the residual stream so it is a standalone LN kernel.
    x = pallas_layernorm(x, *params["ln_pre"])

    # transformer: the torch forward uses `_, x = transformer(x)` so x is the
    # stacked all_layers tensor, and pool_type='tok' on that 4-D stack indexes
    # the BATCH axis (x[:, 0]) -> only batch element 0 of each layer is consumed.
    pooled_layers = []
    for blk in params["blocks"]:
        qkv = fused_linear(x, blk["attn"]["w_qkv"], blk["attn"]["b_qkv"],
                           ln=blk["ln_1"], out_dtype=MATMUL_DTYPE)
        x = self_attention_block(qkv, blk["attn"]["w_out"], blk["attn"]["b_out"],
                                 x, heads, L)
        h = fused_linear(x, blk["w_fc"], blk["b_fc"], ln=blk["ln_2"],
                         activation="gelu", out_dtype=MATMUL_DTYPE)
        x = fused_linear(h, blk["w_proj"], blk["b_proj"], residual=x)
        pooled_layers.append(x[0])                              # [Lp, width]

    stacked = jnp.stack(pooled_layers, axis=0)                  # [layers, Lp, width]
    # ln_post fused into the final projection:  ln_post(all_layers[:, 0]) @ proj
    pooled = fused_linear(stacked, params["proj"], ln=params["ln_post"])
    return pooled[:, :L]                                        # [layers, L, output_dim]


# ----------------------------------------------------------------------------
# Deterministic parameter init (synthetic; stored pre-transposed / pre-fused,
# matmul weights in bf16, Q projection pre-scaled by 1/sqrt(head_dim))
# ----------------------------------------------------------------------------
def init_params(key, cfg):
    width = cfg["width"]
    layers = cfg["layers"]
    patch = cfg["patch"]
    heads = cfg["heads"]
    q_scale = (width // heads) ** -0.5
    mlp_w = int(width * cfg["mlp_ratio"])
    out_dim = cfg["output_dim"]
    g = cfg["image_size"] // patch
    L = g * g + 1
    scale = width ** -0.5

    keys = iter(jax.random.split(key, 256))

    def nrm(shape, s=0.02):
        return (s * jax.random.normal(next(keys), shape)).astype(jnp.float32)

    def mat(shape, s=0.02):
        return nrm(shape, s).astype(MATMUL_DTYPE)

    def ln_pair(dim):
        return (jnp.ones((dim,), jnp.float32) + nrm((dim,)), nrm((dim,)))

    def self_attn_params(d):
        w_qkv = nrm((d, 3 * d))
        b_qkv = nrm((3 * d,))
        w_qkv = w_qkv.at[:, :d].multiply(q_scale)          # fold 1/sqrt(Dh) into Q
        b_qkv = b_qkv.at[:d].multiply(q_scale)
        return dict(w_qkv=w_qkv.astype(MATMUL_DTYPE), b_qkv=b_qkv,
                    w_out=mat((d, d)), b_out=nrm((d,)))

    def cross_attn_params(d):
        return dict(w_q=(nrm((d, d)) * q_scale).astype(MATMUL_DTYPE),
                    b_q=nrm((d,)) * q_scale,
                    w_kv=mat((d, 2 * d)), b_kv=nrm((2 * d,)),
                    w_out=mat((d, d)), b_out=nrm((d,)))

    def block_params(d, cross=False):
        p = dict(ln_1=ln_pair(d), ln_2=ln_pair(d),
                 attn=cross_attn_params(d) if cross else self_attn_params(d),
                 w_fc=mat((d, mlp_w)), b_fc=nrm((mlp_w,)),
                 w_proj=mat((mlp_w, d)), b_proj=nrm((d,)))
        if cross:
            p["ln_1_kv"] = ln_pair(d)
        return p

    return dict(
        conv1_w=mat((3 * patch * patch, width), 0.05),     # pre-reshaped/transposed
        class_embedding=(scale * jax.random.normal(next(keys), (width,))).astype(jnp.float32),
        positional_embedding=(scale * jax.random.normal(next(keys), (L, width))).astype(jnp.float32),
        ln_pre=ln_pair(width),
        text_proj_w=mat((width * 4, width)),               # pre-transposed [4w, w]
        text_proj_b=nrm((width,)),
        cross=block_params(width, cross=True),
        blocks=[block_params(width) for _ in range(layers)],
        ln_post=ln_pair(width),
        proj=(scale * jax.random.normal(next(keys), (width, out_dim))).astype(MATMUL_DTYPE),
    )


if __name__ == "__main__":
    cfg = dict(image_size=16, patch=4, width=32, layers=2, heads=4,
               mlp_ratio=4.0, output_dim=16)
    key = jax.random.PRNGKey(0)
    kp, kx, kpr, km = jax.random.split(key, 4)

    params = init_params(kp, cfg)

    B, P = 2, 8
    x = jax.random.normal(kx, (B, 3, cfg["image_size"], cfg["image_size"]), jnp.float32)
    prompt = jax.random.normal(kpr, (B, P, cfg["width"] * 4), jnp.float32)
    attn_mask = jnp.where(jax.random.uniform(km, (B, P)) < 0.25, -1e9, 0.0).astype(jnp.float32)
    attn_mask = attn_mask.at[:, 0].set(0.0)    # keep at least one valid key per batch

    fwd = jax.jit(functools.partial(prompted_vit_forward, cfg=cfg))
    out = fwd(params, x, prompt, attn_mask)
    out = jax.block_until_ready(out)

    grid = cfg["image_size"] // cfg["patch"]
    assert out.shape == (cfg["layers"], grid * grid + 1, cfg["output_dim"]), out.shape
    assert bool(jnp.all(jnp.isfinite(out)))
    print("KERNEL_OK")
</pallas_src>

<mosaic_0001>
module attributes {stable_mosaic.version = 11 : i64} {
  func.func @_fused_linear_kernel(%arg0: i32, %arg1: i32, %arg2: memref<16x128xf32, #tpu.memory_space<vmem>>, %arg3: memref<128x32xbf16, #tpu.memory_space<vmem>>, %arg4: memref<1x32xf32, #tpu.memory_space<vmem>>, %arg5: memref<16x32xf32, #tpu.memory_space<vmem>>) attributes {dimension_semantics = [#tpu.dimension_semantics<parallel>, #tpu.dimension_semantics<parallel>], iteration_bounds = array<i64: 1, 1>, scalar_prefetch = 0 : i64, scratch_operands = 0 : i64, tpu.core_type = #tpu.core_type<tc>, window_params = [{transform_indices = @transform_0, window_bounds = array<i64: 16, 128>}, {transform_indices = @transform_1, window_bounds = array<i64: 128, 32>}, {transform_indices = @transform_2, window_bounds = array<i64: 1, 32>}, {transform_indices = @transform_3, window_bounds = array<i64: 16, 32>}]} {
    %c0 = arith.constant 0 : index
    %c0_0 = arith.constant 0 : index
    %0 = vector.load %arg2[%c0, %c0_0] : memref<16x128xf32, #tpu.memory_space<vmem>>, vector<16x128xf32>
    %1 = arith.truncf %0 : vector<16x128xf32> to vector<16x128xbf16>
    %c0_1 = arith.constant 0 : index
    %c0_2 = arith.constant 0 : index
    %2 = vector.load %arg3[%c0_1, %c0_2] : memref<128x32xbf16, #tpu.memory_space<vmem>>, vector<128x32xbf16>
    %cst = arith.constant dense<0.000000e+00> : vector<16x32xf32>
    %3 = tpu.matmul %1, %2, %cst {dimension_numbers = #tpu.dot_dimension_numbers<[1], [0], [0], [1], [0, 0, 1, 1], [], []>} : vector<16x128xbf16>, vector<128x32xbf16>, vector<16x32xf32> -> vector<16x32xf32>
    %c0_3 = arith.constant 0 : index
    %c0_4 = arith.constant 0 : index
    %4 = vector.load %arg4[%c0_3, %c0_4] : memref<1x32xf32, #tpu.memory_space<vmem>>, vector<1x32xf32>
    %5 = vector.broadcast %4 : vector<1x32xf32> to vector<16x32xf32>
    %6 = arith.addf %3, %5 : vector<16x32xf32>
    %c0_5 = arith.constant 0 : index
    %c0_6 = arith.constant 0 : index
    %7 = vector.load %arg5[%c0_5, %c0_6] : memref<16x32xf32, #tpu.memory_space<vmem>>, vector<16x32xf32>
    tpu.vector_store %arg5[%c0_5, %c0_6], %6 {strides = array<i32>} : memref<16x32xf32, #tpu.memory_space<vmem>>, vector<16x32xf32>,
    return
  }
  func.func @transform_0(%arg0: i32, %arg1: i32) -> (i32, i32) {
    %c0_i32 = arith.constant 0 : i32
    %c0_i32_0 = arith.constant 0 : i32
    return %arg0, %c0_i32 : i32, i32
  }
  func.func @transform_1(%arg0: i32, %arg1: i32) -> (i32, i32) {
    %c0_i32 = arith.constant 0 : i32
    %c0_i32_0 = arith.constant 0 : i32
    return %c0_i32, %arg1 : i32, i32
  }
  func.func @transform_2(%arg0: i32, %arg1: i32) -> (i32, i32) {
    %c0_i32 = arith.constant 0 : i32
    %c0_i32_0 = arith.constant 0 : i32
    return %c0_i32, %arg1 : i32, i32
  }
  func.func @transform_3(%arg0: i32, %arg1: i32) -> (i32, i32) {
    %c0_i32 = arith.constant 0 : i32
    return %arg0, %arg1 : i32, i32
  }
}

module attributes {stable_mosaic.version = 11 : i64} {
  func.func @_fused_linear_kernel(%arg0: i32, %arg1: i32, %arg2: memref<32x48xf32, #tpu.memory_space<vmem>>, %arg3: memref<48x32xbf16, #tpu.memory_space<vmem>>, %arg4: memref<32x32xf32, #tpu.memory_space<vmem>>) attributes {dimension_semantics = [#tpu.dimension_semantics<parallel>, #tpu.dimension_semantics<parallel>], iteration_bounds = array<i64: 1, 1>, scalar_prefetch = 0 : i64, scratch_operands = 0 : i64, tpu.core_type = #tpu.core_type<tc>, window_params = [{transform_indices = @transform_0, window_bounds = array<i64: 32, 48>}, {transform_indices = @transform_1, window_bounds = array<i64: 48, 32>}, {transform_indices = @transform_2, window_bounds = array<i64: 32, 32>}]} {
    %c0 = arith.constant 0 : index
    %c0_0 = arith.constant 0 : index
    %0 = vector.load %arg2[%c0, %c0_0] : memref<32x48xf32, #tpu.memory_space<vmem>>, vector<32x48xf32>
    %1 = arith.truncf %0 : vector<32x48xf32> to vector<32x48xbf16>
    %c0_1 = arith.constant 0 : index
    %c0_2 = arith.constant 0 : index
    %2 = vector.load %arg3[%c0_1, %c0_2] : memref<48x32xbf16, #tpu.memory_space<vmem>>, vector<48x32xbf16>
    %cst = arith.constant dense<0.000000e+00> : vector<32x32xf32>
    %3 = tpu.matmul %1, %2, %cst {dimension_numbers = #tpu.dot_dimension_numbers<[1], [0], [0], [1], [0, 0, 1, 1], [], []>} : vector<32x48xbf16>, vector<48x32xbf16>, vector<32x32xf32> -> vector<32x32xf32>
    %c0_3 = arith.constant 0 : index
    %c0_4 = arith.constant 0 : index
    %4 = vector.load %arg4[%c0_3, %c0_4] : memref<32x32xf32, #tpu.memory_space<vmem>>, vector<32x32xf32>
    tpu.vector_store %arg4[%c0_3, %c0_4], %3 {strides = array<i32>} : memref<32x32xf32, #tpu.memory_space<vmem>>, vector<32x32xf32>,
    return
  }
  func.func @transform_0(%arg0: i32, %arg1: i32) -> (i32, i32) {
    %c0_i32 = arith.constant 0 : i32
    %c0_i32_0 = arith.constant 0 : i32
    return %arg0, %c0_i32 : i32, i32
  }
  func.func @transform_1(%arg0: i32, %arg1: i32) -> (i32, i32) {
    %c0_i32 = arith.constant 0 : i32
    %c0_i32_0 = arith.constant 0 : i32
    return %c0_i32, %arg1 : i32, i32
  }
  func.func @transform_2(%arg0: i32, %arg1: i32) -> (i32, i32) {
    %c0_i32 = arith.constant 0 : i32
    return %arg0, %arg1 : i32, i32
  }
}

module attributes {stable_mosaic.version = 11 : i64} {
  func.func @_fused_linear_kernel(%arg0: i32, %arg1: i32, %arg2: memref<48x32xf32, #tpu.memory_space<vmem>>, %arg3: memref<32x32xbf16, #tpu.memory_space<vmem>>, %arg4: memref<1x32xf32, #tpu.memory_space<vmem>>, %arg5: memref<1x32xf32, #tpu.memory_space<vmem>>, %arg6: memref<1x32xf32, #tpu.memory_space<vmem>>, %arg7: memref<48x32xbf16, #tpu.memory_space<vmem>>, %arg8: memref<48x32xbf16, #tpu.memory_space<vmem>>) attributes {dimension_semantics = [#tpu.dimension_semantics<parallel>, #tpu.dimension_semantics<arbitrary>], iteration_bounds = array<i64: 1, 1>, scalar_prefetch = 0 : i64, scratch_operands = 1 : i64, tpu.core_type = #tpu.core_type<tc>, window_params = [{transform_indices = @transform_0, window_bounds = array<i64: 48, 32>}, {transform_indices = @transform_1, window_bounds = array<i64: 32, 32>}, {transform_indices = @transform_2, window_bounds = array<i64: 1, 32>}, {pipeline_mode = #tpu.pipeline_mode<synchronous>, transform_indices = @transform_3, window_bounds = array<i64: 1, 32>}, {pipeline_mode = #tpu.pipeline_mode<synchronous>, transform_indices = @transform_4, window_bounds = array<i64: 1, 32>}, {transform_indices = @transform_5, window_bounds = array<i64: 48, 32>}]} {
    %c0_i32 = arith.constant 0 : i32
    %0 = arith.cmpi eq, %arg1, %c0_i32 : i32
    %1 = arith.extui %0 : i1 to i32
    %c0_i32_0 = arith.constant 0 : i32
    %2 = arith.cmpi ne, %1, %c0_i32_0 : i32
    scf.if %2 {
      %c0_8 = arith.constant 0 : index
      %c0_9 = arith.constant 0 : index
      %11 = vector.load %arg2[%c0_8, %c0_9] : memref<48x32xf32, #tpu.memory_space<vmem>>, vector<48x32xf32>
      %cst_10 = arith.constant dense<0.000000e+00> : vector<48xf32>
      %12 = vector.multi_reduction <add>, %11, %cst_10 [1] : vector<48x32xf32> to vector<48xf32>
      %13 = vector.shape_cast %12 : vector<48xf32> to vector<48x1xf32>
      %cst_11 = arith.constant 3.200000e+01 : f32
      %14 = vector.broadcast %cst_11 : f32 to vector<48x1xf32>
      %15 = arith.divf %13, %14 : vector<48x1xf32>
      %16 = vector.broadcast %15 : vector<48x1xf32> to vector<48x32xf32>
      %17 = arith.subf %11, %16 : vector<48x32xf32>
      %18 = arith.mulf %17, %17 : vector<48x32xf32>
      %cst_12 = arith.constant dense<0.000000e+00> : vector<48xf32>
      %19 = vector.multi_reduction <add>, %18, %cst_12 [1] : vector<48x32xf32> to vector<48xf32>
      %20 = vector.shape_cast %19 : vector<48xf32> to vector<48x1xf32>
      %cst_13 = arith.constant 3.200000e+01 : f32
      %21 = vector.broadcast %cst_13 : f32 to vector<48x1xf32>
      %22 = arith.divf %20, %21 : vector<48x1xf32>
      %23 = vector.broadcast %15 : vector<48x1xf32> to vector<48x32xf32>
      %24 = arith.subf %11, %23 : vector<48x32xf32>
      %cst_14 = arith.constant 9.99999974E-6 : f32
      %25 = vector.broadcast %cst_14 : f32 to vector<48x1xf32>
      %26 = arith.addf %22, %25 : vector<48x1xf32>
      %27 = math.rsqrt %26 : vector<48x1xf32>
      %28 = vector.broadcast %27 : vector<48x1xf32> to vector<48x32xf32>
      %29 = arith.mulf %24, %28 : vector<48x32xf32>
      %c0_15 = arith.constant 0 : index
      %c0_16 = arith.constant 0 : index
      %30 = vector.load %arg5[%c0_15, %c0_16] : memref<1x32xf32, #tpu.memory_space<vmem>>, vector<1x32xf32>
      %31 = vector.broadcast %30 : vector<1x32xf32> to vector<48x32xf32>
      %32 = arith.mulf %29, %31 : vector<48x32xf32>
      %c0_17 = arith.constant 0 : index
      %c0_18 = arith.constant 0 : index
      %33 = vector.load %arg6[%c0_17, %c0_18] : memref<1x32xf32, #tpu.memory_space<vmem>>, vector<1x32xf32>
      %34 = vector.broadcast %33 : vector<1x32xf32> to vector<48x32xf32>
      %35 = arith.addf %32, %34 : vector<48x32xf32>
      %36 = arith.truncf %35 : vector<48x32xf32> to vector<48x32xbf16>
      %c0_19 = arith.constant 0 : index
      %c0_20 = arith.constant 0 : index
      %37 = vector.load %arg8[%c0_19, %c0_20] : memref<48x32xbf16, #tpu.memory_space<vmem>>, vector<48x32xbf16>
      tpu.vector_store %arg8[%c0_19, %c0_20], %36 {strides = array<i32>} : memref<48x32xbf16, #tpu.memory_space<vmem>>, vector<48x32xbf16>,
    } else {
    }
    %c0 = arith.constant 0 : index
    %c0_1 = arith.constant 0 : index
    %3 = vector.load %arg8[%c0, %c0_1] : memref<48x32xbf16, #tpu.memory_space<vmem>>, vector<48x32xbf16>
    %c0_2 = arith.constant 0 : index
    %c0_3 = arith.constant 0 : index
    %4 = vector.load %arg3[%c0_2, %c0_3] : memref<32x32xbf16, #tpu.memory_space<vmem>>, vector<32x32xbf16>
    %cst = arith.constant dense<0.000000e+00> : vector<48x32xf32>
    %5 = tpu.matmul %3, %4, %cst {dimension_numbers = #tpu.dot_dimension_numbers<[1], [0], [0], [1], [0, 0, 1, 1], [], []>} : vector<48x32xbf16>, vector<32x32xbf16>, vector<48x32xf32> -> vector<48x32xf32>
    %c0_4 = arith.constant 0 : index
    %c0_5 = arith.constant 0 : index
    %6 = vector.load %arg4[%c0_4, %c0_5] : memref<1x32xf32, #tpu.memory_space<vmem>>, vector<1x32xf32>
    %7 = vector.broadcast %6 : vector<1x32xf32> to vector<48x32xf32>
    %8 = arith.addf %5, %7 : vector<48x32xf32>
    %9 = arith.truncf %8 : vector<48x32xf32> to vector<48x32xbf16>
    %c0_6 = arith.constant 0 : index
    %c0_7 = arith.constant 0 : index
    %10 = vector.load %arg7[%c0_6, %c0_7] : memref<48x32xbf16, #tpu.memory_space<vmem>>, vector<48x32xbf16>
    tpu.vector_store %arg7[%c0_6, %c0_7], %9 {strides = array<i32>} : memref<48x32xbf16, #tpu.memory_space<vmem>>, vector<48x32xbf16>,
    return
  }
  func.func @transform_0(%arg0: i32, %arg1: i32) -> (i32, i32) {
    %c0_i32 = arith.constant 0 : i32
    %c0_i32_0 = arith.constant 0 : i32
    return %arg0, %c0_i32 : i32, i32
  }
  func.func @transform_1(%arg0: i32, %arg1: i32) -> (i32, i32) {
    %c0_i32 = arith.constant 0 : i32
    %c0_i32_0 = arith.constant 0 : i32
    return %c0_i32, %arg1 : i32, i32
  }
  func.func @transform_2(%arg0: i32, %arg1: i32) -> (i32, i32) {
    %c0_i32 = arith.constant 0 : i32
    %c0_i32_0 = arith.constant 0 : i32
    return %c0_i32, %arg1 : i32, i32
  }
  func.func @transform_3(%arg0: i32, %arg1: i32) -> (i32, i32) {
    %c0_i32 = arith.constant 0 : i32
    %c0_i32_0 = arith.constant 0 : i32
    %c0_i32_1 = arith.constant 0 : i32
    return %c0_i32, %c0_i32_0 : i32, i32
  }
  func.func @transform_4(%arg0: i32, %arg1: i32) -> (i32, i32) {
    %c0_i32 = arith.constant 0 : i32
    %c0_i32_0 = arith.constant 0 : i32
    %c0_i32_1 = arith.constant 0 : i32
    return %c0_i32, %c0_i32_0 : i32, i32
  }
  func.func @transform_5(%arg0: i32, %arg1: i32) -> (i32, i32) {
    %c0_i32 = arith.constant 0 : i32
    return %arg0, %arg1 : i32, i32
  }
}

module attributes {stable_mosaic.version = 11 : i64} {
  func.func @_fused_linear_kernel(%arg0: i32, %arg1: i32, %arg2: memref<16x32xf32, #tpu.memory_space<vmem>>, %arg3: memref<32x64xbf16, #tpu.memory_space<vmem>>, %arg4: memref<1x64xf32, #tpu.memory_space<vmem>>, %arg5: memref<1x32xf32, #tpu.memory_space<vmem>>, %arg6: memref<1x32xf32, #tpu.memory_space<vmem>>, %arg7: memref<16x64xbf16, #tpu.memory_space<vmem>>, %arg8: memref<16x32xbf16, #tpu.memory_space<vmem>>) attributes {dimension_semantics = [#tpu.dimension_semantics<parallel>, #tpu.dimension_semantics<arbitrary>], iteration_bounds = array<i64: 1, 1>, scalar_prefetch = 0 : i64, scratch_operands = 1 : i64, tpu.core_type = #tpu.core_type<tc>, window_params = [{transform_indices = @transform_0, window_bounds = array<i64: 16, 32>}, {transform_indices = @transform_1, window_bounds = array<i64: 32, 64>}, {transform_indices = @transform_2, window_bounds = array<i64: 1, 64>}, {pipeline_mode = #tpu.pipeline_mode<synchronous>, transform_indices = @transform_3, window_bounds = array<i64: 1, 32>}, {pipeline_mode = #tpu.pipeline_mode<synchronous>, transform_indices = @transform_4, window_bounds = array<i64: 1, 32>}, {transform_indices = @transform_5, window_bounds = array<i64: 16, 64>}]} {
    %c0_i32 = arith.constant 0 : i32
    %0 = arith.cmpi eq, %arg1, %c0_i32 : i32
    %1 = arith.extui %0 : i1 to i32
    %c0_i32_0 = arith.constant 0 : i32
    %2 = arith.cmpi ne, %1, %c0_i32_0 : i32
    scf.if %2 {
      %c0_8 = arith.constant 0 : index
      %c0_9 = arith.constant 0 : index
      %11 = vector.load %arg2[%c0_8, %c0_9] : memref<16x32xf32, #tpu.memory_space<vmem>>, vector<16x32xf32>
      %cst_10 = arith.constant dense<0.000000e+00> : vector<16xf32>
      %12 = vector.multi_reduction <add>, %11, %cst_10 [1] : vector<16x32xf32> to vector<16xf32>
      %13 = vector.shape_cast %12 : vector<16xf32> to vector<16x1xf32>
      %cst_11 = arith.constant 3.200000e+01 : f32
      %14 = vector.broadcast %cst_11 : f32 to vector<16x1xf32>
      %15 = arith.divf %13, %14 : vector<16x1xf32>
      %16 = vector.broadcast %15 : vector<16x1xf32> to vector<16x32xf32>
      %17 = arith.subf %11, %16 : vector<16x32xf32>
      %18 = arith.mulf %17, %17 : vector<16x32xf32>
      %cst_12 = arith.constant dense<0.000000e+00> : vector<16xf32>
      %19 = vector.multi_reduction <add>, %18, %cst_12 [1] : vector<16x32xf32> to vector<16xf32>
      %20 = vector.shape_cast %19 : vector<16xf32> to vector<16x1xf32>
      %cst_13 = arith.constant 3.200000e+01 : f32
      %21 = vector.broadcast %cst_13 : f32 to vector<16x1xf32>
      %22 = arith.divf %20, %21 : vector<16x1xf32>
      %23 = vector.broadcast %15 : vector<16x1xf32> to vector<16x32xf32>
      %24 = arith.subf %11, %23 : vector<16x32xf32>
      %cst_14 = arith.constant 9.99999974E-6 : f32
      %25 = vector.broadcast %cst_14 : f32 to vector<16x1xf32>
      %26 = arith.addf %22, %25 : vector<16x1xf32>
      %27 = math.rsqrt %26 : vector<16x1xf32>
      %28 = vector.broadcast %27 : vector<16x1xf32> to vector<16x32xf32>
      %29 = arith.mulf %24, %28 : vector<16x32xf32>
      %c0_15 = arith.constant 0 : index
      %c0_16 = arith.constant 0 : index
      %30 = vector.load %arg5[%c0_15, %c0_16] : memref<1x32xf32, #tpu.memory_space<vmem>>, vector<1x32xf32>
      %31 = vector.broadcast %30 : vector<1x32xf32> to vector<16x32xf32>
      %32 = arith.mulf %29, %31 : vector<16x32xf32>
      %c0_17 = arith.constant 0 : index
      %c0_18 = arith.constant 0 : index
      %33 = vector.load %arg6[%c0_17, %c0_18] : memref<1x32xf32, #tpu.memory_space<vmem>>, vector<1x32xf32>
      %34 = vector.broadcast %33 : vector<1x32xf32> to vector<16x32xf32>
      %35 = arith.addf %32, %34 : vector<16x32xf32>
      %36 = arith.truncf %35 : vector<16x32xf32> to vector<16x32xbf16>
      %c0_19 = arith.constant 0 : index
      %c0_20 = arith.constant 0 : index
      %37 = vector.load %arg8[%c0_19, %c0_20] : memref<16x32xbf16, #tpu.memory_space<vmem>>, vector<16x32xbf16>
      tpu.vector_store %arg8[%c0_19, %c0_20], %36 {strides = array<i32>} : memref<16x32xbf16, #tpu.memory_space<vmem>>, vector<16x32xbf16>,
    } else {
    }
    %c0 = arith.constant 0 : index
    %c0_1 = arith.constant 0 : index
    %3 = vector.load %arg8[%c0, %c0_1] : memref<16x32xbf16, #tpu.memory_space<vmem>>, vector<16x32xbf16>
    %c0_2 = arith.constant 0 : index
    %c0_3 = arith.constant 0 : index
    %4 = vector.load %arg3[%c0_2, %c0_3] : memref<32x64xbf16, #tpu.memory_space<vmem>>, vector<32x64xbf16>
    %cst = arith.constant dense<0.000000e+00> : vector<16x64xf32>
    %5 = tpu.matmul %3, %4, %cst {dimension_numbers = #tpu.dot_dimension_numbers<[1], [0], [0], [1], [0, 0, 1, 1], [], []>} : vector<16x32xbf16>, vector<32x64xbf16>, vector<16x64xf32> -> vector<16x64xf32>
    %c0_4 = arith.constant 0 : index
    %c0_5 = arith.constant 0 : index
    %6 = vector.load %arg4[%c0_4, %c0_5] : memref<1x64xf32, #tpu.memory_space<vmem>>, vector<1x64xf32>
    %7 = vector.broadcast %6 : vector<1x64xf32> to vector<16x64xf32>
    %8 = arith.addf %5, %7 : vector<16x64xf32>
    %9 = arith.truncf %8 : vector<16x64xf32> to vector<16x64xbf16>
    %c0_6 = arith.constant 0 : index
    %c0_7 = arith.constant 0 : index
    %10 = vector.load %arg7[%c0_6, %c0_7] : memref<16x64xbf16, #tpu.memory_space<vmem>>, vector<16x64xbf16>
    tpu.vector_store %arg7[%c0_6, %c0_7], %9 {strides = array<i32>} : memref<16x64xbf16, #tpu.memory_space<vmem>>, vector<16x64xbf16>,
    return
  }
  func.func @transform_0(%arg0: i32, %arg1: i32) -> (i32, i32) {
    %c0_i32 = arith.constant 0 : i32
    %c0_i32_0 = arith.constant 0 : i32
    return %arg0, %c0_i32 : i32, i32
  }
  func.func @transform_1(%arg0: i32, %arg1: i32) -> (i32, i32) {
    %c0_i32 = arith.constant 0 : i32
    %c0_i32_0 = arith.constant 0 : i32
    return %c0_i32, %arg1 : i32, i32
  }
  func.func @transform_2(%arg0: i32, %arg1: i32) -> (i32, i32) {
    %c0_i32 = arith.constant 0 : i32
    %c0_i32_0 = arith.constant 0 : i32
    return %c0_i32, %arg1 : i32, i32
  }
  func.func @transform_3(%arg0: i32, %arg1: i32) -> (i32, i32) {
    %c0_i32 = arith.constant 0 : i32
    %c0_i32_0 = arith.constant 0 : i32
    %c0_i32_1 = arith.constant 0 : i32
    return %c0_i32, %c0_i32_0 : i32, i32
  }
  func.func @transform_4(%arg0: i32, %arg1: i32) -> (i32, i32) {
    %c0_i32 = arith.constant 0 : i32
    %c0_i32_0 = arith.constant 0 : i32
    %c0_i32_1 = arith.constant 0 : i32
    return %c0_i32, %c0_i32_0 : i32, i32
  }
  func.func @transform_5(%arg0: i32, %arg1: i32) -> (i32, i32) {
    %c0_i32 = arith.constant 0 : i32
    return %arg0, %arg1 : i32, i32
  }
}

module attributes {stable_mosaic.version = 11 : i64} {
  func.func @_fused_linear_kernel(%arg0: i32, %arg1: i32, %arg2: memref<48x128xbf16, #tpu.memory_space<vmem>>, %arg3: memref<128x32xbf16, #tpu.memory_space<vmem>>, %arg4: memref<1x32xf32, #tpu.memory_space<vmem>>, %arg5: memref<48x32xf32, #tpu.memory_space<vmem>>, %arg6: memref<48x32xf32, #tpu.memory_space<vmem>>) attributes {dimension_semantics = [#tpu.dimension_semantics<parallel>, #tpu.dimension_semantics<parallel>], iteration_bounds = array<i64: 1, 1>, scalar_prefetch = 0 : i64, scratch_operands = 0 : i64, tpu.core_type = #tpu.core_type<tc>, window_params = [{transform_indices = @transform_0, window_bounds = array<i64: 48, 128>}, {transform_indices = @transform_1, window_bounds = array<i64: 128, 32>}, {transform_indices = @transform_2, window_bounds = array<i64: 1, 32>}, {transform_indices = @transform_3, window_bounds = array<i64: 48, 32>}, {transform_indices = @transform_4, window_bounds = array<i64: 48, 32>}]} {
    %c0 = arith.constant 0 : index
    %c0_0 = arith.constant 0 : index
    %0 = vector.load %arg2[%c0, %c0_0] : memref<48x128xbf16, #tpu.memory_space<vmem>>, vector<48x128xbf16>
    %c0_1 = arith.constant 0 : index
    %c0_2 = arith.constant 0 : index
    %1 = vector.load %arg3[%c0_1, %c0_2] : memref<128x32xbf16, #tpu.memory_space<vmem>>, vector<128x32xbf16>
    %cst = arith.constant dense<0.000000e+00> : vector<48x32xf32>
    %2 = tpu.matmul %0, %1, %cst {dimension_numbers = #tpu.dot_dimension_numbers<[1], [0], [0], [1], [0, 0, 1, 1], [], []>} : vector<48x128xbf16>, vector<128x32xbf16>, vector<48x32xf32> -> vector<48x32xf32>
    %c0_3 = arith.constant 0 : index
    %c0_4 = arith.constant 0 : index
    %3 = vector.load %arg4[%c0_3, %c0_4] : memref<1x32xf32, #tpu.memory_space<vmem>>, vector<1x32xf32>
    %4 = vector.broadcast %3 : vector<1x32xf32> to vector<48x32xf32>
    %5 = arith.addf %2, %4 : vector<48x32xf32>
    %c0_5 = arith.constant 0 : index
    %c0_6 = arith.constant 0 : index
    %6 = vector.load %arg5[%c0_5, %c0_6] : memref<48x32xf32, #tpu.memory_space<vmem>>, vector<48x32xf32>
    %7 = arith.addf %5, %6 : vector<48x32xf32>
    %c0_7 = arith.constant 0 : index
    %c0_8 = arith.constant 0 : index
    %8 = vector.load %arg6[%c0_7, %c0_8] : memref<48x32xf32, #tpu.memory_space<vmem>>, vector<48x32xf32>
    tpu.vector_store %arg6[%c0_7, %c0_8], %7 {strides = array<i32>} : memref<48x32xf32, #tpu.memory_space<vmem>>, vector<48x32xf32>,
    return
  }
  func.func @transform_0(%arg0: i32, %arg1: i32) -> (i32, i32) {
    %c0_i32 = arith.constant 0 : i32
    %c0_i32_0 = arith.constant 0 : i32
    return %arg0, %c0_i32 : i32, i32
  }
  func.func @transform_1(%arg0: i32, %arg1: i32) -> (i32, i32) {
    %c0_i32 = arith.constant 0 : i32
    %c0_i32_0 = arith.constant 0 : i32
    return %c0_i32, %arg1 : i32, i32
  }
  func.func @transform_2(%arg0: i32, %arg1: i32) -> (i32, i32) {
    %c0_i32 = arith.constant 0 : i32
    %c0_i32_0 = arith.constant 0 : i32
    return %c0_i32, %arg1 : i32, i32
  }
  func.func @transform_3(%arg0: i32, %arg1: i32) -> (i32, i32) {
    %c0_i32 = arith.constant 0 : i32
    return %arg0, %arg1 : i32, i32
  }
  func.func @transform_4(%arg0: i32, %arg1: i32) -> (i32, i32) {
    %c0_i32 = arith.constant 0 : i32
    return %arg0, %arg1 : i32, i32
  }
}

module attributes {stable_mosaic.version = 11 : i64} {
  func.func @_ln_kernel(%arg0: i32, %arg1: memref<48x32xf32, #tpu.memory_space<vmem>>, %arg2: memref<1x32xf32, #tpu.memory_space<vmem>>, %arg3: memref<1x32xf32, #tpu.memory_space<vmem>>, %arg4: memref<48x32xf32, #tpu.memory_space<vmem>>) attributes {dimension_semantics = [#tpu.dimension_semantics<parallel>], iteration_bounds = array<i64: 1>, scalar_prefetch = 0 : i64, scratch_operands = 0 : i64, tpu.core_type = #tpu.core_type<tc>, window_params = [{transform_indices = @transform_0, window_bounds = array<i64: 48, 32>}, {pipeline_mode = #tpu.pipeline_mode<synchronous>, transform_indices = @transform_1, window_bounds = array<i64: 1, 32>}, {pipeline_mode = #tpu.pipeline_mode<synchronous>, transform_indices = @transform_2, window_bounds = array<i64: 1, 32>}, {transform_indices = @transform_3, window_bounds = array<i64: 48, 32>}]} {
    %c0 = arith.constant 0 : index
    %c0_0 = arith.constant 0 : index
    %0 = vector.load %arg1[%c0, %c0_0] : memref<48x32xf32, #tpu.memory_space<vmem>>, vector<48x32xf32>
    %cst = arith.constant dense<0.000000e+00> : vector<48xf32>
    %1 = vector.multi_reduction <add>, %0, %cst [1] : vector<48x32xf32> to vector<48xf32>
    %2 = vector.shape_cast %1 : vector<48xf32> to vector<48x1xf32>
    %cst_1 = arith.constant 3.200000e+01 : f32
    %3 = vector.broadcast %cst_1 : f32 to vector<48x1xf32>
    %4 = arith.divf %2, %3 : vector<48x1xf32>
    %5 = vector.broadcast %4 : vector<48x1xf32> to vector<48x32xf32>
    %6 = arith.subf %0, %5 : vector<48x32xf32>
    %7 = arith.mulf %6, %6 : vector<48x32xf32>
    %cst_2 = arith.constant dense<0.000000e+00> : vector<48xf32>
    %8 = vector.multi_reduction <add>, %7, %cst_2 [1] : vector<48x32xf32> to vector<48xf32>
    %9 = vector.shape_cast %8 : vector<48xf32> to vector<48x1xf32>
    %cst_3 = arith.constant 3.200000e+01 : f32
    %10 = vector.broadcast %cst_3 : f32 to vector<48x1xf32>
    %11 = arith.divf %9, %10 : vector<48x1xf32>
    %12 = vector.broadcast %4 : vector<48x1xf32> to vector<48x32xf32>
    %13 = arith.subf %0, %12 : vector<48x32xf32>
    %cst_4 = arith.constant 9.99999974E-6 : f32
    %14 = vector.broadcast %cst_4 : f32 to vector<48x1xf32>
    %15 = arith.addf %11, %14 : vector<48x1xf32>
    %16 = math.rsqrt %15 : vector<48x1xf32>
    %17 = vector.broadcast %16 : vector<48x1xf32> to vector<48x32xf32>
    %18 = arith.mulf %13, %17 : vector<48x32xf32>
    %c0_5 = arith.constant 0 : index
    %c0_6 = arith.constant 0 : index
    %19 = vector.load %arg2[%c0_5, %c0_6] : memref<1x32xf32, #tpu.memory_space<vmem>>, vector<1x32xf32>
    %20 = vector.broadcast %19 : vector<1x32xf32> to vector<48x32xf32>
    %21 = arith.mulf %18, %20 : vector<48x32xf32>
    %c0_7 = arith.constant 0 : index
    %c0_8 = arith.constant 0 : index
    %22 = vector.load %arg3[%c0_7, %c0_8] : memref<1x32xf32, #tpu.memory_space<vmem>>, vector<1x32xf32>
    %23 = vector.broadcast %22 : vector<1x32xf32> to vector<48x32xf32>
    %24 = arith.addf %21, %23 : vector<48x32xf32>
    %c0_9 = arith.constant 0 : index
    %c0_10 = arith.constant 0 : index
    %25 = vector.load %arg4[%c0_9, %c0_10] : memref<48x32xf32, #tpu.memory_space<vmem>>, vector<48x32xf32>
    tpu.vector_store %arg4[%c0_9, %c0_10], %24 {strides = array<i32>} : memref<48x32xf32, #tpu.memory_space<vmem>>, vector<48x32xf32>,
    return
  }
  func.func @transform_0(%arg0: i32) -> (i32, i32) {
    %c0_i32 = arith.constant 0 : i32
    %c0_i32_0 = arith.constant 0 : i32
    return %arg0, %c0_i32 : i32, i32
  }
  func.func @transform_1(%arg0: i32) -> (i32, i32) {
    %c0_i32 = arith.constant 0 : i32
    %c0_i32_0 = arith.constant 0 : i32
    %c0_i32_1 = arith.constant 0 : i32
    return %c0_i32, %c0_i32_0 : i32, i32
  }
  func.func @transform_2(%arg0: i32) -> (i32, i32) {
    %c0_i32 = arith.constant 0 : i32
    %c0_i32_0 = arith.constant 0 : i32
    %c0_i32_1 = arith.constant 0 : i32
    return %c0_i32, %c0_i32_0 : i32, i32
  }
  func.func @transform_3(%arg0: i32) -> (i32, i32) {
    %c0_i32 = arith.constant 0 : i32
    %c0_i32_0 = arith.constant 0 : i32
    return %arg0, %c0_i32 : i32, i32
  }
}

module attributes {stable_mosaic.version = 11 : i64} {
  func.func @_cross_attn_kernel(%arg0: i32, %arg1: memref<1x24x32xbf16, #tpu.memory_space<vmem>>, %arg2: memref<1x8x64xbf16, #tpu.memory_space<vmem>>, %arg3: memref<1x1x8xf32, #tpu.memory_space<vmem>>, %arg4: memref<32x32xbf16, #tpu.memory_space<vmem>>, %arg5: memref<1x32xf32, #tpu.memory_space<vmem>>, %arg6: memref<1x24x32xf32, #tpu.memory_space<vmem>>, %arg7: memref<1x24x32xf32, #tpu.memory_space<vmem>>) attributes {dimension_semantics = [#tpu.dimension_semantics<parallel>], iteration_bounds = array<i64: 2>, scalar_prefetch = 0 : i64, scratch_operands = 0 : i64, tpu.core_type = #tpu.core_type<tc>, window_params = [{transform_indices = @transform_0, window_bounds = array<i64: 1, 24, 32>}, {transform_indices = @transform_1, window_bounds = array<i64: 1, 8, 64>}, {transform_indices = @transform_2, window_bounds = array<i64: 1, 1, 8>}, {pipeline_mode = #tpu.pipeline_mode<synchronous>, transform_indices = @transform_3, window_bounds = array<i64: 32, 32>}, {pipeline_mode = #tpu.pipeline_mode<synchronous>, transform_indices = @transform_4, window_bounds = array<i64: 1, 32>}, {transform_indices = @transform_5, window_bounds = array<i64: 1, 24, 32>}, {transform_indices = @transform_6, window_bounds = array<i64: 1, 24, 32>}]} {
    %c0 = arith.constant 0 : index
    %c0_0 = arith.constant 0 : index
    %c0_1 = arith.constant 0 : index
    %0 = vector.load %arg3[%c0, %c0_0, %c0_1] : memref<1x1x8xf32, #tpu.memory_space<vmem>>, vector<1x1x8xf32>
    %1 = vector.shape_cast %0 : vector<1x1x8xf32> to vector<1x8xf32>
    %c0_2 = arith.constant 0 : index
    %c0_3 = arith.constant 0 : index
    %c0_4 = arith.constant 0 : index
    %2 = vector.load %arg1[%c0_2, %c0_3, %c0_4] : memref<1x24x32xbf16, #tpu.memory_space<vmem>>, vector<1x24x8xbf16>
    %3 = vector.shape_cast %2 : vector<1x24x8xbf16> to vector<24x8xbf16>
    %c0_5 = arith.constant 0 : index
    %c0_6 = arith.constant 0 : index
    %c0_7 = arith.constant 0 : index
    %4 = vector.load %arg2[%c0_5, %c0_6, %c0_7] : memref<1x8x64xbf16, #tpu.memory_space<vmem>>, vector<1x8x8xbf16>
    %5 = vector.shape_cast %4 : vector<1x8x8xbf16> to vector<8x8xbf16>
    %c0_8 = arith.constant 0 : index
    %c0_9 = arith.constant 0 : index
    %c32 = arith.constant 32 : index
    %6 = vector.load %arg2[%c0_8, %c0_9, %c32] : memref<1x8x64xbf16, #tpu.memory_space<vmem>>, vector<1x8x8xbf16>
    %7 = vector.shape_cast %6 : vector<1x8x8xbf16> to vector<8x8xbf16>
    %cst = arith.constant dense<0.000000e+00> : vector<24x8xf32>
    %8 = tpu.matmul %3, %5, %cst {dimension_numbers = #tpu.dot_dimension_numbers<[1], [1], [0], [0], [0, 0, 1, 0], [], []>} : vector<24x8xbf16>, vector<8x8xbf16>, vector<24x8xf32> -> vector<24x8xf32>
    %9 = vector.broadcast %1 : vector<1x8xf32> to vector<24x8xf32>
    %10 = arith.addf %8, %9 : vector<24x8xf32>
    %cst_10 = arith.constant dense<0xFF800000> : vector<24xf32>
    %11 = vector.multi_reduction <maximumf>, %10, %cst_10 [1] : vector<24x8xf32> to vector<24xf32>
    %12 = vector.shape_cast %11 : vector<24xf32> to vector<24x1xf32>
    %13 = vector.broadcast %12 : vector<24x1xf32> to vector<24x8xf32>
    %14 = arith.subf %10, %13 : vector<24x8xf32>
    %15 = math.exp %14 : vector<24x8xf32>
    %cst_11 = arith.constant dense<0.000000e+00> : vector<24xf32>
    %16 = vector.multi_reduction <add>, %15, %cst_11 [1] : vector<24x8xf32> to vector<24xf32>
    %17 = vector.shape_cast %16 : vector<24xf32> to vector<24x1xf32>
    %18 = tpu.reciprocal %17 {approx = true} : vector<24x1xf32> -> vector<24x1xf32>
    %19 = arith.truncf %15 : vector<24x8xf32> to vector<24x8xbf16>
    %cst_12 = arith.constant dense<0.000000e+00> : vector<24x8xf32>
    %20 = tpu.matmul %19, %7, %cst_12 {dimension_numbers = #tpu.dot_dimension_numbers<[1], [0], [0], [1], [0, 0, 1, 1], [], []>} : vector<24x8xbf16>, vector<8x8xbf16>, vector<24x8xf32> -> vector<24x8xf32>
    %21 = vector.broadcast %18 : vector<24x1xf32> to vector<24x8xf32>
    %22 = arith.mulf %20, %21 : vector<24x8xf32>
    %23 = arith.truncf %22 : vector<24x8xf32> to vector<24x8xbf16>
    %c0_13 = arith.constant 0 : index
    %c0_14 = arith.constant 0 : index
    %24 = vector.load %arg4[%c0_13, %c0_14] : memref<32x32xbf16, #tpu.memory_space<vmem>>, vector<8x32xbf16>
    %cst_15 = arith.constant dense<0.000000e+00> : vector<24x32xf32>
    %25 = tpu.matmul %23, %24, %cst_15 {dimension_numbers = #tpu.dot_dimension_numbers<[1], [0], [0], [1], [0, 0, 1, 1], [], []>} : vector<24x8xbf16>, vector<8x32xbf16>, vector<24x32xf32> -> vector<24x32xf32>
    %c0_16 = arith.constant 0 : index
    %c0_17 = arith.constant 0 : index
    %c8 = arith.constant 8 : index
    %26 = vector.load %arg1[%c0_16, %c0_17, %c8] : memref<1x24x32xbf16, #tpu.memory_space<vmem>>, vector<1x24x8xbf16>
    %27 = vector.shape_cast %26 : vector<1x24x8xbf16> to vector<24x8xbf16>
    %c0_18 = arith.constant 0 : index
    %c0_19 = arith.constant 0 : index
    %c8_20 = arith.constant 8 : index
    %28 = vector.load %arg2[%c0_18, %c0_19, %c8_20] : memref<1x8x64xbf16, #tpu.memory_space<vmem>>, vector<1x8x8xbf16>
    %29 = vector.shape_cast %28 : vector<1x8x8xbf16> to vector<8x8xbf16>
    %c0_21 = arith.constant 0 : index
    %c0_22 = arith.constant 0 : index
    %c40 = arith.constant 40 : index
    %30 = vector.load %arg2[%c0_21, %c0_22, %c40] : memref<1x8x64xbf16, #tpu.memory_space<vmem>>, vector<1x8x8xbf16>
    %31 = vector.shape_cast %30 : vector<1x8x8xbf16> to vector<8x8xbf16>
    %cst_23 = arith.constant dense<0.000000e+00> : vector<24x8xf32>
    %32 = tpu.matmul %27, %29, %cst_23 {dimension_numbers = #tpu.dot_dimension_numbers<[1], [1], [0], [0], [0, 0, 1, 0], [], []>} : vector<24x8xbf16>, vector<8x8xbf16>, vector<24x8xf32> -> vector<24x8xf32>
    %33 = vector.broadcast %1 : vector<1x8xf32> to vector<24x8xf32>
    %34 = arith.addf %32, %33 : vector<24x8xf32>
    %cst_24 = arith.constant dense<0xFF800000> : vector<24xf32>
    %35 = vector.multi_reduction <maximumf>, %34, %cst_24 [1] : vector<24x8xf32> to vector<24xf32>
    %36 = vector.shape_cast %35 : vector<24xf32> to vector<24x1xf32>
    %37 = vector.broadcast %36 : vector<24x1xf32> to vector<24x8xf32>
    %38 = arith.subf %34, %37 : vector<24x8xf32>
    %39 = math.exp %38 : vector<24x8xf32>
    %cst_25 = arith.constant dense<0.000000e+00> : vector<24xf32>
    %40 = vector.multi_reduction <add>, %39, %cst_25 [1] : vector<24x8xf32> to vector<24xf32>
    %41 = vector.shape_cast %40 : vector<24xf32> to vector<24x1xf32>
    %42 = tpu.reciprocal %41 {approx = true} : vector<24x1xf32> -> vector<24x1xf32>
    %43 = arith.truncf %39 : vector<24x8xf32> to vector<24x8xbf16>
    %cst_26 = arith.constant dense<0.000000e+00> : vector<24x8xf32>
    %44 = tpu.matmul %43, %31, %cst_26 {dimension_numbers = #tpu.dot_dimension_numbers<[1], [0], [0], [1], [0, 0, 1, 1], [], []>} : vector<24x8xbf16>, vector<8x8xbf16>, vector<24x8xf32> -> vector<24x8xf32>
    %45 = vector.broadcast %42 : vector<24x1xf32> to vector<24x8xf32>
    %46 = arith.mulf %44, %45 : vector<24x8xf32>
    %47 = arith.truncf %46 : vector<24x8xf32> to vector<24x8xbf16>
    %c8_27 = arith.constant 8 : index
    %c0_28 = arith.constant 0 : index
    %48 = vector.load %arg4[%c8_27, %c0_28] : memref<32x32xbf16, #tpu.memory_space<vmem>>, vector<8x32xbf16>
    %cst_29 = arith.constant dense<0.000000e+00> : vector<24x32xf32>
    %49 = tpu.matmul %47, %48, %cst_29 {dimension_numbers = #tpu.dot_dimension_numbers<[1], [0], [0], [1], [0, 0, 1, 1], [], []>} : vector<24x8xbf16>, vector<8x32xbf16>, vector<24x32xf32> -> vector<24x32xf32>
    %50 = arith.addf %25, %49 : vector<24x32xf32>
    %c0_30 = arith.constant 0 : index
    %c0_31 = arith.constant 0 : index
    %c16 = arith.constant 16 : index
    %51 = vector.load %arg1[%c0_30, %c0_31, %c16] : memref<1x24x32xbf16, #tpu.memory_space<vmem>>, vector<1x24x8xbf16>
    %52 = vector.shape_cast %51 : vector<1x24x8xbf16> to vector<24x8xbf16>
    %c0_32 = arith.constant 0 : index
    %c0_33 = arith.constant 0 : index
    %c16_34 = arith.constant 16 : index
    %53 = vector.load %arg2[%c0_32, %c0_33, %c16_34] : memref<1x8x64xbf16, #tpu.memory_space<vmem>>, vector<1x8x8xbf16>
    %54 = vector.shape_cast %53 : vector<1x8x8xbf16> to vector<8x8xbf16>
    %c0_35 = arith.constant 0 : index
    %c0_36 = arith.constant 0 : index
    %c48 = arith.constant 48 : index
    %55 = vector.load %arg2[%c0_35, %c0_36, %c48] : memref<1x8x64xbf16, #tpu.memory_space<vmem>>, vector<1x8x8xbf16>
    %56 = vector.shape_cast %55 : vector<1x8x8xbf16> to vector<8x8xbf16>
    %cst_37 = arith.constant dense<0.000000e+00> : vector<24x8xf32>
    %57 = tpu.matmul %52, %54, %cst_37 {dimension_numbers = #tpu.dot_dimension_numbers<[1], [1], [0], [0], [0, 0, 1, 0], [], []>} : vector<24x8xbf16>, vector<8x8xbf16>, vector<24x8xf32> -> vector<24x8xf32>
    %58 = vector.broadcast %1 : vector<1x8xf32> to vector<24x8xf32>
    %59 = arith.addf %57, %58 : vector<24x8xf32>
    %cst_38 = arith.constant dense<0xFF800000> : vector<24xf32>
    %60 = vector.multi_reduction <maximumf>, %59, %cst_38 [1] : vector<24x8xf32> to vector<24xf32>
    %61 = vector.shape_cast %60 : vector<24xf32> to vector<24x1xf32>
    %62 = vector.broadcast %61 : vector<24x1xf32> to vector<24x8xf32>
    %63 = arith.subf %59, %62 : vector<24x8xf32>
    %64 = math.exp %63 : vector<24x8xf32>
    %cst_39 = arith.constant dense<0.000000e+00> : vector<24xf32>
    %65 = vector.multi_reduction <add>, %64, %cst_39 [1] : vector<24x8xf32> to vector<24xf32>
    %66 = vector.shape_cast %65 : vector<24xf32> to vector<24x1xf32>
    %67 = tpu.reciprocal %66 {approx = true} : vector<24x1xf32> -> vector<24x1xf32>
    %68 = arith.truncf %64 : vector<24x8xf32> to vector<24x8xbf16>
    %cst_40 = arith.constant dense<0.000000e+00> : vector<24x8xf32>
    %69 = tpu.matmul %68, %56, %cst_40 {dimension_numbers = #tpu.dot_dimension_numbers<[1], [0], [0], [1], [0, 0, 1, 1], [], []>} : vector<24x8xbf16>, vector<8x8xbf16>, vector<24x8xf32> -> vector<24x8xf32>
    %70 = vector.broadcast %67 : vector<24x1xf32> to vector<24x8xf32>
    %71 = arith.mulf %69, %70 : vector<24x8xf32>
    %72 = arith.truncf %71 : vector<24x8xf32> to vector<24x8xbf16>
    %c16_41 = arith.constant 16 : index
    %c0_42 = arith.constant 0 : index
    %73 = vector.load %arg4[%c16_41, %c0_42] : memref<32x32xbf16, #tpu.memory_space<vmem>>, vector<8x32xbf16>
    %cst_43 = arith.constant dense<0.000000e+00> : vector<24x32xf32>
    %74 = tpu.matmul %72, %73, %cst_43 {dimension_numbers = #tpu.dot_dimension_numbers<[1], [0], [0], [1], [0, 0, 1, 1], [], []>} : vector<24x8xbf16>, vector<8x32xbf16>, vector<24x32xf32> -> vector<24x32xf32>
    %75 = arith.addf %50, %74 : vector<24x32xf32>
    %c0_44 = arith.constant 0 : index
    %c0_45 = arith.constant 0 : index
    %c24 = arith.constant 24 : index
    %76 = vector.load %arg1[%c0_44, %c0_45, %c24] : memref<1x24x32xbf16, #tpu.memory_space<vmem>>, vector<1x24x8xbf16>
    %77 = vector.shape_cast %76 : vector<1x24x8xbf16> to vector<24x8xbf16>
    %c0_46 = arith.constant 0 : index
    %c0_47 = arith.constant 0 : index
    %c24_48 = arith.constant 24 : index
    %78 = vector.load %arg2[%c0_46, %c0_47, %c24_48] : memref<1x8x64xbf16, #tpu.memory_space<vmem>>, vector<1x8x8xbf16>
    %79 = vector.shape_cast %78 : vector<1x8x8xbf16> to vector<8x8xbf16>
    %c0_49 = arith.constant 0 : index
    %c0_50 = arith.constant 0 : index
    %c56 = arith.constant 56 : index
    %80 = vector.load %arg2[%c0_49, %c0_50, %c56] : memref<1x8x64xbf16, #tpu.memory_space<vmem>>, vector<1x8x8xbf16>
    %81 = vector.shape_cast %80 : vector<1x8x8xbf16> to vector<8x8xbf16>
    %cst_51 = arith.constant dense<0.000000e+00> : vector<24x8xf32>
    %82 = tpu.matmul %77, %79, %cst_51 {dimension_numbers = #tpu.dot_dimension_numbers<[1], [1], [0], [0], [0, 0, 1, 0], [], []>} : vector<24x8xbf16>, vector<8x8xbf16>, vector<24x8xf32> -> vector<24x8xf32>
    %83 = vector.broadcast %1 : vector<1x8xf32> to vector<24x8xf32>
    %84 = arith.addf %82, %83 : vector<24x8xf32>
    %cst_52 = arith.constant dense<0xFF800000> : vector<24xf32>
    %85 = vector.multi_reduction <maximumf>, %84, %cst_52 [1] : vector<24x8xf32> to vector<24xf32>
    %86 = vector.shape_cast %85 : vector<24xf32> to vector<24x1xf32>
    %87 = vector.broadcast %86 : vector<24x1xf32> to vector<24x8xf32>
    %88 = arith.subf %84, %87 : vector<24x8xf32>
    %89 = math.exp %88 : vector<24x8xf32>
    %cst_53 = arith.constant dense<0.000000e+00> : vector<24xf32>
    %90 = vector.multi_reduction <add>, %89, %cst_53 [1] : vector<24x8xf32> to vector<24xf32>
    %91 = vector.shape_cast %90 : vector<24xf32> to vector<24x1xf32>
    %92 = tpu.reciprocal %91 {approx = true} : vector<24x1xf32> -> vector<24x1xf32>
    %93 = arith.truncf %89 : vector<24x8xf32> to vector<24x8xbf16>
    %cst_54 = arith.constant dense<0.000000e+00> : vector<24x8xf32>
    %94 = tpu.matmul %93, %81, %cst_54 {dimension_numbers = #tpu.dot_dimension_numbers<[1], [0], [0], [1], [0, 0, 1, 1], [], []>} : vector<24x8xbf16>, vector<8x8xbf16>, vector<24x8xf32> -> vector<24x8xf32>
    %95 = vector.broadcast %92 : vector<24x1xf32> to vector<24x8xf32>
    %96 = arith.mulf %94, %95 : vector<24x8xf32>
    %97 = arith.truncf %96 : vector<24x8xf32> to vector<24x8xbf16>
    %c24_55 = arith.constant 24 : index
    %c0_56 = arith.constant 0 : index
    %98 = vector.load %arg4[%c24_55, %c0_56] : memref<32x32xbf16, #tpu.memory_space<vmem>>, vector<8x32xbf16>
    %cst_57 = arith.constant dense<0.000000e+00> : vector<24x32xf32>
    %99 = tpu.matmul %97, %98, %cst_57 {dimension_numbers = #tpu.dot_dimension_numbers<[1], [0], [0], [1], [0, 0, 1, 1], [], []>} : vector<24x8xbf16>, vector<8x32xbf16>, vector<24x32xf32> -> vector<24x32xf32>
    %100 = arith.addf %75, %99 : vector<24x32xf32>
    %c0_58 = arith.constant 0 : index
    %c0_59 = arith.constant 0 : index
    %101 = vector.load %arg5[%c0_58, %c0_59] : memref<1x32xf32, #tpu.memory_space<vmem>>, vector<1x32xf32>
    %102 = vector.broadcast %101 : vector<1x32xf32> to vector<24x32xf32>
    %103 = arith.addf %100, %102 : vector<24x32xf32>
    %c0_60 = arith.constant 0 : index
    %c0_61 = arith.constant 0 : index
    %c0_62 = arith.constant 0 : index
    %104 = vector.load %arg6[%c0_60, %c0_61, %c0_62] : memref<1x24x32xf32, #tpu.memory_space<vmem>>, vector<1x24x32xf32>
    %105 = vector.shape_cast %104 : vector<1x24x32xf32> to vector<24x32xf32>
    %106 = arith.addf %103, %105 : vector<24x32xf32>
    %c0_63 = arith.constant 0 : index
    %c0_64 = arith.constant 0 : index
    %c0_65 = arith.constant 0 : index
    %107 = vector.load %arg7[%c0_63, %c0_64, %c0_65] : memref<1x24x32xf32, #tpu.memory_space<vmem>>, vector<1x24x32xf32>
    %108 = vector.shape_cast %107 : vector<1x24x32xf32> to vector<24x32xf32>
    %109 = vector.shape_cast %106 : vector<24x32xf32> to vector<1x24x32xf32>
    tpu.vector_store %arg7[%c0_63, %c0_64, %c0_65], %109 {strides = array<i32>} : memref<1x24x32xf32, #tpu.memory_space<vmem>>, vector<1x24x32xf32>,
    return
  }
  func.func @transform_0(%arg0: i32) -> (i32, i32, i32) {
    %c0_i32 = arith.constant 0 : i32
    %c0_i32_0 = arith.constant 0 : i32
    %c0_i32_1 = arith.constant 0 : i32
    return %arg0, %c0_i32, %c0_i32_0 : i32, i32, i32
  }
  func.func @transform_1(%arg0: i32) -> (i32, i32, i32) {
    %c0_i32 = arith.constant 0 : i32
    %c0_i32_0 = arith.constant 0 : i32
    %c0_i32_1 = arith.constant 0 : i32
    return %arg0, %c0_i32, %c0_i32_0 : i32, i32, i32
  }
  func.func @transform_2(%arg0: i32) -> (i32, i32, i32) {
    %c0_i32 = arith.constant 0 : i32
    %c0_i32_0 = arith.constant 0 : i32
    %c0_i32_1 = arith.constant 0 : i32
    return %arg0, %c0_i32, %c0_i32_0 : i32, i32, i32
  }
  func.func @transform_3(%arg0: i32) -> (i32, i32) {
    %c0_i32 = arith.constant 0 : i32
    %c0_i32_0 = arith.constant 0 : i32
    %c0_i32_1 = arith.constant 0 : i32
    return %c0_i32, %c0_i32_0 : i32, i32
  }
  func.func @transform_4(%arg0: i32) -> (i32, i32) {
    %c0_i32 = arith.constant 0 : i32
    %c0_i32_0 = arith.constant 0 : i32
    %c0_i32_1 = arith.constant 0 : i32
    return %c0_i32, %c0_i32_0 : i32, i32
  }
  func.func @transform_5(%arg0: i32) -> (i32, i32, i32) {
    %c0_i32 = arith.constant 0 : i32
    %c0_i32_0 = arith.constant 0 : i32
    %c0_i32_1 = arith.constant 0 : i32
    return %arg0, %c0_i32, %c0_i32_0 : i32, i32, i32
  }
  func.func @transform_6(%arg0: i32) -> (i32, i32, i32) {
    %c0_i32 = arith.constant 0 : i32
    %c0_i32_0 = arith.constant 0 : i32
    %c0_i32_1 = arith.constant 0 : i32
    return %arg0, %c0_i32, %c0_i32_0 : i32, i32, i32
  }
}

module attributes {stable_mosaic.version = 11 : i64} {
  func.func @_fused_linear_kernel(%arg0: i32, %arg1: i32, %arg2: memref<48x32xf32, #tpu.memory_space<vmem>>, %arg3: memref<32x128xbf16, #tpu.memory_space<vmem>>, %arg4: memref<1x128xf32, #tpu.memory_space<vmem>>, %arg5: memref<1x32xf32, #tpu.memory_space<vmem>>, %arg6: memref<1x32xf32, #tpu.memory_space<vmem>>, %arg7: memref<48x128xbf16, #tpu.memory_space<vmem>>, %arg8: memref<48x32xbf16, #tpu.memory_space<vmem>>) attributes {dimension_semantics = [#tpu.dimension_semantics<parallel>, #tpu.dimension_semantics<arbitrary>], iteration_bounds = array<i64: 1, 1>, scalar_prefetch = 0 : i64, scratch_operands = 1 : i64, tpu.core_type = #tpu.core_type<tc>, window_params = [{transform_indices = @transform_0, window_bounds = array<i64: 48, 32>}, {transform_indices = @transform_1, window_bounds = array<i64: 32, 128>}, {transform_indices = @transform_2, window_bounds = array<i64: 1, 128>}, {pipeline_mode = #tpu.pipeline_mode<synchronous>, transform_indices = @transform_3, window_bounds = array<i64: 1, 32>}, {pipeline_mode = #tpu.pipeline_mode<synchronous>, transform_indices = @transform_4, window_bounds = array<i64: 1, 32>}, {transform_indices = @transform_5, window_bounds = array<i64: 48, 128>}]} {
    %c0_i32 = arith.constant 0 : i32
    %0 = arith.cmpi eq, %arg1, %c0_i32 : i32
    %1 = arith.extui %0 : i1 to i32
    %c0_i32_0 = arith.constant 0 : i32
    %2 = arith.cmpi ne, %1, %c0_i32_0 : i32
    scf.if %2 {
      %c0_23 = arith.constant 0 : index
      %c0_24 = arith.constant 0 : index
      %51 = vector.load %arg2[%c0_23, %c0_24] : memref<48x32xf32, #tpu.memory_space<vmem>>, vector<48x32xf32>
      %cst_25 = arith.constant dense<0.000000e+00> : vector<48xf32>
      %52 = vector.multi_reduction <add>, %51, %cst_25 [1] : vector<48x32xf32> to vector<48xf32>
      %53 = vector.shape_cast %52 : vector<48xf32> to vector<48x1xf32>
      %cst_26 = arith.constant 3.200000e+01 : f32
      %54 = vector.broadcast %cst_26 : f32 to vector<48x1xf32>
      %55 = arith.divf %53, %54 : vector<48x1xf32>
      %56 = vector.broadcast %55 : vector<48x1xf32> to vector<48x32xf32>
      %57 = arith.subf %51, %56 : vector<48x32xf32>
      %58 = arith.mulf %57, %57 : vector<48x32xf32>
      %cst_27 = arith.constant dense<0.000000e+00> : vector<48xf32>
      %59 = vector.multi_reduction <add>, %58, %cst_27 [1] : vector<48x32xf32> to vector<48xf32>
      %60 = vector.shape_cast %59 : vector<48xf32> to vector<48x1xf32>
      %cst_28 = arith.constant 3.200000e+01 : f32
      %61 = vector.broadcast %cst_28 : f32 to vector<48x1xf32>
      %62 = arith.divf %60, %61 : vector<48x1xf32>
      %63 = vector.broadcast %55 : vector<48x1xf32> to vector<48x32xf32>
      %64 = arith.subf %51, %63 : vector<48x32xf32>
      %cst_29 = arith.constant 9.99999974E-6 : f32
      %65 = vector.broadcast %cst_29 : f32 to vector<48x1xf32>
      %66 = arith.addf %62, %65 : vector<48x1xf32>
      %67 = math.rsqrt %66 : vector<48x1xf32>
      %68 = vector.broadcast %67 : vector<48x1xf32> to vector<48x32xf32>
      %69 = arith.mulf %64, %68 : vector<48x32xf32>
      %c0_30 = arith.constant 0 : index
      %c0_31 = arith.constant 0 : index
      %70 = vector.load %arg5[%c0_30, %c0_31] : memref<1x32xf32, #tpu.memory_space<vmem>>, vector<1x32xf32>
      %71 = vector.broadcast %70 : vector<1x32xf32> to vector<48x32xf32>
      %72 = arith.mulf %69, %71 : vector<48x32xf32>
      %c0_32 = arith.constant 0 : index
      %c0_33 = arith.constant 0 : index
      %73 = vector.load %arg6[%c0_32, %c0_33] : memref<1x32xf32, #tpu.memory_space<vmem>>, vector<1x32xf32>
      %74 = vector.broadcast %73 : vector<1x32xf32> to vector<48x32xf32>
      %75 = arith.addf %72, %74 : vector<48x32xf32>
      %76 = arith.truncf %75 : vector<48x32xf32> to vector<48x32xbf16>
      %c0_34 = arith.constant 0 : index
      %c0_35 = arith.constant 0 : index
      %77 = vector.load %arg8[%c0_34, %c0_35] : memref<48x32xbf16, #tpu.memory_space<vmem>>, vector<48x32xbf16>
      tpu.vector_store %arg8[%c0_34, %c0_35], %76 {strides = array<i32>} : memref<48x32xbf16, #tpu.memory_space<vmem>>, vector<48x32xbf16>,
    } else {
    }
    %c0 = arith.constant 0 : index
    %c0_1 = arith.constant 0 : index
    %3 = vector.load %arg8[%c0, %c0_1] : memref<48x32xbf16, #tpu.memory_space<vmem>>, vector<48x32xbf16>
    %c0_2 = arith.constant 0 : index
    %c0_3 = arith.constant 0 : index
    %4 = vector.load %arg3[%c0_2, %c0_3] : memref<32x128xbf16, #tpu.memory_space<vmem>>, vector<32x128xbf16>
    %cst = arith.constant dense<0.000000e+00> : vector<48x128xf32>
    %5 = tpu.matmul %3, %4, %cst {dimension_numbers = #tpu.dot_dimension_numbers<[1], [0], [0], [1], [0, 0, 1, 1], [], []>} : vector<48x32xbf16>, vector<32x128xbf16>, vector<48x128xf32> -> vector<48x128xf32>
    %c0_4 = arith.constant 0 : index
    %c0_5 = arith.constant 0 : index
    %6 = vector.load %arg4[%c0_4, %c0_5] : memref<1x128xf32, #tpu.memory_space<vmem>>, vector<1x128xf32>
    %7 = vector.broadcast %6 : vector<1x128xf32> to vector<48x128xf32>
    %8 = arith.addf %5, %7 : vector<48x128xf32>
    %cst_6 = arith.constant 5.000000e-01 : f32
    %9 = vector.broadcast %cst_6 : f32 to vector<48x128xf32>
    %10 = arith.mulf %9, %8 : vector<48x128xf32>
    %cst_7 = arith.constant 0.707106769 : f32
    %11 = vector.broadcast %cst_7 : f32 to vector<48x128xf32>
    %12 = arith.mulf %8, %11 : vector<48x128xf32>
    %13 = math.absf %12 : vector<48x128xf32>
    %cst_8 = arith.constant 0.327591091 : f32
    %14 = vector.broadcast %cst_8 : f32 to vector<48x128xf32>
    %15 = arith.mulf %14, %13 : vector<48x128xf32>
    %cst_9 = arith.constant 1.000000e+00 : f32
    %16 = vector.broadcast %cst_9 : f32 to vector<48x128xf32>
    %17 = arith.addf %16, %15 : vector<48x128xf32>
    %cst_10 = arith.constant 1.000000e+00 : f32
    %18 = vector.broadcast %cst_10 : f32 to vector<48x128xf32>
    %19 = arith.divf %18, %17 : vector<48x128xf32>
    %cst_11 = arith.constant 1.06140542 : f32
    %20 = vector.broadcast %cst_11 : f32 to vector<48x128xf32>
    %21 = arith.mulf %20, %19 : vector<48x128xf32>
    %cst_12 = arith.constant -1.45315206 : f32
    %22 = vector.broadcast %cst_12 : f32 to vector<48x128xf32>
    %23 = arith.addf %21, %22 : vector<48x128xf32>
    %24 = arith.mulf %23, %19 : vector<48x128xf32>
    %cst_13 = arith.constant 1.42141378 : f32
    %25 = vector.broadcast %cst_13 : f32 to vector<48x128xf32>
    %26 = arith.addf %24, %25 : vector<48x128xf32>
    %27 = arith.mulf %26, %19 : vector<48x128xf32>
    %cst_14 = arith.constant -0.284496725 : f32
    %28 = vector.broadcast %cst_14 : f32 to vector<48x128xf32>
    %29 = arith.addf %27, %28 : vector<48x128xf32>
    %30 = arith.mulf %29, %19 : vector<48x128xf32>
    %cst_15 = arith.constant 0.254829586 : f32
    %31 = vector.broadcast %cst_15 : f32 to vector<48x128xf32>
    %32 = arith.addf %30, %31 : vector<48x128xf32>
    %33 = arith.mulf %32, %19 : vector<48x128xf32>
    %cst_16 = arith.constant 0.000000e+00 : f32
    %34 = vector.broadcast %cst_16 : f32 to vector<48x128xf32>
    %35 = arith.subf %34, %13 : vector<48x128xf32>
    %36 = arith.mulf %35, %13 : vector<48x128xf32>
    %37 = math.exp %36 : vector<48x128xf32>
    %38 = arith.mulf %33, %37 : vector<48x128xf32>
    %cst_17 = arith.constant 1.000000e+00 : f32
    %39 = vector.broadcast %cst_17 : f32 to vector<48x128xf32>
    %40 = arith.subf %39, %38 : vector<48x128xf32>
    %cst_18 = arith.constant 0.000000e+00 : f32
    %41 = vector.broadcast %cst_18 : f32 to vector<48x128xf32>
    %42 = arith.cmpf oge, %12, %41 : vector<48x128xf32>
    %cst_19 = arith.constant 0.000000e+00 : f32
    %43 = vector.broadcast %cst_19 : f32 to vector<48x128xf32>
    %44 = arith.subf %43, %40 : vector<48x128xf32>
    %45 = arith.select %42, %40, %44 : vector<48x128xi1>, vector<48x128xf32>
    %cst_20 = arith.constant 1.000000e+00 : f32
    %46 = vector.broadcast %cst_20 : f32 to vector<48x128xf32>
    %47 = arith.addf %46, %45 : vector<48x128xf32>
    %48 = arith.mulf %10, %47 : vector<48x128xf32>
    %49 = arith.truncf %48 : vector<48x128xf32> to vector<48x128xbf16>
    %c0_21 = arith.constant 0 : index
    %c0_22 = arith.constant 0 : index
    %50 = vector.load %arg7[%c0_21, %c0_22] : memref<48x128xbf16, #tpu.memory_space<vmem>>, vector<48x128xbf16>
    tpu.vector_store %arg7[%c0_21, %c0_22], %49 {strides = array<i32>} : memref<48x128xbf16, #tpu.memory_space<vmem>>, vector<48x128xbf16>,
    return
  }
  func.func @transform_0(%arg0: i32, %arg1: i32) -> (i32, i32) {
    %c0_i32 = arith.constant 0 : i32
    %c0_i32_0 = arith.constant 0 : i32
    return %arg0, %c0_i32 : i32, i32
  }
  func.func @transform_1(%arg0: i32, %arg1: i32) -> (i32, i32) {
    %c0_i32 = arith.constant 0 : i32
    %c0_i32_0 = arith.constant 0 : i32
    return %c0_i32, %arg1 : i32, i32
  }
  func.func @transform_2(%arg0: i32, %arg1: i32) -> (i32, i32) {
    %c0_i32 = arith.constant 0 : i32
    %c0_i32_0 = arith.constant 0 : i32
    return %c0_i32, %arg1 : i32, i32
  }
  func.func @transform_3(%arg0: i32, %arg1: i32) -> (i32, i32) {
    %c0_i32 = arith.constant 0 : i32
    %c0_i32_0 = arith.constant 0 : i32
    %c0_i32_1 = arith.constant 0 : i32
    return %c0_i32, %c0_i32_0 : i32, i32
  }
  func.func @transform_4(%arg0: i32, %arg1: i32) -> (i32, i32) {
    %c0_i32 = arith.constant 0 : i32
    %c0_i32_0 = arith.constant 0 : i32
    %c0_i32_1 = arith.constant 0 : i32
    return %c0_i32, %c0_i32_0 : i32, i32
  }
  func.func @transform_5(%arg0: i32, %arg1: i32) -> (i32, i32) {
    %c0_i32 = arith.constant 0 : i32
    return %arg0, %arg1 : i32, i32
  }
}

module attributes {stable_mosaic.version = 11 : i64} {
  func.func @_fused_linear_kernel(%arg0: i32, %arg1: i32, %arg2: memref<48x32xf32, #tpu.memory_space<vmem>>, %arg3: memref<32x96xbf16, #tpu.memory_space<vmem>>, %arg4: memref<1x96xf32, #tpu.memory_space<vmem>>, %arg5: memref<1x32xf32, #tpu.memory_space<vmem>>, %arg6: memref<1x32xf32, #tpu.memory_space<vmem>>, %arg7: memref<48x96xbf16, #tpu.memory_space<vmem>>, %arg8: memref<48x32xbf16, #tpu.memory_space<vmem>>) attributes {dimension_semantics = [#tpu.dimension_semantics<parallel>, #tpu.dimension_semantics<arbitrary>], iteration_bounds = array<i64: 1, 1>, scalar_prefetch = 0 : i64, scratch_operands = 1 : i64, tpu.core_type = #tpu.core_type<tc>, window_params = [{transform_indices = @transform_0, window_bounds = array<i64: 48, 32>}, {transform_indices = @transform_1, window_bounds = array<i64: 32, 96>}, {transform_indices = @transform_2, window_bounds = array<i64: 1, 96>}, {pipeline_mode = #tpu.pipeline_mode<synchronous>, transform_indices = @transform_3, window_bounds = array<i64: 1, 32>}, {pipeline_mode = #tpu.pipeline_mode<synchronous>, transform_indices = @transform_4, window_bounds = array<i64: 1, 32>}, {transform_indices = @transform_5, window_bounds = array<i64: 48, 96>}]} {
    %c0_i32 = arith.constant 0 : i32
    %0 = arith.cmpi eq, %arg1, %c0_i32 : i32
    %1 = arith.extui %0 : i1 to i32
    %c0_i32_0 = arith.constant 0 : i32
    %2 = arith.cmpi ne, %1, %c0_i32_0 : i32
    scf.if %2 {
      %c0_8 = arith.constant 0 : index
      %c0_9 = arith.constant 0 : index
      %11 = vector.load %arg2[%c0_8, %c0_9] : memref<48x32xf32, #tpu.memory_space<vmem>>, vector<48x32xf32>
      %cst_10 = arith.constant dense<0.000000e+00> : vector<48xf32>
      %12 = vector.multi_reduction <add>, %11, %cst_10 [1] : vector<48x32xf32> to vector<48xf32>
      %13 = vector.shape_cast %12 : vector<48xf32> to vector<48x1xf32>
      %cst_11 = arith.constant 3.200000e+01 : f32
      %14 = vector.broadcast %cst_11 : f32 to vector<48x1xf32>
      %15 = arith.divf %13, %14 : vector<48x1xf32>
      %16 = vector.broadcast %15 : vector<48x1xf32> to vector<48x32xf32>
      %17 = arith.subf %11, %16 : vector<48x32xf32>
      %18 = arith.mulf %17, %17 : vector<48x32xf32>
      %cst_12 = arith.constant dense<0.000000e+00> : vector<48xf32>
      %19 = vector.multi_reduction <add>, %18, %cst_12 [1] : vector<48x32xf32> to vector<48xf32>
      %20 = vector.shape_cast %19 : vector<48xf32> to vector<48x1xf32>
      %cst_13 = arith.constant 3.200000e+01 : f32
      %21 = vector.broadcast %cst_13 : f32 to vector<48x1xf32>
      %22 = arith.divf %20, %21 : vector<48x1xf32>
      %23 = vector.broadcast %15 : vector<48x1xf32> to vector<48x32xf32>
      %24 = arith.subf %11, %23 : vector<48x32xf32>
      %cst_14 = arith.constant 9.99999974E-6 : f32
      %25 = vector.broadcast %cst_14 : f32 to vector<48x1xf32>
      %26 = arith.addf %22, %25 : vector<48x1xf32>
      %27 = math.rsqrt %26 : vector<48x1xf32>
      %28 = vector.broadcast %27 : vector<48x1xf32> to vector<48x32xf32>
      %29 = arith.mulf %24, %28 : vector<48x32xf32>
      %c0_15 = arith.constant 0 : index
      %c0_16 = arith.constant 0 : index
      %30 = vector.load %arg5[%c0_15, %c0_16] : memref<1x32xf32, #tpu.memory_space<vmem>>, vector<1x32xf32>
      %31 = vector.broadcast %30 : vector<1x32xf32> to vector<48x32xf32>
      %32 = arith.mulf %29, %31 : vector<48x32xf32>
      %c0_17 = arith.constant 0 : index
      %c0_18 = arith.constant 0 : index
      %33 = vector.load %arg6[%c0_17, %c0_18] : memref<1x32xf32, #tpu.memory_space<vmem>>, vector<1x32xf32>
      %34 = vector.broadcast %33 : vector<1x32xf32> to vector<48x32xf32>
      %35 = arith.addf %32, %34 : vector<48x32xf32>
      %36 = arith.truncf %35 : vector<48x32xf32> to vector<48x32xbf16>
      %c0_19 = arith.constant 0 : index
      %c0_20 = arith.constant 0 : index
      %37 = vector.load %arg8[%c0_19, %c0_20] : memref<48x32xbf16, #tpu.memory_space<vmem>>, vector<48x32xbf16>
      tpu.vector_store %arg8[%c0_19, %c0_20], %36 {strides = array<i32>} : memref<48x32xbf16, #tpu.memory_space<vmem>>, vector<48x32xbf16>,
    } else {
    }
    %c0 = arith.constant 0 : index
    %c0_1 = arith.constant 0 : index
    %3 = vector.load %arg8[%c0, %c0_1] : memref<48x32xbf16, #tpu.memory_space<vmem>>, vector<48x32xbf16>
    %c0_2 = arith.constant 0 : index
    %c0_3 = arith.constant 0 : index
    %4 = vector.load %arg3[%c0_2, %c0_3] : memref<32x96xbf16, #tpu.memory_space<vmem>>, vector<32x96xbf16>
    %cst = arith.constant dense<0.000000e+00> : vector<48x96xf32>
    %5 = tpu.matmul %3, %4, %cst {dimension_numbers = #tpu.dot_dimension_numbers<[1], [0], [0], [1], [0, 0, 1, 1], [], []>} : vector<48x32xbf16>, vector<32x96xbf16>, vector<48x96xf32> -> vector<48x96xf32>
    %c0_4 = arith.constant 0 : index
    %c0_5 = arith.constant 0 : index
    %6 = vector.load %arg4[%c0_4, %c0_5] : memref<1x96xf32, #tpu.memory_space<vmem>>, vector<1x96xf32>
    %7 = vector.broadcast %6 : vector<1x96xf32> to vector<48x96xf32>
    %8 = arith.addf %5, %7 : vector<48x96xf32>
    %9 = arith.truncf %8 : vector<48x96xf32> to vector<48x96xbf16>
    %c0_6 = arith.constant 0 : index
    %c0_7 = arith.constant 0 : index
    %10 = vector.load %arg7[%c0_6, %c0_7] : memref<48x96xbf16, #tpu.memory_space<vmem>>, vector<48x96xbf16>
    tpu.vector_store %arg7[%c0_6, %c0_7], %9 {strides = array<i32>} : memref<48x96xbf16, #tpu.memory_space<vmem>>, vector<48x96xbf16>,
    return
  }
  func.func @transform_0(%arg0: i32, %arg1: i32) -> (i32, i32) {
    %c0_i32 = arith.constant 0 : i32
    %c0_i32_0 = arith.constant 0 : i32
    return %arg0, %c0_i32 : i32, i32
  }
  func.func @transform_1(%arg0: i32, %arg1: i32) -> (i32, i32) {
    %c0_i32 = arith.constant 0 : i32
    %c0_i32_0 = arith.constant 0 : i32
    return %c0_i32, %arg1 : i32, i32
  }
  func.func @transform_2(%arg0: i32, %arg1: i32) -> (i32, i32) {
    %c0_i32 = arith.constant 0 : i32
    %c0_i32_0 = arith.constant 0 : i32
    return %c0_i32, %arg1 : i32, i32
  }
  func.func @transform_3(%arg0: i32, %arg1: i32) -> (i32, i32) {
    %c0_i32 = arith.constant 0 : i32
    %c0_i32_0 = arith.constant 0 : i32
    %c0_i32_1 = arith.constant 0 : i32
    return %c0_i32, %c0_i32_0 : i32, i32
  }
  func.func @transform_4(%arg0: i32, %arg1: i32) -> (i32, i32) {
    %c0_i32 = arith.constant 0 : i32
    %c0_i32_0 = arith.constant 0 : i32
    %c0_i32_1 = arith.constant 0 : i32
    return %c0_i32, %c0_i32_0 : i32, i32
  }
  func.func @transform_5(%arg0: i32, %arg1: i32) -> (i32, i32) {
    %c0_i32 = arith.constant 0 : i32
    return %arg0, %arg1 : i32, i32
  }
}

module attributes {stable_mosaic.version = 11 : i64} {
  func.func @_self_attn_kernel(%arg0: i32, %arg1: memref<1x24x96xbf16, #tpu.memory_space<vmem>>, %arg2: memref<32x32xbf16, #tpu.memory_space<vmem>>, %arg3: memref<1x32xf32, #tpu.memory_space<vmem>>, %arg4: memref<1x24x32xf32, #tpu.memory_space<vmem>>, %arg5: memref<1x24x32xf32, #tpu.memory_space<vmem>>) attributes {dimension_semantics = [#tpu.dimension_semantics<parallel>], iteration_bounds = array<i64: 2>, scalar_prefetch = 0 : i64, scratch_operands = 0 : i64, tpu.core_type = #tpu.core_type<tc>, window_params = [{transform_indices = @transform_0, window_bounds = array<i64: 1, 24, 96>}, {pipeline_mode = #tpu.pipeline_mode<synchronous>, transform_indices = @transform_1, window_bounds = array<i64: 32, 32>}, {pipeline_mode = #tpu.pipeline_mode<synchronous>, transform_indices = @transform_2, window_bounds = array<i64: 1, 32>}, {transform_indices = @transform_3, window_bounds = array<i64: 1, 24, 32>}, {transform_indices = @transform_4, window_bounds = array<i64: 1, 24, 32>}]} {
    %0 = tpu.iota {dimensions = array<i32: 1>} : vector<1x24xi32>
    %c17_i32 = arith.constant 17 : i32
    %1 = vector.broadcast %c17_i32 : i32 to vector<1x24xi32>
    %2 = arith.cmpi slt, %0, %1 : vector<1x24xi32>
    %cst = arith.constant 0.000000e+00 : f32
    %cst_0 = arith.constant -1.000000e+30 : f32
    %3 = vector.broadcast %cst : f32 to vector<1x24xf32>
    %4 = vector.broadcast %cst_0 : f32 to vector<1x24xf32>
    %5 = arith.select %2, %3, %4 : vector<1x24xi1>, vector<1x24xf32>
    %c0 = arith.constant 0 : index
    %c0_1 = arith.constant 0 : index
    %c0_2 = arith.constant 0 : index
    %6 = vector.load %arg1[%c0, %c0_1, %c0_2] : memref<1x24x96xbf16, #tpu.memory_space<vmem>>, vector<1x24x8xbf16>
    %7 = vector.shape_cast %6 : vector<1x24x8xbf16> to vector<24x8xbf16>
    %c0_3 = arith.constant 0 : index
    %c0_4 = arith.constant 0 : index
    %c32 = arith.constant 32 : index
    %8 = vector.load %arg1[%c0_3, %c0_4, %c32] : memref<1x24x96xbf16, #tpu.memory_space<vmem>>, vector<1x24x8xbf16>
    %9 = vector.shape_cast %8 : vector<1x24x8xbf16> to vector<24x8xbf16>
    %c0_5 = arith.constant 0 : index
    %c0_6 = arith.constant 0 : index
    %c64 = arith.constant 64 : index
    %10 = vector.load %arg1[%c0_5, %c0_6, %c64] : memref<1x24x96xbf16, #tpu.memory_space<vmem>>, vector<1x24x8xbf16>
    %11 = vector.shape_cast %10 : vector<1x24x8xbf16> to vector<24x8xbf16>
    %cst_7 = arith.constant dense<0.000000e+00> : vector<24x24xf32>
    %12 = tpu.matmul %7, %9, %cst_7 {dimension_numbers = #tpu.dot_dimension_numbers<[1], [1], [0], [0], [0, 0, 1, 0], [], []>} : vector<24x8xbf16>, vector<24x8xbf16>, vector<24x24xf32> -> vector<24x24xf32>
    %13 = vector.broadcast %5 : vector<1x24xf32> to vector<24x24xf32>
    %14 = arith.addf %12, %13 : vector<24x24xf32>
    %cst_8 = arith.constant dense<0xFF800000> : vector<24xf32>
    %15 = vector.multi_reduction <maximumf>, %14, %cst_8 [1] : vector<24x24xf32> to vector<24xf32>
    %16 = vector.shape_cast %15 : vector<24xf32> to vector<24x1xf32>
    %17 = vector.broadcast %16 : vector<24x1xf32> to vector<24x24xf32>
    %18 = arith.subf %14, %17 : vector<24x24xf32>
    %19 = math.exp %18 : vector<24x24xf32>
    %cst_9 = arith.constant dense<0.000000e+00> : vector<24xf32>
    %20 = vector.multi_reduction <add>, %19, %cst_9 [1] : vector<24x24xf32> to vector<24xf32>
    %21 = vector.shape_cast %20 : vector<24xf32> to vector<24x1xf32>
    %22 = tpu.reciprocal %21 {approx = true} : vector<24x1xf32> -> vector<24x1xf32>
    %23 = arith.truncf %19 : vector<24x24xf32> to vector<24x24xbf16>
    %cst_10 = arith.constant dense<0.000000e+00> : vector<24x8xf32>
    %24 = tpu.matmul %23, %11, %cst_10 {dimension_numbers = #tpu.dot_dimension_numbers<[1], [0], [0], [1], [0, 0, 1, 1], [], []>} : vector<24x24xbf16>, vector<24x8xbf16>, vector<24x8xf32> -> vector<24x8xf32>
    %25 = vector.broadcast %22 : vector<24x1xf32> to vector<24x8xf32>
    %26 = arith.mulf %24, %25 : vector<24x8xf32>
    %27 = arith.truncf %26 : vector<24x8xf32> to vector<24x8xbf16>
    %c0_11 = arith.constant 0 : index
    %c0_12 = arith.constant 0 : index
    %28 = vector.load %arg2[%c0_11, %c0_12] : memref<32x32xbf16, #tpu.memory_space<vmem>>, vector<8x32xbf16>
    %cst_13 = arith.constant dense<0.000000e+00> : vector<24x32xf32>
    %29 = tpu.matmul %27, %28, %cst_13 {dimension_numbers = #tpu.dot_dimension_numbers<[1], [0], [0], [1], [0, 0, 1, 1], [], []>} : vector<24x8xbf16>, vector<8x32xbf16>, vector<24x32xf32> -> vector<24x32xf32>
    %c0_14 = arith.constant 0 : index
    %c0_15 = arith.constant 0 : index
    %c8 = arith.constant 8 : index
    %30 = vector.load %arg1[%c0_14, %c0_15, %c8] : memref<1x24x96xbf16, #tpu.memory_space<vmem>>, vector<1x24x8xbf16>
    %31 = vector.shape_cast %30 : vector<1x24x8xbf16> to vector<24x8xbf16>
    %c0_16 = arith.constant 0 : index
    %c0_17 = arith.constant 0 : index
    %c40 = arith.constant 40 : index
    %32 = vector.load %arg1[%c0_16, %c0_17, %c40] : memref<1x24x96xbf16, #tpu.memory_space<vmem>>, vector<1x24x8xbf16>
    %33 = vector.shape_cast %32 : vector<1x24x8xbf16> to vector<24x8xbf16>
    %c0_18 = arith.constant 0 : index
    %c0_19 = arith.constant 0 : index
    %c72 = arith.constant 72 : index
    %34 = vector.load %arg1[%c0_18, %c0_19, %c72] : memref<1x24x96xbf16, #tpu.memory_space<vmem>>, vector<1x24x8xbf16>
    %35 = vector.shape_cast %34 : vector<1x24x8xbf16> to vector<24x8xbf16>
    %cst_20 = arith.constant dense<0.000000e+00> : vector<24x24xf32>
    %36 = tpu.matmul %31, %33, %cst_20 {dimension_numbers = #tpu.dot_dimension_numbers<[1], [1], [0], [0], [0, 0, 1, 0], [], []>} : vector<24x8xbf16>, vector<24x8xbf16>, vector<24x24xf32> -> vector<24x24xf32>
    %37 = vector.broadcast %5 : vector<1x24xf32> to vector<24x24xf32>
    %38 = arith.addf %36, %37 : vector<24x24xf32>
    %cst_21 = arith.constant dense<0xFF800000> : vector<24xf32>
    %39 = vector.multi_reduction <maximumf>, %38, %cst_21 [1] : vector<24x24xf32> to vector<24xf32>
    %40 = vector.shape_cast %39 : vector<24xf32> to vector<24x1xf32>
    %41 = vector.broadcast %40 : vector<24x1xf32> to vector<24x24xf32>
    %42 = arith.subf %38, %41 : vector<24x24xf32>
    %43 = math.exp %42 : vector<24x24xf32>
    %cst_22 = arith.constant dense<0.000000e+00> : vector<24xf32>
    %44 = vector.multi_reduction <add>, %43, %cst_22 [1] : vector<24x24xf32> to vector<24xf32>
    %45 = vector.shape_cast %44 : vector<24xf32> to vector<24x1xf32>
    %46 = tpu.reciprocal %45 {approx = true} : vector<24x1xf32> -> vector<24x1xf32>
    %47 = arith.truncf %43 : vector<24x24xf32> to vector<24x24xbf16>
    %cst_23 = arith.constant dense<0.000000e+00> : vector<24x8xf32>
    %48 = tpu.matmul %47, %35, %cst_23 {dimension_numbers = #tpu.dot_dimension_numbers<[1], [0], [0], [1], [0, 0, 1, 1], [], []>} : vector<24x24xbf16>, vector<24x8xbf16>, vector<24x8xf32> -> vector<24x8xf32>
    %49 = vector.broadcast %46 : vector<24x1xf32> to vector<24x8xf32>
    %50 = arith.mulf %48, %49 : vector<24x8xf32>
    %51 = arith.truncf %50 : vector<24x8xf32> to vector<24x8xbf16>
    %c8_24 = arith.constant 8 : index
    %c0_25 = arith.constant 0 : index
    %52 = vector.load %arg2[%c8_24, %c0_25] : memref<32x32xbf16, #tpu.memory_space<vmem>>, vector<8x32xbf16>
    %cst_26 = arith.constant dense<0.000000e+00> : vector<24x32xf32>
    %53 = tpu.matmul %51, %52, %cst_26 {dimension_numbers = #tpu.dot_dimension_numbers<[1], [0], [0], [1], [0, 0, 1, 1], [], []>} : vector<24x8xbf16>, vector<8x32xbf16>, vector<24x32xf32> -> vector<24x32xf32>
    %54 = arith.addf %29, %53 : vector<24x32xf32>
    %c0_27 = arith.constant 0 : index
    %c0_28 = arith.constant 0 : index
    %c16 = arith.constant 16 : index
    %55 = vector.load %arg1[%c0_27, %c0_28, %c16] : memref<1x24x96xbf16, #tpu.memory_space<vmem>>, vector<1x24x8xbf16>
    %56 = vector.shape_cast %55 : vector<1x24x8xbf16> to vector<24x8xbf16>
    %c0_29 = arith.constant 0 : index
    %c0_30 = arith.constant 0 : index
    %c48 = arith.constant 48 : index
    %57 = vector.load %arg1[%c0_29, %c0_30, %c48] : memref<1x24x96xbf16, #tpu.memory_space<vmem>>, vector<1x24x8xbf16>
    %58 = vector.shape_cast %57 : vector<1x24x8xbf16> to vector<24x8xbf16>
    %c0_31 = arith.constant 0 : index
    %c0_32 = arith.constant 0 : index
    %c80 = arith.constant 80 : index
    %59 = vector.load %arg1[%c0_31, %c0_32, %c80] : memref<1x24x96xbf16, #tpu.memory_space<vmem>>, vector<1x24x8xbf16>
    %60 = vector.shape_cast %59 : vector<1x24x8xbf16> to vector<24x8xbf16>
    %cst_33 = arith.constant dense<0.000000e+00> : vector<24x24xf32>
    %61 = tpu.matmul %56, %58, %cst_33 {dimension_numbers = #tpu.dot_dimension_numbers<[1], [1], [0], [0], [0, 0, 1, 0], [], []>} : vector<24x8xbf16>, vector<24x8xbf16>, vector<24x24xf32> -> vector<24x24xf32>
    %62 = vector.broadcast %5 : vector<1x24xf32> to vector<24x24xf32>
    %63 = arith.addf %61, %62 : vector<24x24xf32>
    %cst_34 = arith.constant dense<0xFF800000> : vector<24xf32>
    %64 = vector.multi_reduction <maximumf>, %63, %cst_34 [1] : vector<24x24xf32> to vector<24xf32>
    %65 = vector.shape_cast %64 : vector<24xf32> to vector<24x1xf32>
    %66 = vector.broadcast %65 : vector<24x1xf32> to vector<24x24xf32>
    %67 = arith.subf %63, %66 : vector<24x24xf32>
    %68 = math.exp %67 : vector<24x24xf32>
    %cst_35 = arith.constant dense<0.000000e+00> : vector<24xf32>
    %69 = vector.multi_reduction <add>, %68, %cst_35 [1] : vector<24x24xf32> to vector<24xf32>
    %70 = vector.shape_cast %69 : vector<24xf32> to vector<24x1xf32>
    %71 = tpu.reciprocal %70 {approx = true} : vector<24x1xf32> -> vector<24x1xf32>
    %72 = arith.truncf %68 : vector<24x24xf32> to vector<24x24xbf16>
    %cst_36 = arith.constant dense<0.000000e+00> : vector<24x8xf32>
    %73 = tpu.matmul %72, %60, %cst_36 {dimension_numbers = #tpu.dot_dimension_numbers<[1], [0], [0], [1], [0, 0, 1, 1], [], []>} : vector<24x24xbf16>, vector<24x8xbf16>, vector<24x8xf32> -> vector<24x8xf32>
    %74 = vector.broadcast %71 : vector<24x1xf32> to vector<24x8xf32>
    %75 = arith.mulf %73, %74 : vector<24x8xf32>
    %76 = arith.truncf %75 : vector<24x8xf32> to vector<24x8xbf16>
    %c16_37 = arith.constant 16 : index
    %c0_38 = arith.constant 0 : index
    %77 = vector.load %arg2[%c16_37, %c0_38] : memref<32x32xbf16, #tpu.memory_space<vmem>>, vector<8x32xbf16>
    %cst_39 = arith.constant dense<0.000000e+00> : vector<24x32xf32>
    %78 = tpu.matmul %76, %77, %cst_39 {dimension_numbers = #tpu.dot_dimension_numbers<[1], [0], [0], [1], [0, 0, 1, 1], [], []>} : vector<24x8xbf16>, vector<8x32xbf16>, vector<24x32xf32> -> vector<24x32xf32>
    %79 = arith.addf %54, %78 : vector<24x32xf32>
    %c0_40 = arith.constant 0 : index
    %c0_41 = arith.constant 0 : index
    %c24 = arith.constant 24 : index
    %80 = vector.load %arg1[%c0_40, %c0_41, %c24] : memref<1x24x96xbf16, #tpu.memory_space<vmem>>, vector<1x24x8xbf16>
    %81 = vector.shape_cast %80 : vector<1x24x8xbf16> to vector<24x8xbf16>
    %c0_42 = arith.constant 0 : index
    %c0_43 = arith.constant 0 : index
    %c56 = arith.constant 56 : index
    %82 = vector.load %arg1[%c0_42, %c0_43, %c56] : memref<1x24x96xbf16, #tpu.memory_space<vmem>>, vector<1x24x8xbf16>
    %83 = vector.shape_cast %82 : vector<1x24x8xbf16> to vector<24x8xbf16>
    %c0_44 = arith.constant 0 : index
    %c0_45 = arith.constant 0 : index
    %c88 = arith.constant 88 : index
    %84 = vector.load %arg1[%c0_44, %c0_45, %c88] : memref<1x24x96xbf16, #tpu.memory_space<vmem>>, vector<1x24x8xbf16>
    %85 = vector.shape_cast %84 : vector<1x24x8xbf16> to vector<24x8xbf16>
    %cst_46 = arith.constant dense<0.000000e+00> : vector<24x24xf32>
    %86 = tpu.matmul %81, %83, %cst_46 {dimension_numbers = #tpu.dot_dimension_numbers<[1], [1], [0], [0], [0, 0, 1, 0], [], []>} : vector<24x8xbf16>, vector<24x8xbf16>, vector<24x24xf32> -> vector<24x24xf32>
    %87 = vector.broadcast %5 : vector<1x24xf32> to vector<24x24xf32>
    %88 = arith.addf %86, %87 : vector<24x24xf32>
    %cst_47 = arith.constant dense<0xFF800000> : vector<24xf32>
    %89 = vector.multi_reduction <maximumf>, %88, %cst_47 [1] : vector<24x24xf32> to vector<24xf32>
    %90 = vector.shape_cast %89 : vector<24xf32> to vector<24x1xf32>
    %91 = vector.broadcast %90 : vector<24x1xf32> to vector<24x24xf32>
    %92 = arith.subf %88, %91 : vector<24x24xf32>
    %93 = math.exp %92 : vector<24x24xf32>
    %cst_48 = arith.constant dense<0.000000e+00> : vector<24xf32>
    %94 = vector.multi_reduction <add>, %93, %cst_48 [1] : vector<24x24xf32> to vector<24xf32>
    %95 = vector.shape_cast %94 : vector<24xf32> to vector<24x1xf32>
    %96 = tpu.reciprocal %95 {approx = true} : vector<24x1xf32> -> vector<24x1xf32>
    %97 = arith.truncf %93 : vector<24x24xf32> to vector<24x24xbf16>
    %cst_49 = arith.constant dense<0.000000e+00> : vector<24x8xf32>
    %98 = tpu.matmul %97, %85, %cst_49 {dimension_numbers = #tpu.dot_dimension_numbers<[1], [0], [0], [1], [0, 0, 1, 1], [], []>} : vector<24x24xbf16>, vector<24x8xbf16>, vector<24x8xf32> -> vector<24x8xf32>
    %99 = vector.broadcast %96 : vector<24x1xf32> to vector<24x8xf32>
    %100 = arith.mulf %98, %99 : vector<24x8xf32>
    %101 = arith.truncf %100 : vector<24x8xf32> to vector<24x8xbf16>
    %c24_50 = arith.constant 24 : index
    %c0_51 = arith.constant 0 : index
    %102 = vector.load %arg2[%c24_50, %c0_51] : memref<32x32xbf16, #tpu.memory_space<vmem>>, vector<8x32xbf16>
    %cst_52 = arith.constant dense<0.000000e+00> : vector<24x32xf32>
    %103 = tpu.matmul %101, %102, %cst_52 {dimension_numbers = #tpu.dot_dimension_numbers<[1], [0], [0], [1], [0, 0, 1, 1], [], []>} : vector<24x8xbf16>, vector<8x32xbf16>, vector<24x32xf32> -> vector<24x32xf32>
    %104 = arith.addf %79, %103 : vector<24x32xf32>
    %c0_53 = arith.constant 0 : index
    %c0_54 = arith.constant 0 : index
    %105 = vector.load %arg3[%c0_53, %c0_54] : memref<1x32xf32, #tpu.memory_space<vmem>>, vector<1x32xf32>
    %106 = vector.broadcast %105 : vector<1x32xf32> to vector<24x32xf32>
    %107 = arith.addf %104, %106 : vector<24x32xf32>
    %c0_55 = arith.constant 0 : index
    %c0_56 = arith.constant 0 : index
    %c0_57 = arith.constant 0 : index
    %108 = vector.load %arg4[%c0_55, %c0_56, %c0_57] : memref<1x24x32xf32, #tpu.memory_space<vmem>>, vector<1x24x32xf32>
    %109 = vector.shape_cast %108 : vector<1x24x32xf32> to vector<24x32xf32>
    %110 = arith.addf %107, %109 : vector<24x32xf32>
    %c0_58 = arith.constant 0 : index
    %c0_59 = arith.constant 0 : index
    %c0_60 = arith.constant 0 : index
    %111 = vector.load %arg5[%c0_58, %c0_59, %c0_60] : memref<1x24x32xf32, #tpu.memory_space<vmem>>, vector<1x24x32xf32>
    %112 = vector.shape_cast %111 : vector<1x24x32xf32> to vector<24x32xf32>
    %113 = vector.shape_cast %110 : vector<24x32xf32> to vector<1x24x32xf32>
    tpu.vector_store %arg5[%c0_58, %c0_59, %c0_60], %113 {strides = array<i32>} : memref<1x24x32xf32, #tpu.memory_space<vmem>>, vector<1x24x32xf32>,
    return
  }
  func.func @transform_0(%arg0: i32) -> (i32, i32, i32) {
    %c0_i32 = arith.constant 0 : i32
    %c0_i32_0 = arith.constant 0 : i32
    %c0_i32_1 = arith.constant 0 : i32
    return %arg0, %c0_i32, %c0_i32_0 : i32, i32, i32
  }
  func.func @transform_1(%arg0: i32) -> (i32, i32) {
    %c0_i32 = arith.constant 0 : i32
    %c0_i32_0 = arith.constant 0 : i32
    %c0_i32_1 = arith.constant 0 : i32
    return %c0_i32, %c0_i32_0 : i32, i32
  }
  func.func @transform_2(%arg0: i32) -> (i32, i32) {
    %c0_i32 = arith.constant 0 : i32
    %c0_i32_0 = arith.constant 0 : i32
    %c0_i32_1 = arith.constant 0 : i32
    return %c0_i32, %c0_i32_0 : i32, i32
  }
  func.func @transform_3(%arg0: i32) -> (i32, i32, i32) {
    %c0_i32 = arith.constant 0 : i32
    %c0_i32_0 = arith.constant 0 : i32
    %c0_i32_1 = arith.constant 0 : i32
    return %arg0, %c0_i32, %c0_i32_0 : i32, i32, i32
  }
  func.func @transform_4(%arg0: i32) -> (i32, i32, i32) {
    %c0_i32 = arith.constant 0 : i32
    %c0_i32_0 = arith.constant 0 : i32
    %c0_i32_1 = arith.constant 0 : i32
    return %arg0, %c0_i32, %c0_i32_0 : i32, i32, i32
  }
}

module attributes {stable_mosaic.version = 11 : i64} {
  func.func @_fused_linear_kernel(%arg0: i32, %arg1: i32, %arg2: memref<48x32xf32, #tpu.memory_space<vmem>>, %arg3: memref<32x16xbf16, #tpu.memory_space<vmem>>, %arg4: memref<1x32xf32, #tpu.memory_space<vmem>>, %arg5: memref<1x32xf32, #tpu.memory_space<vmem>>, %arg6: memref<48x16xf32, #tpu.memory_space<vmem>>, %arg7: memref<48x32xbf16, #tpu.memory_space<vmem>>) attributes {dimension_semantics = [#tpu.dimension_semantics<parallel>, #tpu.dimension_semantics<arbitrary>], iteration_bounds = array<i64: 1, 1>, scalar_prefetch = 0 : i64, scratch_operands = 1 : i64, tpu.core_type = #tpu.core_type<tc>, window_params = [{transform_indices = @transform_0, window_bounds = array<i64: 48, 32>}, {transform_indices = @transform_1, window_bounds = array<i64: 32, 16>}, {pipeline_mode = #tpu.pipeline_mode<synchronous>, transform_indices = @transform_2, window_bounds = array<i64: 1, 32>}, {pipeline_mode = #tpu.pipeline_mode<synchronous>, transform_indices = @transform_3, window_bounds = array<i64: 1, 32>}, {transform_indices = @transform_4, window_bounds = array<i64: 48, 16>}]} {
    %c0_i32 = arith.constant 0 : i32
    %0 = arith.cmpi eq, %arg1, %c0_i32 : i32
    %1 = arith.extui %0 : i1 to i32
    %c0_i32_0 = arith.constant 0 : i32
    %2 = arith.cmpi ne, %1, %c0_i32_0 : i32
    scf.if %2 {
      %c0_6 = arith.constant 0 : index
      %c0_7 = arith.constant 0 : index
      %7 = vector.load %arg2[%c0_6, %c0_7] : memref<48x32xf32, #tpu.memory_space<vmem>>, vector<48x32xf32>
      %cst_8 = arith.constant dense<0.000000e+00> : vector<48xf32>
      %8 = vector.multi_reduction <add>, %7, %cst_8 [1] : vector<48x32xf32> to vector<48xf32>
      %9 = vector.shape_cast %8 : vector<48xf32> to vector<48x1xf32>
      %cst_9 = arith.constant 3.200000e+01 : f32
      %10 = vector.broadcast %cst_9 : f32 to vector<48x1xf32>
      %11 = arith.divf %9, %10 : vector<48x1xf32>
      %12 = vector.broadcast %11 : vector<48x1xf32> to vector<48x32xf32>
      %13 = arith.subf %7, %12 : vector<48x32xf32>
      %14 = arith.mulf %13, %13 : vector<48x32xf32>
      %cst_10 = arith.constant dense<0.000000e+00> : vector<48xf32>
      %15 = vector.multi_reduction <add>, %14, %cst_10 [1] : vector<48x32xf32> to vector<48xf32>
      %16 = vector.shape_cast %15 : vector<48xf32> to vector<48x1xf32>
      %cst_11 = arith.constant 3.200000e+01 : f32
      %17 = vector.broadcast %cst_11 : f32 to vector<48x1xf32>
      %18 = arith.divf %16, %17 : vector<48x1xf32>
      %19 = vector.broadcast %11 : vector<48x1xf32> to vector<48x32xf32>
      %20 = arith.subf %7, %19 : vector<48x32xf32>
      %cst_12 = arith.constant 9.99999974E-6 : f32
      %21 = vector.broadcast %cst_12 : f32 to vector<48x1xf32>
      %22 = arith.addf %18, %21 : vector<48x1xf32>
      %23 = math.rsqrt %22 : vector<48x1xf32>
      %24 = vector.broadcast %23 : vector<48x1xf32> to vector<48x32xf32>
      %25 = arith.mulf %20, %24 : vector<48x32xf32>
      %c0_13 = arith.constant 0 : index
      %c0_14 = arith.constant 0 : index
      %26 = vector.load %arg4[%c0_13, %c0_14] : memref<1x32xf32, #tpu.memory_space<vmem>>, vector<1x32xf32>
      %27 = vector.broadcast %26 : vector<1x32xf32> to vector<48x32xf32>
      %28 = arith.mulf %25, %27 : vector<48x32xf32>
      %c0_15 = arith.constant 0 : index
      %c0_16 = arith.constant 0 : index
      %29 = vector.load %arg5[%c0_15, %c0_16] : memref<1x32xf32, #tpu.memory_space<vmem>>, vector<1x32xf32>
      %30 = vector.broadcast %29 : vector<1x32xf32> to vector<48x32xf32>
      %31 = arith.addf %28, %30 : vector<48x32xf32>
      %32 = arith.truncf %31 : vector<48x32xf32> to vector<48x32xbf16>
      %c0_17 = arith.constant 0 : index
      %c0_18 = arith.constant 0 : index
      %33 = vector.load %arg7[%c0_17, %c0_18] : memref<48x32xbf16, #tpu.memory_space<vmem>>, vector<48x32xbf16>
      tpu.vector_store %arg7[%c0_17, %c0_18], %32 {strides = array<i32>} : memref<48x32xbf16, #tpu.memory_space<vmem>>, vector<48x32xbf16>,
    } else {
    }
    %c0 = arith.constant 0 : index
    %c0_1 = arith.constant 0 : index
    %3 = vector.load %arg7[%c0, %c0_1] : memref<48x32xbf16, #tpu.memory_space<vmem>>, vector<48x32xbf16>
    %c0_2 = arith.constant 0 : index
    %c0_3 = arith.constant 0 : index
    %4 = vector.load %arg3[%c0_2, %c0_3] : memref<32x16xbf16, #tpu.memory_space<vmem>>, vector<32x16xbf16>
    %cst = arith.constant dense<0.000000e+00> : vector<48x16xf32>
    %5 = tpu.matmul %3, %4, %cst {dimension_numbers = #tpu.dot_dimension_numbers<[1], [0], [0], [1], [0, 0, 1, 1], [], []>} : vector<48x32xbf16>, vector<32x16xbf16>, vector<48x16xf32> -> vector<48x16xf32>
    %c0_4 = arith.constant 0 : index
    %c0_5 = arith.constant 0 : index
    %6 = vector.load %arg6[%c0_4, %c0_5] : memref<48x16xf32, #tpu.memory_space<vmem>>, vector<48x16xf32>
    tpu.vector_store %arg6[%c0_4, %c0_5], %5 {strides = array<i32>} : memref<48x16xf32, #tpu.memory_space<vmem>>, vector<48x16xf32>,
    return
  }
  func.func @transform_0(%arg0: i32, %arg1: i32) -> (i32, i32) {
    %c0_i32 = arith.constant 0 : i32
    %c0_i32_0 = arith.constant 0 : i32
    return %arg0, %c0_i32 : i32, i32
  }
  func.func @transform_1(%arg0: i32, %arg1: i32) -> (i32, i32) {
    %c0_i32 = arith.constant 0 : i32
    %c0_i32_0 = arith.constant 0 : i32
    return %c0_i32, %arg1 : i32, i32
  }
  func.func @transform_2(%arg0: i32, %arg1: i32) -> (i32, i32) {
    %c0_i32 = arith.constant 0 : i32
    %c0_i32_0 = arith.constant 0 : i32
    %c0_i32_1 = arith.constant 0 : i32
    return %c0_i32, %c0_i32_0 : i32, i32
  }
  func.func @transform_3(%arg0: i32, %arg1: i32) -> (i32, i32) {
    %c0_i32 = arith.constant 0 : i32
    %c0_i32_0 = arith.constant 0 : i32
    %c0_i32_1 = arith.constant 0 : i32
    return %c0_i32, %c0_i32_0 : i32, i32
  }
  func.func @transform_4(%arg0: i32, %arg1: i32) -> (i32, i32) {
    %c0_i32 = arith.constant 0 : i32
    return %arg0, %arg1 : i32, i32
  }
}

</mosaic_0001>

<llo_original>
// kernel: prompted_vit_forward.19
$region0: #{prompted_vit_forward.19}
  #allocation0 [shape = 'u32[]', space=smem, size = 0x4, offset = 0x4, fixed_abs, tag = 'smem constant byte address 0x4 - core index']
  #allocation1 [shape = 'u32[144,128]{1,0:T(1,128)}', space=vmem, size = 0x12000, scoped, tag = 'internal scratch']
  #allocation2 [shape = 'bf16[48,32]{1,0:T(16,128)(2,1)}', space=vmem, size = 0x3000, scoped, tag = 'scratch operand']
  %s0 = inlined_call_operand.vmem [shape: f32[48,32], index: 0, kind: input, shape index: {}]
  %s1 = inlined_call_operand.vmem [shape: bf16[32,32], index: 1, kind: input, shape index: {}]
  %s2 = inlined_call_operand.vmem [shape: f32[1,32], index: 2, kind: input, shape index: {}]
  %s3 = inlined_call_operand.vmem [shape: f32[1,32], index: 3, kind: input, shape index: {}]
  %s4 = inlined_call_operand.vmem [shape: f32[1,32], index: 4, kind: input, shape index: {}]
  %s5 = inlined_call_operand.vmem [shape: bf16[48,32], index: 5, kind: output, shape index: {}]
  %s6 = sld [smem:[#allocation0]]
  $region34: #{prompted_vit_forward.19} parent=0
    _
  %s8 = ssub.s32 1, %s6
  %s9 = scalar_select 0, %s8, %s6
  // Predicated region
  $region2: #{prompted_vit_forward.19} parent=0 // pred_check
    _
  $region3: #{prompted_vit_forward.19} parent=0 // pred_check_branch
    %11 = sbr.rel (0) target = $region5
  $region4: #{prompted_vit_forward.19} parent=0 // pred_region
    _
  $region5: #{prompted_vit_forward.19} parent=0 // pred_fallthru
    _
  // Predicated region
  $region6: #{prompted_vit_forward.19} parent=0 // pred_check
    _
  $region7: #{prompted_vit_forward.19} parent=0 // pred_check_branch
    %13 = sbr.rel (0) target = $region9
  $region8: #{prompted_vit_forward.19} parent=0 // pred_region
    _
  $region9: #{prompted_vit_forward.19} parent=0 // pred_fallthru
    _
  // Predicated region
  $region10: #{prompted_vit_forward.19} parent=0 // pred_check
    _
  $region11: #{prompted_vit_forward.19} parent=0 // pred_check_branch
    %15 = sbr.rel (0) target = $region13
  $region12: #{prompted_vit_forward.19} parent=0 // pred_region
    _
  $region13: #{prompted_vit_forward.19} parent=0 // pred_fallthru
    _
  // Predicated region
  $region14: #{prompted_vit_forward.19} parent=0 // pred_check
    _
  $region15: #{prompted_vit_forward.19} parent=0 // pred_check_branch
    %17 = sbr.rel (0) target = $region17
  $region16: #{prompted_vit_forward.19} parent=0 // pred_region
    _
  $region17: #{prompted_vit_forward.19} parent=0 // pred_fallthru
    _
  // Predicated region
  $region18: #{prompted_vit_forward.19} parent=0 // pred_check
    _
  $region19: #{prompted_vit_forward.19} parent=0 // pred_check_branch
    %19 = sbr.rel (0) target = $region21
  $region20: #{prompted_vit_forward.19} parent=0 // pred_region
    _
  $region21: #{prompted_vit_forward.19} parent=0 // pred_fallthru
    _
  %p21 = scmp.eq.s32.totalorder 0, 0
  // Predicated region
  $region22: #{prompted_vit_forward.19} parent=0 // pred_check
    %p22 = pneg %p21
  $region23: #{prompted_vit_forward.19} parent=0 // pred_check_branch
    %24 = sbr.rel (%p22) target = $region25
  $region24: #{prompted_vit_forward.19} parent=0 // pred_region
    %v25 = vld [vmem:[%s0] sm:$0xff]
    %v26 = vld [vmem:[%s0 + $0x8] sm:$0xff]
    %v27 = vld [vmem:[%s0 + $0x10] sm:$0xff]
    %v28 = vld [vmem:[%s0 + $0x18] sm:$0xff]
    %v29 = vld [vmem:[%s0 + $0x20] sm:$0xff]
    %v30 = vld [vmem:[%s0 + $0x28] sm:$0xff]
    %vm31 = vcmask 261120
    %v32 = vsel %vm31, %v25, 0.0
    %33 = vadd.xlane.f32.xlu0 %v32
    %v34 = vpop.xlane.xlu0 %33
    %v35 = vsel %vm31, %v26, 0.0
    %36 = vadd.xlane.f32.xlu0 %v35
    %v37 = vpop.xlane.xlu0 %36
    %v38 = vsel %vm31, %v27, 0.0
    %39 = vadd.xlane.f32.xlu0 %v38
    %v40 = vpop.xlane.xlu0 %39
    %v41 = vsel %vm31, %v28, 0.0
    %42 = vadd.xlane.f32.xlu0 %v41
    %v43 = vpop.xlane.xlu0 %42
    %v44 = vsel %vm31, %v29, 0.0
    %45 = vadd.xlane.f32.xlu0 %v44
    %v46 = vpop.xlane.xlu0 %45
    %v47 = vsel %vm31, %v30, 0.0
    %48 = vadd.xlane.f32.xlu0 %v47
    %v49 = vpop.xlane.xlu0 %48
    %v50 = vrcp.pop 32.0
    %v51 = vmul.f32 %v34, %v50
    %v52 = vmul.f32 %v37, %v50
    %v53 = vmul.f32 %v40, %v50
    %v54 = vmul.f32 %v43, %v50
    %v55 = vmul.f32 %v46, %v50
    %v56 = vmul.f32 %v49, %v50
    %v57 = vsub.f32 %v25, %v51
    %v58 = vsub.f32 %v26, %v52
    %v59 = vsub.f32 %v27, %v53
    %v60 = vsub.f32 %v28, %v54
    %v61 = vsub.f32 %v29, %v55
    %v62 = vsub.f32 %v30, %v56
    %v63 = vmul.f32 %v57, %v57
    %v64 = vmul.f32 %v58, %v58
    %v65 = vmul.f32 %v59, %v59
    %v66 = vmul.f32 %v60, %v60
    %v67 = vmul.f32 %v61, %v61
    %v68 = vmul.f32 %v62, %v62
    %v69 = vsel %vm31, %v63, 0.0
    %70 = vadd.xlane.f32.xlu0 %v69
    %v71 = vpop.xlane.xlu0 %70
    %v72 = vsel %vm31, %v64, 0.0
    %73 = vadd.xlane.f32.xlu0 %v72
    %v74 = vpop.xlane.xlu0 %73
    %v75 = vsel %vm31, %v65, 0.0
    %76 = vadd.xlane.f32.xlu0 %v75
    %v77 = vpop.xlane.xlu0 %76
    %v78 = vsel %vm31, %v66, 0.0
    %79 = vadd.xlane.f32.xlu0 %v78
    %v80 = vpop.xlane.xlu0 %79
    %v81 = vsel %vm31, %v67, 0.0
    %82 = vadd.xlane.f32.xlu0 %v81
    %v83 = vpop.xlane.xlu0 %82
    %v84 = vsel %vm31, %v68, 0.0
    %85 = vadd.xlane.f32.xlu0 %v84
    %v86 = vpop.xlane.xlu0 %85
    %v87 = vmul.f32 %v71, %v50
    %v88 = vmul.f32 %v74, %v50
    %v89 = vmul.f32 %v77, %v50
    %v90 = vmul.f32 %v80, %v50
    %v91 = vmul.f32 %v83, %v50
    %v92 = vmul.f32 %v86, %v50
    %v93 = vadd.f32 %v87, 1e-05
    %v94 = vadd.f32 %v88, 1e-05
    %v95 = vadd.f32 %v89, 1e-05
    %v96 = vadd.f32 %v90, 1e-05
    %v97 = vadd.f32 %v91, 1e-05
    %v98 = vadd.f32 %v92, 1e-05
    %v99 = vrsqrt.pop %v93
    %v100 = vrsqrt.pop %v94
    %v101 = vrsqrt.pop %v95
    %v102 = vrsqrt.pop %v96
    %v103 = vrsqrt.pop %v97
    %v104 = vrsqrt.pop %v98
    %v105 = vmul.f32 %v57, %v99
    %v106 = vmul.f32 %v58, %v100
    %v107 = vmul.f32 %v59, %v101
    %v108 = vmul.f32 %v60, %v102
    %v109 = vmul.f32 %v61, %v103
    %v110 = vmul.f32 %v62, %v104
    %v111 = vld [vmem:[%s3] sm:$0x1]
    %v113 = vlaneseq
    %v114 = vshrl.u32 %v113, 7
    %v115 = vsub.s32 0, %v114
    %v116 = vrot.slane %v111, %v115
    %v118 = vmul.f32 %v105, %v116
    %v119 = vmul.f32 %v106, %v116
    %v120 = vmul.f32 %v107, %v116
    %v121 = vmul.f32 %v108, %v116
    %v122 = vmul.f32 %v109, %v116
    %v123 = vmul.f32 %v110, %v116
    %v124 = vld [vmem:[%s4] sm:$0x1]
    %v126 = vlaneseq
    %v127 = vshrl.u32 %v126, 7
    %v128 = vsub.s32 0, %v127
    %v129 = vrot.slane %v124, %v128
    %v131 = vadd.f32 %v118, %v129
    %v132 = vadd.f32 %v119, %v129
    %v133 = vadd.f32 %v120, %v129
    %v134 = vadd.f32 %v121, %v129
    %v135 = vadd.f32 %v122, %v129
    %v136 = vadd.f32 %v123, %v129
    %v137 = vpack.c.bf16 %v132, %v131
    %v138 = vpack.c.bf16 %v134, %v133
    %v139 = vpack.c.bf16 %v136, %v135
    %140 = vst.msk [vmem:[#allocation2] sm:$0xff] %vm31, %v137
    %141 = vst.msk [vmem:[#allocation2 + $0x8] sm:$0xff] %vm31, %v138
    %142 = vst.msk [vmem:[#allocation2 + $0x10] sm:$0xff] %vm31, %v139
  $region25: #{prompted_vit_forward.19} parent=0 // pred_fallthru
    _
  %v143 = vld [vmem:[#allocation2] sm:$0xff]
  %v144 = vld [vmem:[#allocation2 + $0x8] sm:$0xff]
  %v145 = vld [vmem:[#allocation2 + $0x10] sm:$0xff]
  %v146 = vld [vmem:[%s1] sm:$0xf]
  %v147 = vld [vmem:[%s1 + $0x4] sm:$0xf]
  %v148 = vld [vmem:[%s1 + $0x8] sm:$0xf]
  %v149 = vld [vmem:[%s1 + $0xc] sm:$0xf]
  %v150 = vld [vmem:[%s2] sm:$0x1]
  %v152 = vlaneseq
  %v153 = vshrl.u32 %v152, 7
  %v154 = vsub.s32 0, %v153
  %v155 = vrot.slane %v150, %v154
  %v161 = vunpack.c.l.b16 %v146
  %v162 = vunpack.c.l.b16 %v147
  %v163 = vunpack.c.l.b16 %v148
  %v164 = vunpack.c.l.b16 %v149
  %v165 = vpack.c.b16 %v162, %v161
  %v166 = vpack.c.b16 %v164, %v163
  %vm169 = vcmask 261120
  %v171 = vsel %vm169, %v143, 0
  %v174 = vsel %vm169, %v144, 0
  %v177 = vsel %vm169, %v145, 0
  %179 = vmatprep.subr.bf16.mxu0 0
  %180 = vmatpush1.bf16.msra.mxu0 %v165
  %181 = vmatprep.subr.bf16.mxu0 0
  %182 = vmatpush1.bf16.msra.mxu0 %v166
  %183 = vmatprep.subr.bf16.mxu0 0
  %184 = vmatpush1.bf16.msra.mxu0 0
  %185 = vmatprep.subr.bf16.mxu0 0
  %186 = vmatpush1.bf16.msra.mxu0 0
  %187 = vmatprep.subr.bf16.mxu0 0
  %188 = vmatpush1.bf16.msra.mxu0 0
  %189 = vmatprep.subr.bf16.mxu0 0
  %190 = vmatpush1.bf16.msra.mxu0 0
  %191 = vmatprep.subr.bf16.mxu0 0
  %192 = vmatpush1.bf16.msra.mxu0 0
  %193 = vmatprep.subr.bf16.mxu0 0
  %194 = vmatpush1.bf16.msra.mxu0 0
  %195 = vmatprep.subr.bf16.mxu0 0
  %196 = vmatpush1.bf16.msra.mxu0 0
  %197 = vmatprep.subr.bf16.mxu0 0
  %198 = vmatpush1.bf16.msra.mxu0 0
  %199 = vmatprep.subr.bf16.mxu0 0
  %200 = vmatpush1.bf16.msra.mxu0 0
  %201 = vmatprep.subr.bf16.mxu0 0
  %202 = vmatpush1.bf16.msra.mxu0 0
  %203 = vmatprep.subr.bf16.mxu0 0
  %204 = vmatpush1.bf16.msra.mxu0 0
  %205 = vmatprep.subr.bf16.mxu0 0
  %206 = vmatpush1.bf16.msra.mxu0 0
  %207 = vmatprep.subr.bf16.mxu0 0
  %208 = vmatpush1.bf16.msra.mxu0 0
  %209 = vmatprep.subr.bf16.mxu0 0
  %210 = vmatpush1.bf16.msra.mxu0 0
  %211 = vmatprep.mubr.bf16.mxu0 0
  %212 = vmatmul.mubr.bf16.gmra.mrb[0].mxu0 %v171
  %v213 = vpop.f32.mrb[0].mxu0
  %v214 = vadd.f32 %v155, %v213
  %v215 = vpop.f32.mrb[0].mxu0
  %v216 = vpop.f32.mrb[0].mxu0
  %v217 = vadd.f32 %v155, %v216
  %v218 = vpop.f32.mrb[0].mxu0
  %219 = vmatprep.mubr.bf16.mxu0 0
  %220 = vmatmul.mubr.bf16.gmra.mrb[0].mxu0 %v174
  %v221 = vpop.f32.mrb[0].mxu0
  %v222 = vadd.f32 %v155, %v221
  %v223 = vpop.f32.mrb[0].mxu0
  %v224 = vpop.f32.mrb[0].mxu0
  %v225 = vadd.f32 %v155, %v224
  %v226 = vpop.f32.mrb[0].mxu0
  %227 = vmatprep.mubr.bf16.mxu0 0
  %228 = vmatmul.mubr.bf16.gmra.mrb[0].mxu0 %v177
  %v229 = vpop.f32.mrb[0].mxu0
  %v230 = vadd.f32 %v155, %v229
  %v231 = vpop.f32.mrb[0].mxu0
  %v232 = vpop.f32.mrb[0].mxu0
  %v233 = vadd.f32 %v155, %v232
  %v234 = vpop.f32.mrb[0].mxu0
  %235 = vdwg.mxu0
  %v236 = vpack.c.bf16 %v217, %v214
  %v237 = vpack.c.bf16 %v225, %v222
  %v238 = vpack.c.bf16 %v233, %v230
  %v242 = vunpack.c.l.b16 %v236
  %v243 = vunpack.c.h.b16 %v236
  %v244 = vunpack.c.l.b16 %v237
  %v245 = vunpack.c.h.b16 %v237
  %v246 = vunpack.c.l.b16 %v238
  %v247 = vunpack.c.h.b16 %v238
  %v248 = vpack.c.b16 %v242, %v242
  %v249 = vpack.c.b16 %v243, %v243
  %v250 = vpack.c.b16 %v244, %v244
  %v251 = vpack.c.b16 %v245, %v245
  %v252 = vpack.c.b16 %v246, %v246
  %v253 = vpack.c.b16 %v247, %v247
  %vm260 = vcmask 257024
  %261 = vst.msk [vmem:[%s5] sm:$0xf] %vm260, %v248
  %262 = vst.msk [vmem:[%s5 + $0x4] sm:$0xf] %vm260, %v249
  %263 = vst.msk [vmem:[%s5 + $0x8] sm:$0xf] %vm260, %v250
  %264 = vst.msk [vmem:[%s5 + $0xc] sm:$0xf] %vm260, %v251
  %265 = vst.msk [vmem:[%s5 + $0x10] sm:$0xf] %vm260, %v252
  %266 = vst.msk [vmem:[%s5 + $0x14] sm:$0xf] %vm260, %v253
  // Predicated region
  $region26: #{prompted_vit_forward.19} parent=0 // pred_check
    _
  $region27: #{prompted_vit_forward.19} parent=0 // pred_check_branch
    %268 = sbr.rel (0) target = $region29
  $region28: #{prompted_vit_forward.19} parent=0 // pred_region
    _
  $region29: #{prompted_vit_forward.19} parent=0 // pred_fallthru
    _
  // Predicated region
  $region30: #{prompted_vit_forward.19} parent=0 // pred_check
    _
  $region31: #{prompted_vit_forward.19} parent=0 // pred_check_branch
    %270 = sbr.rel (0) target = $region33
  $region32: #{prompted_vit_forward.19} parent=0 // pred_region
    _
  $region33: #{prompted_vit_forward.19} parent=0 // pred_fallthru
    _

// kernel: prompted_vit_forward.17
$region0: #{prompted_vit_forward.17}
  #allocation0 [shape = 'u32[]', space=smem, size = 0x4, offset = 0x4, fixed_abs, tag = 'smem constant byte address 0x4 - core index']
  #allocation1 [shape = 'u32[144,128]{1,0:T(1,128)}', space=vmem, size = 0x12000, scoped, tag = 'internal scratch']
  %s0 = inlined_call_operand.vmem [shape: f32[32,48], index: 0, kind: input, shape index: {}]
  %s1 = inlined_call_operand.vmem [shape: bf16[48,32], index: 1, kind: input, shape index: {}]
  %s2 = inlined_call_operand.vmem [shape: f32[32,32], index: 2, kind: output, shape index: {}]
  %s3 = sld [smem:[#allocation0]]
  $region18: #{prompted_vit_forward.17} parent=0
    _
  %s5 = ssub.s32 1, %s3
  %s6 = scalar_select 0, %s5, %s3
  // Predicated region
  $region2: #{prompted_vit_forward.17} parent=0 // pred_check
    _
  $region3: #{prompted_vit_forward.17} parent=0 // pred_check_branch
    %8 = sbr.rel (0) target = $region5
  $region4: #{prompted_vit_forward.17} parent=0 // pred_region
    _
  $region5: #{prompted_vit_forward.17} parent=0 // pred_fallthru
    _
  // Predicated region
  $region6: #{prompted_vit_forward.17} parent=0 // pred_check
    _
  $region7: #{prompted_vit_forward.17} parent=0 // pred_check_branch
    %10 = sbr.rel (0) target = $region9
  $region8: #{prompted_vit_forward.17} parent=0 // pred_region
    _
  $region9: #{prompted_vit_forward.17} parent=0 // pred_fallthru
    _
  %v12 = vld [vmem:[%s0] sm:$0xff]
  %v13 = vld [vmem:[%s0 + $0x8] sm:$0xff]
  %v14 = vld [vmem:[%s0 + $0x10] sm:$0xff]
  %v15 = vld [vmem:[%s0 + $0x18] sm:$0xff]
  %v16 = vpack.c.bf16 %v13, %v12
  %v17 = vpack.c.bf16 %v15, %v14
  %v18 = vld [vmem:[%s1] sm:$0xf]
  %v19 = vld [vmem:[%s1 + $0x4] sm:$0xf]
  %v20 = vld [vmem:[%s1 + $0x8] sm:$0xf]
  %v21 = vld [vmem:[%s1 + $0xc] sm:$0xf]
  %v22 = vld [vmem:[%s1 + $0x10] sm:$0xf]
  %v23 = vld [vmem:[%s1 + $0x14] sm:$0xf]
  %v30 = vunpack.c.l.b16 %v18
  %v31 = vunpack.c.l.b16 %v19
  %v32 = vunpack.c.l.b16 %v20
  %v33 = vunpack.c.l.b16 %v21
  %v34 = vunpack.c.l.b16 %v22
  %v35 = vunpack.c.l.b16 %v23
  %v36 = vpack.c.b16 %v31, %v30
  %v37 = vpack.c.b16 %v33, %v32
  %v38 = vpack.c.b16 %v35, %v34
  %vm42 = vcmask 392192
  %v44 = vsel %vm42, %v16, 0
  %v47 = vsel %vm42, %v17, 0
  %49 = vmatprep.subr.bf16.mxu0 0
  %50 = vmatpush1.bf16.msra.mxu0 %v36
  %51 = vmatprep.subr.bf16.mxu0 0
  %52 = vmatpush1.bf16.msra.mxu0 %v37
  %53 = vmatprep.subr.bf16.mxu0 0
  %54 = vmatpush1.bf16.msra.mxu0 %v38
  %55 = vmatprep.subr.bf16.mxu0 0
  %56 = vmatpush1.bf16.msra.mxu0 0
  %57 = vmatprep.subr.bf16.mxu0 0
  %58 = vmatpush1.bf16.msra.mxu0 0
  %59 = vmatprep.subr.bf16.mxu0 0
  %60 = vmatpush1.bf16.msra.mxu0 0
  %61 = vmatprep.subr.bf16.mxu0 0
  %62 = vmatpush1.bf16.msra.mxu0 0
  %63 = vmatprep.subr.bf16.mxu0 0
  %64 = vmatpush1.bf16.msra.mxu0 0
  %65 = vmatprep.subr.bf16.mxu0 0
  %66 = vmatpush1.bf16.msra.mxu0 0
  %67 = vmatprep.subr.bf16.mxu0 0
  %68 = vmatpush1.bf16.msra.mxu0 0
  %69 = vmatprep.subr.bf16.mxu0 0
  %70 = vmatpush1.bf16.msra.mxu0 0
  %71 = vmatprep.subr.bf16.mxu0 0
  %72 = vmatpush1.bf16.msra.mxu0 0
  %73 = vmatprep.subr.bf16.mxu0 0
  %74 = vmatpush1.bf16.msra.mxu0 0
  %75 = vmatprep.subr.bf16.mxu0 0
  %76 = vmatpush1.bf16.msra.mxu0 0
  %77 = vmatprep.subr.bf16.mxu0 0
  %78 = vmatpush1.bf16.msra.mxu0 0
  %79 = vmatprep.subr.bf16.mxu0 0
  %80 = vmatpush1.bf16.msra.mxu0 0
  %81 = vmatprep.mubr.bf16.mxu0 0
  %82 = vmatmul.mubr.bf16.gmra.mrb[0].mxu0 %v44
  %v83 = vpop.f32.mrb[0].mxu0
  %v84 = vadd.f32 0.0, %v83
  %v85 = vpop.f32.mrb[0].mxu0
  %v86 = vpop.f32.mrb[0].mxu0
  %v87 = vadd.f32 0.0, %v86
  %v88 = vpop.f32.mrb[0].mxu0
  %89 = vmatprep.mubr.bf16.mxu0 0
  %90 = vmatmul.mubr.bf16.gmra.mrb[0].mxu0 %v47
  %v91 = vpop.f32.mrb[0].mxu0
  %v92 = vadd.f32 0.0, %v91
  %v93 = vpop.f32.mrb[0].mxu0
  %v94 = vpop.f32.mrb[0].mxu0
  %v95 = vadd.f32 0.0, %v94
  %v96 = vpop.f32.mrb[0].mxu0
  %97 = vdwg.mxu0
  %vm98 = vcmask 261120
  %99 = vst.msk [vmem:[%s2] sm:$0xff] %vm98, %v84
  %100 = vst.msk [vmem:[%s2 + $0x8] sm:$0xff] %vm98, %v87
  %101 = vst.msk [vmem:[%s2 + $0x10] sm:$0xff] %vm98, %v92
  %102 = vst.msk [vmem:[%s2 + $0x18] sm:$0xff] %vm98, %v95
  // Predicated region
  $region10: #{prompted_vit_forward.17} parent=0 // pred_check
    _
  $region11: #{prompted_vit_forward.17} parent=0 // pred_check_branch
    %104 = sbr.rel (0) target = $region13
  $region12: #{prompted_vit_forward.17} parent=0 // pred_region
    _
  $region13: #{prompted_vit_forward.17} parent=0 // pred_fallthru
    _
  // Predicated region
  $region14: #{prompted_vit_forward.17} parent=0 // pred_check
    _
  $region15: #{prompted_vit_forward.17} parent=0 // pred_check_branch
    %106 = sbr.rel (0) target = $region17
  $region16: #{prompted_vit_forward.17} parent=0 // pred_region
    _
  $region17: #{prompted_vit_forward.17} parent=0 // pred_fallthru
    _

// kernel: prompted_vit_forward.18
$region0: #{prompted_vit_forward.18}
  #allocation0 [shape = 'u32[]', space=smem, size = 0x4, offset = 0x4, fixed_abs, tag = 'smem constant byte address 0x4 - core index']
  #allocation1 [shape = 'u32[144,128]{1,0:T(1,128)}', space=vmem, size = 0x12000, scoped, tag = 'internal scratch']
  %s0 = inlined_call_operand.vmem [shape: f32[16,128], index: 0, kind: input, shape index: {}]
  %s1 = inlined_call_operand.vmem [shape: bf16[128,32], index: 1, kind: input, shape index: {}]
  %s2 = inlined_call_operand.vmem [shape: f32[1,32], index: 2, kind: input, shape index: {}]
  %s3 = inlined_call_operand.vmem [shape: f32[16,32], index: 3, kind: output, shape index: {}]
  %s4 = sld [smem:[#allocation0]]
  $region22: #{prompted_vit_forward.18} parent=0
    _
  %s6 = ssub.s32 1, %s4
  %s7 = scalar_select 0, %s6, %s4
  // Predicated region
  $region2: #{prompted_vit_forward.18} parent=0 // pred_check
    _
  $region3: #{prompted_vit_forward.18} parent=0 // pred_check_branch
    %9 = sbr.rel (0) target = $region5
  $region4: #{prompted_vit_forward.18} parent=0 // pred_region
    _
  $region5: #{prompted_vit_forward.18} parent=0 // pred_fallthru
    _
  // Predicated region
  $region6: #{prompted_vit_forward.18} parent=0 // pred_check
    _
  $region7: #{prompted_vit_forward.18} parent=0 // pred_check_branch
    %11 = sbr.rel (0) target = $region9
  $region8: #{prompted_vit_forward.18} parent=0 // pred_region
    _
  $region9: #{prompted_vit_forward.18} parent=0 // pred_fallthru
    _
  // Predicated region
  $region10: #{prompted_vit_forward.18} parent=0 // pred_check
    _
  $region11: #{prompted_vit_forward.18} parent=0 // pred_check_branch
    %13 = sbr.rel (0) target = $region13
  $region12: #{prompted_vit_forward.18} parent=0 // pred_region
    _
  $region13: #{prompted_vit_forward.18} parent=0 // pred_fallthru
    _
  %v15 = vld [vmem:[%s0] sm:$0xff]
  %v16 = vld [vmem:[%s0 + $0x8] sm:$0xff]
  %v17 = vpack.c.bf16 %v16, %v15
  %v18 = vld [vmem:[%s1] sm:$0xf]
  %v19 = vld [vmem:[%s1 + $0x4] sm:$0xf]
  %v20 = vld [vmem:[%s1 + $0x8] sm:$0xf]
  %v21 = vld [vmem:[%s1 + $0xc] sm:$0xf]
  %v22 = vld [vmem:[%s1 + $0x10] sm:$0xf]
  %v23 = vld [vmem:[%s1 + $0x14] sm:$0xf]
  %v24 = vld [vmem:[%s1 + $0x18] sm:$0xf]
  %v25 = vld [vmem:[%s1 + $0x1c] sm:$0xf]
  %v26 = vld [vmem:[%s1 + $0x20] sm:$0xf]
  %v27 = vld [vmem:[%s1 + $0x24] sm:$0xf]
  %v28 = vld [vmem:[%s1 + $0x28] sm:$0xf]
  %v29 = vld [vmem:[%s1 + $0x2c] sm:$0xf]
  %v30 = vld [vmem:[%s1 + $0x30] sm:$0xf]
  %v31 = vld [vmem:[%s1 + $0x34] sm:$0xf]
  %v32 = vld [vmem:[%s1 + $0x38] sm:$0xf]
  %v33 = vld [vmem:[%s1 + $0x3c] sm:$0xf]
  %v34 = vld [vmem:[%s2] sm:$0x1]
  %v36 = vlaneseq
  %v37 = vshrl.u32 %v36, 7
  %v38 = vsub.s32 0, %v37
  %v39 = vrot.slane %v34, %v38
  %v57 = vunpack.c.l.b16 %v18
  %v58 = vunpack.c.l.b16 %v19
  %v59 = vunpack.c.l.b16 %v20
  %v60 = vunpack.c.l.b16 %v21
  %v61 = vunpack.c.l.b16 %v22
  %v62 = vunpack.c.l.b16 %v23
  %v63 = vunpack.c.l.b16 %v24
  %v64 = vunpack.c.l.b16 %v25
  %v65 = vunpack.c.l.b16 %v26
  %v66 = vunpack.c.l.b16 %v27
  %v67 = vunpack.c.l.b16 %v28
  %v68 = vunpack.c.l.b16 %v29
  %v69 = vunpack.c.l.b16 %v30
  %v70 = vunpack.c.l.b16 %v31
  %v71 = vunpack.c.l.b16 %v32
  %v72 = vunpack.c.l.b16 %v33
  %v73 = vpack.c.b16 %v58, %v57
  %v74 = vpack.c.b16 %v60, %v59
  %v75 = vpack.c.b16 %v62, %v61
  %v76 = vpack.c.b16 %v64, %v63
  %v77 = vpack.c.b16 %v66, %v65
  %v78 = vpack.c.b16 %v68, %v67
  %v79 = vpack.c.b16 %v70, %v69
  %v80 = vpack.c.b16 %v72, %v71
  %89 = vmatprep.subr.bf16.mxu0 0
  %90 = vmatpush1.bf16.msra.mxu0 %v73
  %91 = vmatprep.subr.bf16.mxu0 0
  %92 = vmatpush1.bf16.msra.mxu0 %v74
  %93 = vmatprep.subr.bf16.mxu0 0
  %94 = vmatpush1.bf16.msra.mxu0 %v75
  %95 = vmatprep.subr.bf16.mxu0 0
  %96 = vmatpush1.bf16.msra.mxu0 %v76
  %97 = vmatprep.subr.bf16.mxu0 0
  %98 = vmatpush1.bf16.msra.mxu0 %v77
  %99 = vmatprep.subr.bf16.mxu0 0
  %100 = vmatpush1.bf16.msra.mxu0 %v78
  %101 = vmatprep.subr.bf16.mxu0 0
  %102 = vmatpush1.bf16.msra.mxu0 %v79
  %103 = vmatprep.subr.bf16.mxu0 0
  %104 = vmatpush1.bf16.msra.mxu0 %v80
  %105 = vmatprep.subr.bf16.mxu0 0
  %106 = vmatpush1.bf16.msra.mxu0 0
  %107 = vmatprep.subr.bf16.mxu0 0
  %108 = vmatpush1.bf16.msra.mxu0 0
  %109 = vmatprep.subr.bf16.mxu0 0
  %110 = vmatpush1.bf16.msra.mxu0 0
  %111 = vmatprep.subr.bf16.mxu0 0
  %112 = vmatpush1.bf16.msra.mxu0 0
  %113 = vmatprep.subr.bf16.mxu0 0
  %114 = vmatpush1.bf16.msra.mxu0 0
  %115 = vmatprep.subr.bf16.mxu0 0
  %116 = vmatpush1.bf16.msra.mxu0 0
  %117 = vmatprep.subr.bf16.mxu0 0
  %118 = vmatpush1.bf16.msra.mxu0 0
  %119 = vmatprep.subr.bf16.mxu0 0
  %120 = vmatpush1.bf16.msra.mxu0 0
  %121 = vmatprep.mubr.bf16.mxu0 0
  %122 = vmatmul.mubr.bf16.gmra.mrb[0].mxu0 %v17
  %v123 = vpop.f32.mrb[0].mxu0
  %v124 = vadd.f32 %v39, %v123
  %v125 = vpop.f32.mrb[0].mxu0
  %v126 = vpop.f32.mrb[0].mxu0
  %v127 = vadd.f32 %v39, %v126
  %v128 = vpop.f32.mrb[0].mxu0
  %129 = vdwg.mxu0
  %vm130 = vcmask 261120
  %131 = vst.msk [vmem:[%s3] sm:$0xff] %vm130, %v124
  %132 = vst.msk [vmem:[%s3 + $0x8] sm:$0xff] %vm130, %v127
  // Predicated region
  $region14: #{prompted_vit_forward.18} parent=0 // pred_check
    _
  $region15: #{prompted_vit_forward.18} parent=0 // pred_check_branch
    %134 = sbr.rel (0) target = $region17
  $region16: #{prompted_vit_forward.18} parent=0 // pred_region
    _
  $region17: #{prompted_vit_forward.18} parent=0 // pred_fallthru
    _
  // Predicated region
  $region18: #{prompted_vit_forward.18} parent=0 // pred_check
    _
  $region19: #{prompted_vit_forward.18} parent=0 // pred_check_branch
    %136 = sbr.rel (0) target = $region21
  $region20: #{prompted_vit_forward.18} parent=0 // pred_region
    _
  $region21: #{prompted_vit_forward.18} parent=0 // pred_fallthru
    _

// kernel: prompted_vit_forward.20
$region0: #{prompted_vit_forward.20}
  #allocation0 [shape = 'u32[]', space=smem, size = 0x4, offset = 0x4, fixed_abs, tag = 'smem constant byte address 0x4 - core index']
  #allocation1 [shape = 'u32[144,128]{1,0:T(1,128)}', space=vmem, size = 0x12000, scoped, tag = 'internal scratch']
  #allocation2 [shape = 'bf16[16,32]{1,0:T(16,128)(2,1)}', space=vmem, size = 0x1000, scoped, tag = 'scratch operand']
  %s0 = inlined_call_operand.vmem [shape: f32[16,32], index: 0, kind: input, shape index: {}]
  %s1 = inlined_call_operand.vmem [shape: bf16[32,64], index: 1, kind: input, shape index: {}]
  %s2 = inlined_call_operand.vmem [shape: f32[1,64], index: 2, kind: input, shape index: {}]
  %s3 = inlined_call_operand.vmem [shape: f32[1,32], index: 3, kind: input, shape index: {}]
  %s4 = inlined_call_operand.vmem [shape: f32[1,32], index: 4, kind: input, shape index: {}]
  %s5 = inlined_call_operand.vmem [shape: bf16[16,64], index: 5, kind: output, shape index: {}]
  %s6 = sld [smem:[#allocation0]]
  $region34: #{prompted_vit_forward.20} parent=0
    _
  %s8 = ssub.s32 1, %s6
  %s9 = scalar_select 0, %s8, %s6
  // Predicated region
  $region2: #{prompted_vit_forward.20} parent=0 // pred_check
    _
  $region3: #{prompted_vit_forward.20} parent=0 // pred_check_branch
    %11 = sbr.rel (0) target = $region5
  $region4: #{prompted_vit_forward.20} parent=0 // pred_region
    _
  $region5: #{prompted_vit_forward.20} parent=0 // pred_fallthru
    _
  // Predicated region
  $region6: #{prompted_vit_forward.20} parent=0 // pred_check
    _
  $region7: #{prompted_vit_forward.20} parent=0 // pred_check_branch
    %13 = sbr.rel (0) target = $region9
  $region8: #{prompted_vit_forward.20} parent=0 // pred_region
    _
  $region9: #{prompted_vit_forward.20} parent=0 // pred_fallthru
    _
  // Predicated region
  $region10: #{prompted_vit_forward.20} parent=0 // pred_check
    _
  $region11: #{prompted_vit_forward.20} parent=0 // pred_check_branch
    %15 = sbr.rel (0) target = $region13
  $region12: #{prompted_vit_forward.20} parent=0 // pred_region
    _
  $region13: #{prompted_vit_forward.20} parent=0 // pred_fallthru
    _
  // Predicated region
  $region14: #{prompted_vit_forward.20} parent=0 // pred_check
    _
  $region15: #{prompted_vit_forward.20} parent=0 // pred_check_branch
    %17 = sbr.rel (0) target = $region17
  $region16: #{prompted_vit_forward.20} parent=0 // pred_region
    _
  $region17: #{prompted_vit_forward.20} parent=0 // pred_fallthru
    _
  // Predicated region
  $region18: #{prompted_vit_forward.20} parent=0 // pred_check
    _
  $region19: #{prompted_vit_forward.20} parent=0 // pred_check_branch
    %19 = sbr.rel (0) target = $region21
  $region20: #{prompted_vit_forward.20} parent=0 // pred_region
    _
  $region21: #{prompted_vit_forward.20} parent=0 // pred_fallthru
    _
  %p21 = scmp.eq.s32.totalorder 0, 0
  // Predicated region
  $region22: #{prompted_vit_forward.20} parent=0 // pred_check
    %p22 = pneg %p21
  $region23: #{prompted_vit_forward.20} parent=0 // pred_check_branch
    %24 = sbr.rel (%p22) target = $region25
  $region24: #{prompted_vit_forward.20} parent=0 // pred_region
    %v25 = vld [vmem:[%s0] sm:$0xff]
    %v26 = vld [vmem:[%s0 + $0x8] sm:$0xff]
    %vm27 = vcmask 261120
    %v28 = vsel %vm27, %v25, 0.0
    %29 = vadd.xlane.f32.xlu0 %v28
    %v30 = vpop.xlane.xlu0 %29
    %v31 = vsel %vm27, %v26, 0.0
    %32 = vadd.xlane.f32.xlu0 %v31
    %v33 = vpop.xlane.xlu0 %32
    %v34 = vrcp.pop 32.0
    %v35 = vmul.f32 %v30, %v34
    %v36 = vmul.f32 %v33, %v34
    %v37 = vsub.f32 %v25, %v35
    %v38 = vsub.f32 %v26, %v36
    %v39 = vmul.f32 %v37, %v37
    %v40 = vmul.f32 %v38, %v38
    %v41 = vsel %vm27, %v39, 0.0
    %42 = vadd.xlane.f32.xlu0 %v41
    %v43 = vpop.xlane.xlu0 %42
    %v44 = vsel %vm27, %v40, 0.0
    %45 = vadd.xlane.f32.xlu0 %v44
    %v46 = vpop.xlane.xlu0 %45
    %v47 = vmul.f32 %v43, %v34
    %v48 = vmul.f32 %v46, %v34
    %v49 = vadd.f32 %v47, 1e-05
    %v50 = vadd.f32 %v48, 1e-05
    %v51 = vrsqrt.pop %v49
    %v52 = vrsqrt.pop %v50
    %v53 = vmul.f32 %v37, %v51
    %v54 = vmul.f32 %v38, %v52
    %v55 = vld [vmem:[%s3] sm:$0x1]
    %v57 = vlaneseq
    %v58 = vshrl.u32 %v57, 7
    %v59 = vsub.s32 0, %v58
    %v60 = vrot.slane %v55, %v59
    %v62 = vmul.f32 %v53, %v60
    %v63 = vmul.f32 %v54, %v60
    %v64 = vld [vmem:[%s4] sm:$0x1]
    %v66 = vlaneseq
    %v67 = vshrl.u32 %v66, 7
    %v68 = vsub.s32 0, %v67
    %v69 = vrot.slane %v64, %v68
    %v71 = vadd.f32 %v62, %v69
    %v72 = vadd.f32 %v63, %v69
    %v73 = vpack.c.bf16 %v72, %v71
    %74 = vst.msk [vmem:[#allocation2] sm:$0xff] %vm27, %v73
  $region25: #{prompted_vit_forward.20} parent=0 // pred_fallthru
    _
  %v75 = vld [vmem:[#allocation2] sm:$0xff]
  %v76 = vld [vmem:[%s1] sm:$0xf]
  %v77 = vld [vmem:[%s1 + $0x4] sm:$0xf]
  %v78 = vld [vmem:[%s1 + $0x8] sm:$0xf]
  %v79 = vld [vmem:[%s1 + $0xc] sm:$0xf]
  %v80 = vld [vmem:[%s2] sm:$0x1]
  %v82 = vlaneseq
  %v83 = vshrl.u32 %v82, 7
  %v84 = vsub.s32 0, %v83
  %v85 = vrot.slane %v80, %v84
  %v91 = vunpack.c.l.b16 %v76
  %v92 = vunpack.c.l.b16 %v77
  %v93 = vunpack.c.l.b16 %v78
  %v94 = vunpack.c.l.b16 %v79
  %v95 = vpack.c.b16 %v92, %v91
  %v96 = vpack.c.b16 %v94, %v93
  %vm99 = vcmask 261120
  %v101 = vsel %vm99, %v75, 0
  %103 = vmatprep.subr.bf16.mxu0 0
  %104 = vmatpush1.bf16.msra.mxu0 %v95
  %105 = vmatprep.subr.bf16.mxu0 0
  %106 = vmatpush1.bf16.msra.mxu0 %v96
  %107 = vmatprep.subr.bf16.mxu0 0
  %108 = vmatpush1.bf16.msra.mxu0 0
  %109 = vmatprep.subr.bf16.mxu0 0
  %110 = vmatpush1.bf16.msra.mxu0 0
  %111 = vmatprep.subr.bf16.mxu0 0
  %112 = vmatpush1.bf16.msra.mxu0 0
  %113 = vmatprep.subr.bf16.mxu0 0
  %114 = vmatpush1.bf16.msra.mxu0 0
  %115 = vmatprep.subr.bf16.mxu0 0
  %116 = vmatpush1.bf16.msra.mxu0 0
  %117 = vmatprep.subr.bf16.mxu0 0
  %118 = vmatpush1.bf16.msra.mxu0 0
  %119 = vmatprep.subr.bf16.mxu0 0
  %120 = vmatpush1.bf16.msra.mxu0 0
  %121 = vmatprep.subr.bf16.mxu0 0
  %122 = vmatpush1.bf16.msra.mxu0 0
  %123 = vmatprep.subr.bf16.mxu0 0
  %124 = vmatpush1.bf16.msra.mxu0 0
  %125 = vmatprep.subr.bf16.mxu0 0
  %126 = vmatpush1.bf16.msra.mxu0 0
  %127 = vmatprep.subr.bf16.mxu0 0
  %128 = vmatpush1.bf16.msra.mxu0 0
  %129 = vmatprep.subr.bf16.mxu0 0
  %130 = vmatpush1.bf16.msra.mxu0 0
  %131 = vmatprep.subr.bf16.mxu0 0
  %132 = vmatpush1.bf16.msra.mxu0 0
  %133 = vmatprep.subr.bf16.mxu0 0
  %134 = vmatpush1.bf16.msra.mxu0 0
  %135 = vmatprep.mubr.bf16.mxu0 0
  %136 = vmatmul.mubr.bf16.gmra.mrb[0].mxu0 %v101
  %v137 = vpop.f32.mrb[0].mxu0
  %v138 = vadd.f32 %v85, %v137
  %v139 = vpop.f32.mrb[0].mxu0
  %v140 = vpop.f32.mrb[0].mxu0
  %v141 = vadd.f32 %v85, %v140
  %v142 = vpop.f32.mrb[0].mxu0
  %143 = vdwg.mxu0
  %v144 = vpack.c.bf16 %v141, %v138
  %v146 = vunpack.c.l.b16 %v144
  %v147 = vunpack.c.h.b16 %v144
  %v148 = vpack.c.b16 %v146, %v146
  %v149 = vpack.c.b16 %v147, %v147
  %vm152 = vcmask 519168
  %153 = vst.msk [vmem:[%s5] sm:$0xf] %vm152, %v148
  %154 = vst.msk [vmem:[%s5 + $0x4] sm:$0xf] %vm152, %v149
  // Predicated region
  $region26: #{prompted_vit_forward.20} parent=0 // pred_check
    _
  $region27: #{prompted_vit_forward.20} parent=0 // pred_check_branch
    %156 = sbr.rel (0) target = $region29
  $region28: #{prompted_vit_forward.20} parent=0 // pred_region
    _
  $region29: #{prompted_vit_forward.20} parent=0 // pred_fallthru
    _
  // Predicated region
  $region30: #{prompted_vit_forward.20} parent=0 // pred_check
    _
  $region31: #{prompted_vit_forward.20} parent=0 // pred_check_branch
    %158 = sbr.rel (0) target = $region33
  $region32: #{prompted_vit_forward.20} parent=0 // pred_region
    _
  $region33: #{prompted_vit_forward.20} parent=0 // pred_fallthru
    _

// kernel: prompted_vit_forward.24
$region0: #{prompted_vit_forward.24}
  #allocation0 [shape = 'u32[]', space=smem, size = 0x4, offset = 0x4, fixed_abs, tag = 'smem constant byte address 0x4 - core index']
  #allocation1 [shape = 'u32[144,128]{1,0:T(1,128)}', space=vmem, size = 0x12000, scoped, tag = 'internal scratch']
  %s0 = inlined_call_operand.vmem [shape: f32[48,32], index: 0, kind: input, shape index: {}]
  %s1 = inlined_call_operand.vmem [shape: f32[1,32], index: 1, kind: input, shape index: {}]
  %s2 = inlined_call_operand.vmem [shape: f32[1,32], index: 2, kind: input, shape index: {}]
  %s3 = inlined_call_operand.vmem [shape: f32[48,32], index: 3, kind: output, shape index: {}]
  %s4 = sld [smem:[#allocation0]]
  $region22: #{prompted_vit_forward.24} parent=0
    _
  %s6 = ssub.s32 1, %s4
  %s7 = scalar_select 0, %s6, %s4
  // Predicated region
  $region2: #{prompted_vit_forward.24} parent=0 // pred_check
    _
  $region3: #{prompted_vit_forward.24} parent=0 // pred_check_branch
    %9 = sbr.rel (0) target = $region5
  $region4: #{prompted_vit_forward.24} parent=0 // pred_region
    _
  $region5: #{prompted_vit_forward.24} parent=0 // pred_fallthru
    _
  // Predicated region
  $region6: #{prompted_vit_forward.24} parent=0 // pred_check
    _
  $region7: #{prompted_vit_forward.24} parent=0 // pred_check_branch
    %11 = sbr.rel (0) target = $region9
  $region8: #{prompted_vit_forward.24} parent=0 // pred_region
    _
  $region9: #{prompted_vit_forward.24} parent=0 // pred_fallthru
    _
  // Predicated region
  $region10: #{prompted_vit_forward.24} parent=0 // pred_check
    _
  $region11: #{prompted_vit_forward.24} parent=0 // pred_check_branch
    %13 = sbr.rel (0) target = $region13
  $region12: #{prompted_vit_forward.24} parent=0 // pred_region
    _
  $region13: #{prompted_vit_forward.24} parent=0 // pred_fallthru
    _
  %v14 = vld [vmem:[%s0] sm:$0xff]
  %v15 = vld [vmem:[%s0 + $0x8] sm:$0xff]
  %v16 = vld [vmem:[%s0 + $0x10] sm:$0xff]
  %v17 = vld [vmem:[%s0 + $0x18] sm:$0xff]
  %v18 = vld [vmem:[%s0 + $0x20] sm:$0xff]
  %v19 = vld [vmem:[%s0 + $0x28] sm:$0xff]
  %vm20 = vcmask 261120
  %v21 = vsel %vm20, %v14, 0.0
  %22 = vadd.xlane.f32.xlu0 %v21
  %v23 = vpop.xlane.xlu0 %22
  %v24 = vsel %vm20, %v15, 0.0
  %25 = vadd.xlane.f32.xlu0 %v24
  %v26 = vpop.xlane.xlu0 %25
  %v27 = vsel %vm20, %v16, 0.0
  %28 = vadd.xlane.f32.xlu0 %v27
  %v29 = vpop.xlane.xlu0 %28
  %v30 = vsel %vm20, %v17, 0.0
  %31 = vadd.xlane.f32.xlu0 %v30
  %v32 = vpop.xlane.xlu0 %31
  %v33 = vsel %vm20, %v18, 0.0
  %34 = vadd.xlane.f32.xlu0 %v33
  %v35 = vpop.xlane.xlu0 %34
  %v36 = vsel %vm20, %v19, 0.0
  %37 = vadd.xlane.f32.xlu0 %v36
  %v38 = vpop.xlane.xlu0 %37
  %v39 = vrcp.pop 32.0
  %v40 = vmul.f32 %v23, %v39
  %v41 = vmul.f32 %v26, %v39
  %v42 = vmul.f32 %v29, %v39
  %v43 = vmul.f32 %v32, %v39
  %v44 = vmul.f32 %v35, %v39
  %v45 = vmul.f32 %v38, %v39
  %v46 = vsub.f32 %v14, %v40
  %v47 = vsub.f32 %v15, %v41
  %v48 = vsub.f32 %v16, %v42
  %v49 = vsub.f32 %v17, %v43
  %v50 = vsub.f32 %v18, %v44
  %v51 = vsub.f32 %v19, %v45
  %v52 = vmul.f32 %v46, %v46
  %v53 = vmul.f32 %v47, %v47
  %v54 = vmul.f32 %v48, %v48
  %v55 = vmul.f32 %v49, %v49
  %v56 = vmul.f32 %v50, %v50
  %v57 = vmul.f32 %v51, %v51
  %v58 = vsel %vm20, %v52, 0.0
  %59 = vadd.xlane.f32.xlu0 %v58
  %v60 = vpop.xlane.xlu0 %59
  %v61 = vsel %vm20, %v53, 0.0
  %62 = vadd.xlane.f32.xlu0 %v61
  %v63 = vpop.xlane.xlu0 %62
  %v64 = vsel %vm20, %v54, 0.0
  %65 = vadd.xlane.f32.xlu0 %v64
  %v66 = vpop.xlane.xlu0 %65
  %v67 = vsel %vm20, %v55, 0.0
  %68 = vadd.xlane.f32.xlu0 %v67
  %v69 = vpop.xlane.xlu0 %68
  %v70 = vsel %vm20, %v56, 0.0
  %71 = vadd.xlane.f32.xlu0 %v70
  %v72 = vpop.xlane.xlu0 %71
  %v73 = vsel %vm20, %v57, 0.0
  %74 = vadd.xlane.f32.xlu0 %v73
  %v75 = vpop.xlane.xlu0 %74
  %v76 = vmul.f32 %v60, %v39
  %v77 = vmul.f32 %v63, %v39
  %v78 = vmul.f32 %v66, %v39
  %v79 = vmul.f32 %v69, %v39
  %v80 = vmul.f32 %v72, %v39
  %v81 = vmul.f32 %v75, %v39
  %v82 = vadd.f32 %v76, 1e-05
  %v83 = vadd.f32 %v77, 1e-05
  %v84 = vadd.f32 %v78, 1e-05
  %v85 = vadd.f32 %v79, 1e-05
  %v86 = vadd.f32 %v80, 1e-05
  %v87 = vadd.f32 %v81, 1e-05
  %v88 = vrsqrt.pop %v82
  %v89 = vrsqrt.pop %v83
  %v90 = vrsqrt.pop %v84
  %v91 = vrsqrt.pop %v85
  %v92 = vrsqrt.pop %v86
  %v93 = vrsqrt.pop %v87
  %v94 = vmul.f32 %v46, %v88
  %v95 = vmul.f32 %v47, %v89
  %v96 = vmul.f32 %v48, %v90
  %v97 = vmul.f32 %v49, %v91
  %v98 = vmul.f32 %v50, %v92
  %v99 = vmul.f32 %v51, %v93
  %v100 = vld [vmem:[%s1] sm:$0x1]
  %v102 = vlaneseq
  %v103 = vshrl.u32 %v102, 7
  %v104 = vsub.s32 0, %v103
  %v105 = vrot.slane %v100, %v104
  %v107 = vmul.f32 %v94, %v105
  %v108 = vmul.f32 %v95, %v105
  %v109 = vmul.f32 %v96, %v105
  %v110 = vmul.f32 %v97, %v105
  %v111 = vmul.f32 %v98, %v105
  %v112 = vmul.f32 %v99, %v105
  %v113 = vld [vmem:[%s2] sm:$0x1]
  %v115 = vlaneseq
  %v116 = vshrl.u32 %v115, 7
  %v117 = vsub.s32 0, %v116
  %v118 = vrot.slane %v113, %v117
  %v120 = vadd.f32 %v107, %v118
  %v121 = vadd.f32 %v108, %v118
  %v122 = vadd.f32 %v109, %v118
  %v123 = vadd.f32 %v110, %v118
  %v124 = vadd.f32 %v111, %v118
  %v125 = vadd.f32 %v112, %v118
  %126 = vst.msk [vmem:[%s3] sm:$0xff] %vm20, %v120
  %127 = vst.msk [vmem:[%s3 + $0x8] sm:$0xff] %vm20, %v121
  %128 = vst.msk [vmem:[%s3 + $0x10] sm:$0xff] %vm20, %v122
  %129 = vst.msk [vmem:[%s3 + $0x18] sm:$0xff] %vm20, %v123
  %130 = vst.msk [vmem:[%s3 + $0x20] sm:$0xff] %vm20, %v124
  %131 = vst.msk [vmem:[%s3 + $0x28] sm:$0xff] %vm20, %v125
  // Predicated region
  $region14: #{prompted_vit_forward.24} parent=0 // pred_check
    _
  $region15: #{prompted_vit_forward.24} parent=0 // pred_check_branch
    %133 = sbr.rel (0) target = $region17
  $region16: #{prompted_vit_forward.24} parent=0 // pred_region
    _
  $region17: #{prompted_vit_forward.24} parent=0 // pred_fallthru
    _
  // Predicated region
  $region18: #{prompted_vit_forward.24} parent=0 // pred_check
    _
  $region19: #{prompted_vit_forward.24} parent=0 // pred_check_branch
    %135 = sbr.rel (0) target = $region21
  $region20: #{prompted_vit_forward.24} parent=0 // pred_region
    _
  $region21: #{prompted_vit_forward.24} parent=0 // pred_fallthru
    _

// kernel: prompted_vit_forward.23
$region0: #{prompted_vit_forward.23}
  #allocation0 [shape = 'u32[]', space=smem, size = 0x4, offset = 0x4, fixed_abs, tag = 'smem constant byte address 0x4 - core index']
  #allocation1 [shape = 'u32[144,128]{1,0:T(1,128)}', space=vmem, size = 0x12000, scoped, tag = 'internal scratch']
  %s0 = inlined_call_operand.vmem [shape: bf16[48,128], index: 0, kind: input, shape index: {}]
  %s1 = inlined_call_operand.vmem [shape: bf16[128,32], index: 1, kind: input, shape index: {}]
  %s2 = inlined_call_operand.vmem [shape: f32[1,32], index: 2, kind: input, shape index: {}]
  %s3 = inlined_call_operand.vmem [shape: f32[48,32], index: 3, kind: input, shape index: {}]
  %s4 = inlined_call_operand.vmem [shape: f32[48,32], index: 4, kind: output, shape index: {}]
  %s5 = sld [smem:[#allocation0]]
  $region26: #{prompted_vit_forward.23} parent=0
    _
  %s7 = ssub.s32 1, %s5
  %s8 = scalar_select 0, %s7, %s5
  // Predicated region
  $region2: #{prompted_vit_forward.23} parent=0 // pred_check
    _
  $region3: #{prompted_vit_forward.23} parent=0 // pred_check_branch
    %10 = sbr.rel (0) target = $region5
  $region4: #{prompted_vit_forward.23} parent=0 // pred_region
    _
  $region5: #{prompted_vit_forward.23} parent=0 // pred_fallthru
    _
  // Predicated region
  $region6: #{prompted_vit_forward.23} parent=0 // pred_check
    _
  $region7: #{prompted_vit_forward.23} parent=0 // pred_check_branch
    %12 = sbr.rel (0) target = $region9
  $region8: #{prompted_vit_forward.23} parent=0 // pred_region
    _
  $region9: #{prompted_vit_forward.23} parent=0 // pred_fallthru
    _
  // Predicated region
  $region10: #{prompted_vit_forward.23} parent=0 // pred_check
    _
  $region11: #{prompted_vit_forward.23} parent=0 // pred_check_branch
    %14 = sbr.rel (0) target = $region13
  $region12: #{prompted_vit_forward.23} parent=0 // pred_region
    _
  $region13: #{prompted_vit_forward.23} parent=0 // pred_fallthru
    _
  // Predicated region
  $region14: #{prompted_vit_forward.23} parent=0 // pred_check
    _
  $region15: #{prompted_vit_forward.23} parent=0 // pred_check_branch
    %16 = sbr.rel (0) target = $region17
  $region16: #{prompted_vit_forward.23} parent=0 // pred_region
    _
  $region17: #{prompted_vit_forward.23} parent=0 // pred_fallthru
    _
  %v18 = vld [vmem:[%s0] sm:$0xf]
  %v19 = vld [vmem:[%s0 + $0x4] sm:$0xf]
  %v20 = vld [vmem:[%s0 + $0x8] sm:$0xf]
  %v21 = vld [vmem:[%s0 + $0xc] sm:$0xf]
  %v22 = vld [vmem:[%s0 + $0x10] sm:$0xf]
  %v23 = vld [vmem:[%s0 + $0x14] sm:$0xf]
  %v24 = vld [vmem:[%s1] sm:$0xf]
  %v25 = vld [vmem:[%s1 + $0x4] sm:$0xf]
  %v26 = vld [vmem:[%s1 + $0x8] sm:$0xf]
  %v27 = vld [vmem:[%s1 + $0xc] sm:$0xf]
  %v28 = vld [vmem:[%s1 + $0x10] sm:$0xf]
  %v29 = vld [vmem:[%s1 + $0x14] sm:$0xf]
  %v30 = vld [vmem:[%s1 + $0x18] sm:$0xf]
  %v31 = vld [vmem:[%s1 + $0x1c] sm:$0xf]
  %v32 = vld [vmem:[%s1 + $0x20] sm:$0xf]
  %v33 = vld [vmem:[%s1 + $0x24] sm:$0xf]
  %v34 = vld [vmem:[%s1 + $0x28] sm:$0xf]
  %v35 = vld [vmem:[%s1 + $0x2c] sm:$0xf]
  %v36 = vld [vmem:[%s1 + $0x30] sm:$0xf]
  %v37 = vld [vmem:[%s1 + $0x34] sm:$0xf]
  %v38 = vld [vmem:[%s1 + $0x38] sm:$0xf]
  %v39 = vld [vmem:[%s1 + $0x3c] sm:$0xf]
  %v40 = vld [vmem:[%s2] sm:$0x1]
  %v42 = vlaneseq
  %v43 = vshrl.u32 %v42, 7
  %v44 = vsub.s32 0, %v43
  %v45 = vrot.slane %v40, %v44
  %v53 = vunpack.c.l.b16 %v18
  %v54 = vunpack.c.l.b16 %v19
  %v55 = vunpack.c.l.b16 %v20
  %v56 = vunpack.c.l.b16 %v21
  %v57 = vunpack.c.l.b16 %v22
  %v58 = vunpack.c.l.b16 %v23
  %v59 = vpack.c.b16 %v54, %v53
  %v60 = vpack.c.b16 %v56, %v55
  %v61 = vpack.c.b16 %v58, %v57
  %v81 = vunpack.c.l.b16 %v24
  %v82 = vunpack.c.l.b16 %v25
  %v83 = vunpack.c.l.b16 %v26
  %v84 = vunpack.c.l.b16 %v27
  %v85 = vunpack.c.l.b16 %v28
  %v86 = vunpack.c.l.b16 %v29
  %v87 = vunpack.c.l.b16 %v30
  %v88 = vunpack.c.l.b16 %v31
  %v89 = vunpack.c.l.b16 %v32
  %v90 = vunpack.c.l.b16 %v33
  %v91 = vunpack.c.l.b16 %v34
  %v92 = vunpack.c.l.b16 %v35
  %v93 = vunpack.c.l.b16 %v36
  %v94 = vunpack.c.l.b16 %v37
  %v95 = vunpack.c.l.b16 %v38
  %v96 = vunpack.c.l.b16 %v39
  %v97 = vpack.c.b16 %v82, %v81
  %v98 = vpack.c.b16 %v84, %v83
  %v99 = vpack.c.b16 %v86, %v85
  %v100 = vpack.c.b16 %v88, %v87
  %v101 = vpack.c.b16 %v90, %v89
  %v102 = vpack.c.b16 %v92, %v91
  %v103 = vpack.c.b16 %v94, %v93
  %v104 = vpack.c.b16 %v96, %v95
  %113 = vmatprep.subr.bf16.mxu0 0
  %114 = vmatpush1.bf16.msra.mxu0 %v97
  %115 = vmatprep.subr.bf16.mxu0 0
  %116 = vmatpush1.bf16.msra.mxu0 %v98
  %117 = vmatprep.subr.bf16.mxu0 0
  %118 = vmatpush1.bf16.msra.mxu0 %v99
  %119 = vmatprep.subr.bf16.mxu0 0
  %120 = vmatpush1.bf16.msra.mxu0 %v100
  %121 = vmatprep.subr.bf16.mxu0 0
  %122 = vmatpush1.bf16.msra.mxu0 %v101
  %123 = vmatprep.subr.bf16.mxu0 0
  %124 = vmatpush1.bf16.msra.mxu0 %v102
  %125 = vmatprep.subr.bf16.mxu0 0
  %126 = vmatpush1.bf16.msra.mxu0 %v103
  %127 = vmatprep.subr.bf16.mxu0 0
  %128 = vmatpush1.bf16.msra.mxu0 %v104
  %129 = vmatprep.subr.bf16.mxu0 0
  %130 = vmatpush1.bf16.msra.mxu0 0
  %131 = vmatprep.subr.bf16.mxu0 0
  %132 = vmatpush1.bf16.msra.mxu0 0
  %133 = vmatprep.subr.bf16.mxu0 0
  %134 = vmatpush1.bf16.msra.mxu0 0
  %135 = vmatprep.subr.bf16.mxu0 0
  %136 = vmatpush1.bf16.msra.mxu0 0
  %137 = vmatprep.subr.bf16.mxu0 0
  %138 = vmatpush1.bf16.msra.mxu0 0
  %139 = vmatprep.subr.bf16.mxu0 0
  %140 = vmatpush1.bf16.msra.mxu0 0
  %141 = vmatprep.subr.bf16.mxu0 0
  %142 = vmatpush1.bf16.msra.mxu0 0
  %143 = vmatprep.subr.bf16.mxu0 0
  %144 = vmatpush1.bf16.msra.mxu0 0
  %145 = vmatprep.mubr.bf16.mxu0 0
  %146 = vmatmul.mubr.bf16.gmra.mrb[0].mxu0 %v59
  %v147 = vpop.f32.mrb[0].mxu0
  %v148 = vadd.f32 %v45, %v147
  %v149 = vpop.f32.mrb[0].mxu0
  %v150 = vpop.f32.mrb[0].mxu0
  %v151 = vadd.f32 %v45, %v150
  %v152 = vpop.f32.mrb[0].mxu0
  %153 = vmatprep.mubr.bf16.mxu0 0
  %154 = vmatmul.mubr.bf16.gmra.mrb[0].mxu0 %v60
  %v155 = vpop.f32.mrb[0].mxu0
  %v156 = vadd.f32 %v45, %v155
  %v157 = vpop.f32.mrb[0].mxu0
  %v158 = vpop.f32.mrb[0].mxu0
  %v159 = vadd.f32 %v45, %v158
  %v160 = vpop.f32.mrb[0].mxu0
  %161 = vmatprep.mubr.bf16.mxu0 0
  %162 = vmatmul.mubr.bf16.gmra.mrb[0].mxu0 %v61
  %v163 = vpop.f32.mrb[0].mxu0
  %v164 = vadd.f32 %v45, %v163
  %v165 = vpop.f32.mrb[0].mxu0
  %v166 = vpop.f32.mrb[0].mxu0
  %v167 = vadd.f32 %v45, %v166
  %v168 = vpop.f32.mrb[0].mxu0
  %169 = vdwg.mxu0
  %v170 = vld [vmem:[%s3] sm:$0xff]
  %v171 = vld [vmem:[%s3 + $0x8] sm:$0xff]
  %v172 = vld [vmem:[%s3 + $0x10] sm:$0xff]
  %v173 = vld [vmem:[%s3 + $0x18] sm:$0xff]
  %v174 = vld [vmem:[%s3 + $0x20] sm:$0xff]
  %v175 = vld [vmem:[%s3 + $0x28] sm:$0xff]
  %v176 = vadd.f32 %v148, %v170
  %v177 = vadd.f32 %v151, %v171
  %v178 = vadd.f32 %v156, %v172
  %v179 = vadd.f32 %v159, %v173
  %v180 = vadd.f32 %v164, %v174
  %v181 = vadd.f32 %v167, %v175
  %vm182 = vcmask 261120
  %183 = vst.msk [vmem:[%s4] sm:$0xff] %vm182, %v176
  %184 = vst.msk [vmem:[%s4 + $0x8] sm:$0xff] %vm182, %v177
  %185 = vst.msk [vmem:[%s4 + $0x10] sm:$0xff] %vm182, %v178
  %186 = vst.msk [vmem:[%s4 + $0x18] sm:$0xff] %vm182, %v179
  %187 = vst.msk [vmem:[%s4 + $0x20] sm:$0xff] %vm182, %v180
  %188 = vst.msk [vmem:[%s4 + $0x28] sm:$0xff] %vm182, %v181
  // Predicated region
  $region18: #{prompted_vit_forward.23} parent=0 // pred_check
    _
  $region19: #{prompted_vit_forward.23} parent=0 // pred_check_branch
    %190 = sbr.rel (0) target = $region21
  $region20: #{prompted_vit_forward.23} parent=0 // pred_region
    _
  $region21: #{prompted_vit_forward.23} parent=0 // pred_fallthru
    _
  // Predicated region
  $region22: #{prompted_vit_forward.23} parent=0 // pred_check
    _
  $region23: #{prompted_vit_forward.23} parent=0 // pred_check_branch
    %192 = sbr.rel (0) target = $region25
  $region24: #{prompted_vit_forward.23} parent=0 // pred_region
    _
  $region25: #{prompted_vit_forward.23} parent=0 // pred_fallthru
    _

// kernel: prompted_vit_forward.21
$region0: #{prompted_vit_forward.21}
  #allocation0 [shape = 'u32[]', space=smem, size = 0x4, offset = 0x4, fixed_abs, tag = 'smem constant byte address 0x4 - core index']
  #allocation1 [shape = 'u32[144,128]{1,0:T(1,128)}', space=vmem, size = 0x12000, scoped, tag = 'internal scratch']
  %s0 = inlined_call_operand.vmem [shape: bf16[2,24,32], index: 0, kind: input, shape index: {}]
  %s1 = inlined_call_operand.vmem [shape: bf16[2,8,64], index: 1, kind: input, shape index: {}]
  %s2 = inlined_call_operand.vmem [shape: f32[2,1,8], index: 2, kind: input, shape index: {}]
  %s3 = inlined_call_operand.vmem [shape: bf16[32,32], index: 3, kind: input, shape index: {}]
  %s4 = inlined_call_operand.vmem [shape: f32[1,32], index: 4, kind: input, shape index: {}]
  %s5 = inlined_call_operand.vmem [shape: f32[2,24,32], index: 5, kind: input, shape index: {}]
  %s6 = inlined_call_operand.vmem [shape: f32[2,24,32], index: 6, kind: output, shape index: {}]
  %s7 = sld [smem:[#allocation0]]
  $region57: #{prompted_vit_forward.21} parent=0
    _
  %s9 = ssub.s32 1, %s7
  %s10 = scalar_select 0, %s9, %s7
  loop: start=0, step=1, limit=4
  $region2: #{prompted_vit_forward.21} parent=0 // loop_pre_header
    _
  $region3: #{prompted_vit_forward.21} parent=0 // loop_header
    %s12 = sphi 0, %s16
    %p13 = scmp.ge.s32.totalorder %s12, 4
    %s22 = sphi 0, %s24
    %s25 = sphi 0, %s22
    %s26 = sphi 0, %s25
    %s42 = sphi 0, %s26
    %s48 = sphi 0, %s50
    %s51 = sphi 0, %s48
    %s52 = sphi 0, %s51
    %s68 = sphi 0, %s52
    %s74 = sphi 0, %s76
    %s77 = sphi 0, %s74
    %s78 = sphi 0, %s77
    %s94 = sphi 0, %s78
    %s98 = sphi 0, %s98
    %s100 = sphi 0, %s98
    %s101 = sphi 0, %s100
    %s115 = sphi 0, %s101
    %s119 = sphi 0, %s119
    %s121 = sphi 0, %s119
    %s122 = sphi 0, %s121
    %s136 = sphi 0, %s122
    %s142 = sphi 0, %s144
    %s145 = sphi 0, %s142
    %s146 = sphi 0, %s145
    %s162 = sphi 0, %s146
    %s168 = sphi 0, %s170
    %s171 = sphi 0, %s168
    %s172 = sphi 0, %s171
    %s188 = sphi 0, %s172
  $region4: #{prompted_vit_forward.21} parent=0 // loop_header_branch
    %15 = sbr.rel (%p13) target = $region8
  $region5: #{prompted_vit_forward.21} parent=0 // loop_body
    %s17 = ssub.s32 %s12, 1
    %s18 = ssub.s32 %s12, 2
    %s19 = sadd.s32 %s12, 1
    %s20 = ssub.s32 %s12, %s19
    %p21 = scmp.eq.s32.totalorder %s20, 0
    %s23 = sadd.s32 %s22, 1
    %s24 = scalar_select %p21, %s22, %s23
    %p27 = pneg %p21
    %p28 = scmp.eq.s32.totalorder %s12, 1
    %p29 = por %p27, %p28
    %p30 = scmp.ne.s32.totalorder %s22, %s25
    %p31 = scmp.eq.s32.totalorder %s12, 0
    %p32 = por %p30, %p31
    %p33 = scmp.ne.s32.totalorder %s22, %s25
    %p34 = scmp.eq.s32.totalorder %s17, 1
    %p35 = por %p33, %p34
    %p36 = scmp.ne.s32.totalorder %s25, %s26
    %p37 = scmp.eq.s32.totalorder %s17, 0
    %p38 = por %p36, %p37
    %p39 = scmp.ne.s32.totalorder %s25, %s26
    %p40 = scmp.eq.s32.totalorder %s18, 1
    %p41 = por %p39, %p40
    %p43 = scmp.ne.s32.totalorder %s26, %s42
    %p44 = scmp.eq.s32.totalorder %s18, 0
    %p45 = por %p43, %p44
    %s46 = ssub.s32 %s12, %s19
    %p47 = scmp.eq.s32.totalorder %s46, 0
    %s49 = sadd.s32 %s48, 1
    %s50 = scalar_select %p47, %s48, %s49
    %p53 = pneg %p47
    %p54 = scmp.eq.s32.totalorder %s12, 1
    %p55 = por %p53, %p54
    %p56 = scmp.ne.s32.totalorder %s48, %s51
    %p57 = scmp.eq.s32.totalorder %s12, 0
    %p58 = por %p56, %p57
    %p59 = scmp.ne.s32.totalorder %s48, %s51
    %p60 = scmp.eq.s32.totalorder %s17, 1
    %p61 = por %p59, %p60
    %p62 = scmp.ne.s32.totalorder %s51, %s52
    %p63 = scmp.eq.s32.totalorder %s17, 0
    %p64 = por %p62, %p63
    %p65 = scmp.ne.s32.totalorder %s51, %s52
    %p66 = scmp.eq.s32.totalorder %s18, 1
    %p67 = por %p65, %p66
    %p69 = scmp.ne.s32.totalorder %s52, %s68
    %p70 = scmp.eq.s32.totalorder %s18, 0
    %p71 = por %p69, %p70
    %s72 = ssub.s32 %s12, %s19
    %p73 = scmp.eq.s32.totalorder %s72, 0
    %s75 = sadd.s32 %s74, 1
    %s76 = scalar_select %p73, %s74, %s75
    %p79 = pneg %p73
    %p80 = scmp.eq.s32.totalorder %s12, 1
    %p81 = por %p79, %p80
    %p82 = scmp.ne.s32.totalorder %s74, %s77
    %p83 = scmp.eq.s32.totalorder %s12, 0
    %p84 = por %p82, %p83
    %p85 = scmp.ne.s32.totalorder %s74, %s77
    %p86 = scmp.eq.s32.totalorder %s17, 1
    %p87 = por %p85, %p86
    %p88 = scmp.ne.s32.totalorder %s77, %s78
    %p89 = scmp.eq.s32.totalorder %s17, 0
    %p90 = por %p88, %p89
    %p91 = scmp.ne.s32.totalorder %s77, %s78
    %p92 = scmp.eq.s32.totalorder %s18, 1
    %p93 = por %p91, %p92
    %p95 = scmp.ne.s32.totalorder %s78, %s94
    %p96 = scmp.eq.s32.totalorder %s18, 0
    %p97 = por %p95, %p96
    %s99 = sadd.s32 %s98, 1
    %p102 = scmp.eq.s32.totalorder %s12, 1
    %p103 = scmp.ne.s32.totalorder %s98, %s100
    %p104 = scmp.eq.s32.totalorder %s12, 0
    %p105 = por %p103, %p104
    %p106 = scmp.ne.s32.totalorder %s98, %s100
    %p107 = scmp.eq.s32.totalorder %s17, 1
    %p108 = por %p106, %p107
    %p109 = scmp.ne.s32.totalorder %s100, %s101
    %p110 = scmp.eq.s32.totalorder %s17, 0
    %p111 = por %p109, %p110
    %p112 = scmp.ne.s32.totalorder %s100, %s101
    %p113 = scmp.eq.s32.totalorder %s18, 1
    %p114 = por %p112, %p113
    %p116 = scmp.ne.s32.totalorder %s101, %s115
    %p117 = scmp.eq.s32.totalorder %s18, 0
    %p118 = por %p116, %p117
    %s120 = sadd.s32 %s119, 1
    %p123 = scmp.eq.s32.totalorder %s12, 1
    %p124 = scmp.ne.s32.totalorder %s119, %s121
    %p125 = scmp.eq.s32.totalorder %s12, 0
    %p126 = por %p124, %p125
    %p127 = scmp.ne.s32.totalorder %s119, %s121
    %p128 = scmp.eq.s32.totalorder %s17, 1
    %p129 = por %p127, %p128
    %p130 = scmp.ne.s32.totalorder %s121, %s122
    %p131 = scmp.eq.s32.totalorder %s17, 0
    %p132 = por %p130, %p131
    %p133 = scmp.ne.s32.totalorder %s121, %s122
    %p134 = scmp.eq.s32.totalorder %s18, 1
    %p135 = por %p133, %p134
    %p137 = scmp.ne.s32.totalorder %s122, %s136
    %p138 = scmp.eq.s32.totalorder %s18, 0
    %p139 = por %p137, %p138
    %s140 = ssub.s32 %s12, %s19
    %p141 = scmp.eq.s32.totalorder %s140, 0
    %s143 = sadd.s32 %s142, 1
    %s144 = scalar_select %p141, %s142, %s143
    %p147 = pneg %p141
    %p148 = scmp.eq.s32.totalorder %s12, 1
    %p149 = por %p147, %p148
    %p150 = scmp.ne.s32.totalorder %s142, %s145
    %p151 = scmp.eq.s32.totalorder %s12, 0
    %p152 = por %p150, %p151
    %p153 = scmp.ne.s32.totalorder %s142, %s145
    %p154 = scmp.eq.s32.totalorder %s17, 1
    %p155 = por %p153, %p154
    %p156 = scmp.ne.s32.totalorder %s145, %s146
    %p157 = scmp.eq.s32.totalorder %s17, 0
    %p158 = por %p156, %p157
    %p159 = scmp.ne.s32.totalorder %s145, %s146
    %p160 = scmp.eq.s32.totalorder %s18, 1
    %p161 = por %p159, %p160
    %p163 = scmp.ne.s32.totalorder %s146, %s162
    %p164 = scmp.eq.s32.totalorder %s18, 0
    %p165 = por %p163, %p164
    %s166 = ssub.s32 %s12, %s19
    %p167 = scmp.eq.s32.totalorder %s166, 0
    %s169 = sadd.s32 %s168, 1
    %s170 = scalar_select %p167, %s168, %s169
    %p173 = pneg %p167
    %p174 = scmp.eq.s32.totalorder %s12, 1
    %p175 = por %p173, %p174
    %p176 = scmp.ne.s32.totalorder %s168, %s171
    %p177 = scmp.eq.s32.totalorder %s12, 0
    %p178 = por %p176, %p177
    %p179 = scmp.ne.s32.totalorder %s168, %s171
    %p180 = scmp.eq.s32.totalorder %s17, 1
    %p181 = por %p179, %p180
    %p182 = scmp.ne.s32.totalorder %s171, %s172
    %p183 = scmp.eq.s32.totalorder %s17, 0
    %p184 = por %p182, %p183
    %p185 = scmp.ne.s32.totalorder %s171, %s172
    %p186 = scmp.eq.s32.totalorder %s18, 1
    %p187 = por %p185, %p186
    %p189 = scmp.ne.s32.totalorder %s172, %s188
    %p190 = scmp.eq.s32.totalorder %s18, 0
    %p191 = por %p189, %p190
    %p192 = scmp.le.s32.totalorder 1, %s12
    %p193 = scmp.lt.s32.totalorder %s12, 3
    %p194 = pnand %p192, %p193
    %p195 = pneg %p194
    // Predicated region
    $region9: #{prompted_vit_forward.21} parent=5 // pred_check
      _
    $region10: #{prompted_vit_forward.21} parent=5 // pred_check_branch
      %197 = sbr.rel (%p194) target = $region12
    $region11: #{prompted_vit_forward.21} parent=5 // pred_region
      %s198 = ssub.s32 %s12, 1
      // Predicated region
      $region13: #{prompted_vit_forward.21} parent=11 // pred_check
        %p199 = pneg %p111
      $region14: #{prompted_vit_forward.21} parent=11 // pred_check_branch
        %201 = sbr.rel (%p199) target = $region16
      $region15: #{prompted_vit_forward.21} parent=11 // pred_region
        _
      $region16: #{prompted_vit_forward.21} parent=11 // pred_fallthru
        _
      // Predicated region
      $region17: #{prompted_vit_forward.21} parent=11 // pred_check
        %p202 = pneg %p132
      $region18: #{prompted_vit_forward.21} parent=11 // pred_check_branch
        %204 = sbr.rel (%p202) target = $region20
      $region19: #{prompted_vit_forward.21} parent=11 // pred_region
        _
      $region20: #{prompted_vit_forward.21} parent=11 // pred_fallthru
        _
    $region12: #{prompted_vit_forward.21} parent=5 // pred_fallthru
      _
    %p205 = scmp.lt.s32.totalorder %s12, 2
    // Predicated region
    $region21: #{prompted_vit_forward.21} parent=5 // pred_check
      %p206 = pneg %p205
    $region22: #{prompted_vit_forward.21} parent=5 // pred_check_branch
      %208 = sbr.rel (%p206) target = $region24
    $region23: #{prompted_vit_forward.21} parent=5 // pred_region
      // Predicated region
      $region25: #{prompted_vit_forward.21} parent=23 // pred_check
        %p209 = pneg %p32
      $region26: #{prompted_vit_forward.21} parent=23 // pred_check_branch
        %211 = sbr.rel (%p209) target = $region28
      $region27: #{prompted_vit_forward.21} parent=23 // pred_region
        %p212 = scmp.lt.s32.totalorder %s12, 1
        %s213 = scalar_select %p212, %s12, 1
        %s214 = smul.addr %s213, 3
        %s215 = smul.addr %s214, 4
        %s216 = scalar_lea.vmem %s0, %s215
      $region28: #{prompted_vit_forward.21} parent=23 // pred_fallthru
        _
      // Predicated region
      $region29: #{prompted_vit_forward.21} parent=23 // pred_check
        %p217 = pneg %p58
      $region30: #{prompted_vit_forward.21} parent=23 // pred_check_branch
        %219 = sbr.rel (%p217) target = $region32
      $region31: #{prompted_vit_forward.21} parent=23 // pred_region
        %p220 = scmp.lt.s32.totalorder %s12, 1
        %s221 = scalar_select %p220, %s12, 1
        %s222 = smul.addr %s221, 4
        %s223 = scalar_lea.vmem %s1, %s222
      $region32: #{prompted_vit_forward.21} parent=23 // pred_fallthru
        _
      // Predicated region
      $region33: #{prompted_vit_forward.21} parent=23 // pred_check
        %p224 = pneg %p84
      $region34: #{prompted_vit_forward.21} parent=23 // pred_check_branch
        %226 = sbr.rel (%p224) target = $region36
      $region35: #{prompted_vit_forward.21} parent=23 // pred_region
        %p227 = scmp.lt.s32.totalorder %s12, 1
        %s228 = scalar_select %p227, %s12, 1
        %s229 = scalar_lea.vmem %s2, %s228
      $region36: #{prompted_vit_forward.21} parent=23 // pred_fallthru
        _
      // Predicated region
      $region37: #{prompted_vit_forward.21} parent=23 // pred_check
        %p230 = pneg %p152
      $region38: #{prompted_vit_forward.21} parent=23 // pred_check_branch
        %232 = sbr.rel (%p230) target = $region40
      $region39: #{prompted_vit_forward.21} parent=23 // pred_region
        %p233 = scmp.lt.s32.totalorder %s12, 1
        %s234 = scalar_select %p233, %s12, 1
        %s235 = smul.addr %s234, 3
        %s236 = smul.addr %s235, 8
        %s237 = scalar_lea.vmem %s5, %s236
      $region40: #{prompted_vit_forward.21} parent=23 // pred_fallthru
        _
    $region24: #{prompted_vit_forward.21} parent=5 // pred_fallthru
      _
    %p238 = scmp.le.s32.totalorder 1, %s12
    %p239 = scmp.lt.s32.totalorder %s12, 3
    %p240 = pnand %p238, %p239
    %p241 = pneg %p240
    // Predicated region
    $region41: #{prompted_vit_forward.21} parent=5 // pred_check
      _
    $region42: #{prompted_vit_forward.21} parent=5 // pred_check_branch
      %243 = sbr.rel (%p240) target = $region44
    $region43: #{prompted_vit_forward.21} parent=5 // pred_region
      %s244 = ssub.s32 %s12, 1
      %p245 = scmp.lt.s32.totalorder %s17, 1
      %s246 = scalar_select %p245, %s17, 1
      %s247 = smul.addr %s246, 3
      %s248 = smul.addr %s247, 4
      %s249 = scalar_lea.vmem %s0, %s248
      %p250 = pneg %p38
      %p251 = pneg %p35
      %p252 = scmp.lt.s32.totalorder %s17, 1
      %s253 = scalar_select %p252, %s17, 1
      %s254 = smul.addr %s253, 4
      %s255 = scalar_lea.vmem %s1, %s254
      %p256 = pneg %p64
      %p257 = pneg %p61
      %p258 = scmp.lt.s32.totalorder %s17, 1
      %s259 = scalar_select %p258, %s17, 1
      %s260 = scalar_lea.vmem %s2, %s259
      %p261 = pneg %p90
      %p262 = pneg %p87
      %p263 = pneg %p111
      %p264 = pneg %p108
      %p265 = pneg %p132
      %p266 = pneg %p129
      %p267 = scmp.lt.s32.totalorder %s17, 1
      %s268 = scalar_select %p267, %s17, 1
      %s269 = smul.addr %s268, 3
      %s270 = smul.addr %s269, 8
      %s271 = scalar_lea.vmem %s5, %s270
      %p272 = pneg %p158
      %p273 = pneg %p155
      %p274 = pneg %p184
      %p275 = pneg %p181
      %p276 = scmp.lt.s32.totalorder %s17, 1
      %s277 = scalar_select %p276, %s17, 1
      %s278 = smul.addr %s277, 3
      %s279 = smul.addr %s278, 8
      %s280 = scalar_lea.vmem %s6, %s279
      %p281 = scmp.lt.s32.totalorder %s17, 1
      %s282 = scalar_select %p281, %s17, 1
      %s283 = smul.addr %s282, 3
      %s284 = smul.addr %s283, 4
      %s285 = scalar_lea.vmem %s0, %s284
      %p286 = scmp.lt.s32.totalorder %s17, 1
      %s287 = scalar_select %p286, %s17, 1
      %s288 = smul.addr %s287, 4
      %s289 = scalar_lea.vmem %s1, %s288
      %p290 = scmp.lt.s32.totalorder %s17, 1
      %s291 = scalar_select %p290, %s17, 1
      %s292 = scalar_lea.vmem %s2, %s291
      %p293 = scmp.lt.s32.totalorder %s17, 1
      %s294 = scalar_select %p293, %s17, 1
      %s295 = smul.addr %s294, 3
      %s296 = smul.addr %s295, 8
      %s297 = scalar_lea.vmem %s5, %s296
      %p298 = scmp.lt.s32.totalorder %s17, 1
      %s299 = scalar_select %p298, %s17, 1
      %s300 = smul.addr %s299, 3
      %s301 = smul.addr %s300, 8
      %s302 = scalar_lea.vmem %s6, %s301
      %v304 = vld [vmem:[%s292] sm:$0x1]
      %v305 = vld [vmem:[%s285] sm:$0xf]
      %v306 = vld [vmem:[%s285 + $0x4] sm:$0xf]
      %v307 = vld [vmem:[%s285 + $0x8] sm:$0xf]
      %v308 = vld [vmem:[%s289] sm:$0xf]
      %v310 = vlaneseq
      %v311 = vshrl.u32 %v310, 7
      %v312 = vsub.s32 0, %v311
      %v313 = vrot.slane %v304, %v312
      %v318 = vunpack.c.l.b16 %v305
      %v319 = vunpack.c.l.b16 %v306
      %v320 = vunpack.c.l.b16 %v307
      %v321 = vpack.c.b16 %v319, %v318
      %v322 = vpack.c.b16 %v320, %v320
      %vm323 = vcmask 64512
      %v325 = vsel %vm323, %v321, 0
      %v328 = vsel %vm323, %v322, 0
      %v331 = vsel %vm323, %v308, 0
      %333 = vmatprep.subr.bf16.mxu0 0
      %334 = vmatpush1.bf16.xpose.msra.mxu0 %v331
      %335 = vmatprep.subr.bf16.mxu0 0
      %336 = vmatpush1.bf16.xpose.msra.mxu0 0
      %337 = vmatprep.subr.bf16.mxu0 0
      %338 = vmatpush1.bf16.xpose.msra.mxu0 0
      %339 = vmatprep.subr.bf16.mxu0 0
      %340 = vmatpush1.bf16.xpose.msra.mxu0 0
      %341 = vmatprep.subr.bf16.mxu0 0
      %342 = vmatpush1.bf16.xpose.msra.mxu0 0
      %343 = vmatprep.subr.bf16.mxu0 0
      %344 = vmatpush1.bf16.xpose.msra.mxu0 0
      %345 = vmatprep.subr.bf16.mxu0 0
      %346 = vmatpush1.bf16.xpose.msra.mxu0 0
      %347 = vmatprep.subr.bf16.mxu0 0
      %348 = vmatpush1.bf16.xpose.msra.mxu0 0
      %349 = vmatprep.subr.bf16.mxu0 0
      %350 = vmatpush1.bf16.xpose.msra.mxu0 0
      %351 = vmatprep.subr.bf16.mxu0 0
      %352 = vmatpush1.bf16.xpose.msra.mxu0 0
      %353 = vmatprep.subr.bf16.mxu0 0
      %354 = vmatpush1.bf16.xpose.msra.mxu0 0
      %355 = vmatprep.subr.bf16.mxu0 0
      %356 = vmatpush1.bf16.xpose.msra.mxu0 0
      %357 = vmatprep.subr.bf16.mxu0 0
      %358 = vmatpush1.bf16.xpose.msra.mxu0 0
      %359 = vmatprep.subr.bf16.mxu0 0
      %360 = vmatpush1.bf16.xpose.msra.mxu0 0
      %361 = vmatprep.subr.bf16.mxu0 0
      %362 = vmatpush1.bf16.xpose.msra.mxu0 0
      %363 = vmatprep.subr.bf16.mxu0 0
      %364 = vmatpush1.bf16.xpose.msra.mxu0 0
      %365 = vmatprep.mubr.bf16.mxu0 0
      %366 = vmatmul.mubr.bf16.gmra.mrb[0].mxu0 %v325
      %v367 = vpop.f32.mrb[0].mxu0
      %v368 = vadd.f32 %v313, %v367
      %v369 = vpop.f32.mrb[0].mxu0
      %v370 = vpop.f32.mrb[0].mxu0
      %v371 = vadd.f32 %v313, %v370
      %v372 = vpop.f32.mrb[0].mxu0
      %373 = vmatprep.mubr.bf16.mxu0 0
      %374 = vmatmul.mubr.bf16.gmra.mrb[0].mxu0 %v328
      %v375 = vpop.f32.mrb[0].mxu0
      %v376 = vadd.f32 %v313, %v375
      %v377 = vpop.f32.mrb[0].mxu0
      %v378 = vpop.f32.mrb[0].mxu0
      %v379 = vpop.f32.mrb[0].mxu0
      %380 = vdwg.mxu0
      %v381 = vsel %vm323, %v368, -inf
      %382 = vmax.xlane.f32.xlu0 %v381
      %v383 = vpop.xlane.xlu0 %382
      %v384 = vsel %vm323, %v371, -inf
      %385 = vmax.xlane.f32.xlu0 %v384
      %v386 = vpop.xlane.xlu0 %385
      %v387 = vsel %vm323, %v376, -inf
      %388 = vmax.xlane.f32.xlu0 %v387
      %v389 = vpop.xlane.xlu0 %388
      %v390 = vsub.f32 %v368, %v383
      %v391 = vsub.f32 %v371, %v386
      %v392 = vsub.f32 %v376, %v389
      %v393 = vmul.f32 %v390, 1.442695
      %v394 = vpow.pop %v393
      %v395 = vmul.f32 %v391, 1.442695
      %v396 = vpow.pop %v395
      %v397 = vmul.f32 %v392, 1.442695
      %v398 = vpow.pop %v397
      %v399 = vsel %vm323, %v394, 0.0
      %400 = vadd.xlane.f32.xlu0 %v399
      %v401 = vpop.xlane.xlu0 %400
      %v402 = vsel %vm323, %v396, 0.0
      %403 = vadd.xlane.f32.xlu0 %v402
      %v404 = vpop.xlane.xlu0 %403
      %v405 = vsel %vm323, %v398, 0.0
      %406 = vadd.xlane.f32.xlu0 %v405
      %v407 = vpop.xlane.xlu0 %406
      %v408 = vrcp.pop %v401
      %v409 = vrcp.pop %v404
      %v410 = vrcp.pop %v407
      %v411 = vpack.c.bf16 %v396, %v394
      %v412 = vpack.c.bf16 %v398, %v398
      %v414 = vunpack.c.l.b16 %v308
      %v415 = vpack.c.b16 %v414, %v414
      %416 = vrot.lane.b32.xlu0 %v415, 96
      %v417 = vpop.permute.xlu0 %416
      %v419 = vsel %vm323, %v411, 0
      %v422 = vsel %vm323, %v412, 0
      %vm424 = vcmask 1043456
      %v426 = vsel %vm424, %v417, 0
      %428 = vmatprep.subr.bf16.mxu0 0
      %429 = vmatpush1.bf16.msra.mxu0 %v426
      %430 = vmatprep.subr.bf16.mxu0 0
      %431 = vmatpush1.bf16.msra.mxu0 0
      %432 = vmatprep.subr.bf16.mxu0 0
      %433 = vmatpush1.bf16.msra.mxu0 0
      %434 = vmatprep.subr.bf16.mxu0 0
      %435 = vmatpush1.bf16.msra.mxu0 0
      %436 = vmatprep.subr.bf16.mxu0 0
      %437 = vmatpush1.bf16.msra.mxu0 0
      %438 = vmatprep.subr.bf16.mxu0 0
      %439 = vmatpush1.bf16.msra.mxu0 0
      %440 = vmatprep.subr.bf16.mxu0 0
      %441 = vmatpush1.bf16.msra.mxu0 0
      %442 = vmatprep.subr.bf16.mxu0 0
      %443 = vmatpush1.bf16.msra.mxu0 0
      %444 = vmatprep.subr.bf16.mxu0 0
      %445 = vmatpush1.bf16.msra.mxu0 0
      %446 = vmatprep.subr.bf16.mxu0 0
      %447 = vmatpush1.bf16.msra.mxu0 0
      %448 = vmatprep.subr.bf16.mxu0 0
      %449 = vmatpush1.bf16.msra.mxu0 0
      %450 = vmatprep.subr.bf16.mxu0 0
      %451 = vmatpush1.bf16.msra.mxu0 0
      %452 = vmatprep.subr.bf16.mxu0 0
      %453 = vmatpush1.bf16.msra.mxu0 0
      %454 = vmatprep.subr.bf16.mxu0 0
      %455 = vmatpush1.bf16.msra.mxu0 0
      %456 = vmatprep.subr.bf16.mxu0 0
      %457 = vmatpush1.bf16.msra.mxu0 0
      %458 = vmatprep.subr.bf16.mxu0 0
      %459 = vmatpush1.bf16.msra.mxu0 0
      %460 = vmatprep.mubr.bf16.mxu0 0
      %461 = vmatmul.mubr.bf16.gmra.mrb[0].mxu0 %v419
      %v462 = vpop.f32.mrb[0].mxu0
      %v463 = vadd.f32 0.0, %v462
      %v464 = vpop.f32.mrb[0].mxu0
      %v465 = vpop.f32.mrb[0].mxu0
      %v466 = vadd.f32 0.0, %v465
      %v467 = vpop.f32.mrb[0].mxu0
      %468 = vmatprep.mubr.bf16.mxu0 0
      %469 = vmatmul.mubr.bf16.gmra.mrb[0].mxu0 %v422
      %v470 = vpop.f32.mrb[0].mxu0
      %v471 = vadd.f32 0.0, %v470
      %v472 = vpop.f32.mrb[0].mxu0
      %v473 = vpop.f32.mrb[0].mxu0
      %v474 = vpop.f32.mrb[0].mxu0
      %475 = vdwg.mxu0
      %v476 = vmul.f32 %v463, %v408
      %v477 = vmul.f32 %v466, %v409
      %v478 = vmul.f32 %v471, %v410
      %v479 = vpack.c.bf16 %v477, %v476
      %v480 = vpack.c.bf16 %v478, %v478
      %v481 = vld [vmem:[%s3] sm:$0xf]
      %482 = vrot.lane.b32.xlu0 %v321, 120
      %v483 = vpop.permute.xlu0 %482
      %484 = vrot.lane.b32.xlu0 %v322, 120
      %v485 = vpop.permute.xlu0 %484
      %486 = vrot.lane.b32.xlu0 %v415, 120
      %v487 = vpop.permute.xlu0 %486
      %v489 = vsel %vm323, %v483, 0
      %v492 = vsel %vm323, %v485, 0
      %v495 = vsel %vm323, %v487, 0
      %497 = vmatprep.subr.bf16.mxu0 0
      %498 = vmatpush1.bf16.xpose.msra.mxu0 %v495
      %499 = vmatprep.subr.bf16.mxu0 0
      %500 = vmatpush1.bf16.xpose.msra.mxu0 0
      %501 = vmatprep.subr.bf16.mxu0 0
      %502 = vmatpush1.bf16.xpose.msra.mxu0 0
      %503 = vmatprep.subr.bf16.mxu0 0
      %504 = vmatpush1.bf16.xpose.msra.mxu0 0
      %505 = vmatprep.subr.bf16.mxu0 0
      %506 = vmatpush1.bf16.xpose.msra.mxu0 0
      %507 = vmatprep.subr.bf16.mxu0 0
      %508 = vmatpush1.bf16.xpose.msra.mxu0 0
      %509 = vmatprep.subr.bf16.mxu0 0
      %510 = vmatpush1.bf16.xpose.msra.mxu0 0
      %511 = vmatprep.subr.bf16.mxu0 0
      %512 = vmatpush1.bf16.xpose.msra.mxu0 0
      %513 = vmatprep.subr.bf16.mxu0 0
      %514 = vmatpush1.bf16.xpose.msra.mxu0 0
      %515 = vmatprep.subr.bf16.mxu0 0
      %516 = vmatpush1.bf16.xpose.msra.mxu0 0
      %517 = vmatprep.subr.bf16.mxu0 0
      %518 = vmatpush1.bf16.xpose.msra.mxu0 0
      %519 = vmatprep.subr.bf16.mxu0 0
      %520 = vmatpush1.bf16.xpose.msra.mxu0 0
      %521 = vmatprep.subr.bf16.mxu0 0
      %522 = vmatpush1.bf16.xpose.msra.mxu0 0
      %523 = vmatprep.subr.bf16.mxu0 0
      %524 = vmatpush1.bf16.xpose.msra.mxu0 0
      %525 = vmatprep.subr.bf16.mxu0 0
      %526 = vmatpush1.bf16.xpose.msra.mxu0 0
      %527 = vmatprep.subr.bf16.mxu0 0
      %528 = vmatpush1.bf16.xpose.msra.mxu0 0
      %529 = vmatprep.mubr.bf16.mxu0 0
      %530 = vmatmul.mubr.bf16.gmra.mrb[0].mxu0 %v489
      %v531 = vpop.f32.mrb[0].mxu0
      %v532 = vadd.f32 %v313, %v531
      %v533 = vpop.f32.mrb[0].mxu0
      %v534 = vpop.f32.mrb[0].mxu0
      %v535 = vadd.f32 %v313, %v534
      %v536 = vpop.f32.mrb[0].mxu0
      %537 = vmatprep.mubr.bf16.mxu0 0
      %538 = vmatmul.mubr.bf16.gmra.mrb[0].mxu0 %v492
      %v539 = vpop.f32.mrb[0].mxu0
      %v540 = vadd.f32 %v313, %v539
      %v541 = vpop.f32.mrb[0].mxu0
      %v542 = vpop.f32.mrb[0].mxu0
      %v543 = vpop.f32.mrb[0].mxu0
      %544 = vdwg.mxu0
      %v545 = vsel %vm323, %v532, -inf
      %546 = vmax.xlane.f32.xlu0 %v545
      %v547 = vpop.xlane.xlu0 %546
      %v548 = vsel %vm323, %v535, -inf
      %549 = vmax.xlane.f32.xlu0 %v548
      %v550 = vpop.xlane.xlu0 %549
      %v551 = vsel %vm323, %v540, -inf
      %552 = vmax.xlane.f32.xlu0 %v551
      %v553 = vpop.xlane.xlu0 %552
      %v554 = vsub.f32 %v532, %v547
      %v555 = vsub.f32 %v535, %v550
      %v556 = vsub.f32 %v540, %v553
      %v557 = vmul.f32 %v554, 1.442695
      %v558 = vpow.pop %v557
      %v559 = vmul.f32 %v555, 1.442695
      %v560 = vpow.pop %v559
      %v561 = vmul.f32 %v556, 1.442695
      %v562 = vpow.pop %v561
      %v563 = vsel %vm323, %v558, 0.0
      %564 = vadd.xlane.f32.xlu0 %v563
      %v565 = vpop.xlane.xlu0 %564
      %v566 = vsel %vm323, %v560, 0.0
      %567 = vadd.xlane.f32.xlu0 %v566
      %v568 = vpop.xlane.xlu0 %567
      %v569 = vsel %vm323, %v562, 0.0
      %570 = vadd.xlane.f32.xlu0 %v569
      %v571 = vpop.xlane.xlu0 %570
      %v572 = vrcp.pop %v565
      %v573 = vrcp.pop %v568
      %v574 = vrcp.pop %v571
      %v575 = vpack.c.bf16 %v560, %v558
      %v576 = vpack.c.bf16 %v562, %v562
      %577 = vrot.lane.b32.xlu0 %v415, 88
      %v578 = vpop.permute.xlu0 %577
      %v580 = vsel %vm323, %v575, 0
      %v583 = vsel %vm323, %v576, 0
      %v586 = vsel %vm424, %v578, 0
      %588 = vmatprep.subr.bf16.mxu0 0
      %589 = vmatpush1.bf16.msra.mxu0 %v586
      %590 = vmatprep.subr.bf16.mxu0 0
      %591 = vmatpush1.bf16.msra.mxu0 0
      %592 = vmatprep.subr.bf16.mxu0 0
      %593 = vmatpush1.bf16.msra.mxu0 0
      %594 = vmatprep.subr.bf16.mxu0 0
      %595 = vmatpush1.bf16.msra.mxu0 0
      %596 = vmatprep.subr.bf16.mxu0 0
      %597 = vmatpush1.bf16.msra.mxu0 0
      %598 = vmatprep.subr.bf16.mxu0 0
      %599 = vmatpush1.bf16.msra.mxu0 0
      %600 = vmatprep.subr.bf16.mxu0 0
      %601 = vmatpush1.bf16.msra.mxu0 0
      %602 = vmatprep.subr.bf16.mxu0 0
      %603 = vmatpush1.bf16.msra.mxu0 0
      %604 = vmatprep.subr.bf16.mxu0 0
      %605 = vmatpush1.bf16.msra.mxu0 0
      %606 = vmatprep.subr.bf16.mxu0 0
      %607 = vmatpush1.bf16.msra.mxu0 0
      %608 = vmatprep.subr.bf16.mxu0 0
      %609 = vmatpush1.bf16.msra.mxu0 0
      %610 = vmatprep.subr.bf16.mxu0 0
      %611 = vmatpush1.bf16.msra.mxu0 0
      %612 = vmatprep.subr.bf16.mxu0 0
      %613 = vmatpush1.bf16.msra.mxu0 0
      %614 = vmatprep.subr.bf16.mxu0 0
      %615 = vmatpush1.bf16.msra.mxu0 0
      %616 = vmatprep.subr.bf16.mxu0 0
      %617 = vmatpush1.bf16.msra.mxu0 0
      %618 = vmatprep.subr.bf16.mxu0 0
      %619 = vmatpush1.bf16.msra.mxu0 0
      %620 = vmatprep.mubr.bf16.mxu0 0
      %621 = vmatmul.mubr.bf16.gmra.mrb[0].mxu0 %v580
      %v622 = vpop.f32.mrb[0].mxu0
      %v623 = vadd.f32 0.0, %v622
      %v624 = vpop.f32.mrb[0].mxu0
      %v625 = vpop.f32.mrb[0].mxu0
      %v626 = vadd.f32 0.0, %v625
      %v627 = vpop.f32.mrb[0].mxu0
      %628 = vmatprep.mubr.bf16.mxu0 0
      %629 = vmatmul.mubr.bf16.gmra.mrb[0].mxu0 %v583
      %v630 = vpop.f32.mrb[0].mxu0
      %v631 = vadd.f32 0.0, %v630
      %v632 = vpop.f32.mrb[0].mxu0
      %v633 = vpop.f32.mrb[0].mxu0
      %v634 = vpop.f32.mrb[0].mxu0
      %635 = vdwg.mxu0
      %v636 = vmul.f32 %v623, %v572
      %v637 = vmul.f32 %v626, %v573
      %v638 = vmul.f32 %v631, %v574
      %v639 = vpack.c.bf16 %v637, %v636
      %v640 = vpack.c.bf16 %v638, %v638
      %v641 = vld [vmem:[%s3 + $0x4] sm:$0xf]
      %v643 = vsel %vm323, %v639, 0
      %v646 = vsel %vm323, %v640, 0
      %v649 = vsel %vm424, %v641, 0
      %651 = vmatprep.subr.bf16.mxu0 0
      %652 = vmatpush1.bf16.msra.mxu0 %v649
      %653 = vmatprep.subr.bf16.mxu0 0
      %654 = vmatpush1.bf16.msra.mxu0 0
      %655 = vmatprep.subr.bf16.mxu0 0
      %656 = vmatpush1.bf16.msra.mxu0 0
      %657 = vmatprep.subr.bf16.mxu0 0
      %658 = vmatpush1.bf16.msra.mxu0 0
      %659 = vmatprep.subr.bf16.mxu0 0
      %660 = vmatpush1.bf16.msra.mxu0 0
      %661 = vmatprep.subr.bf16.mxu0 0
      %662 = vmatpush1.bf16.msra.mxu0 0
      %663 = vmatprep.subr.bf16.mxu0 0
      %664 = vmatpush1.bf16.msra.mxu0 0
      %665 = vmatprep.subr.bf16.mxu0 0
      %666 = vmatpush1.bf16.msra.mxu0 0
      %667 = vmatprep.subr.bf16.mxu0 0
      %668 = vmatpush1.bf16.msra.mxu0 0
      %669 = vmatprep.subr.bf16.mxu0 0
      %670 = vmatpush1.bf16.msra.mxu0 0
      %671 = vmatprep.subr.bf16.mxu0 0
      %672 = vmatpush1.bf16.msra.mxu0 0
      %673 = vmatprep.subr.bf16.mxu0 0
      %674 = vmatpush1.bf16.msra.mxu0 0
      %675 = vmatprep.subr.bf16.mxu0 0
      %676 = vmatpush1.bf16.msra.mxu0 0
      %677 = vmatprep.subr.bf16.mxu0 0
      %678 = vmatpush1.bf16.msra.mxu0 0
      %679 = vmatprep.subr.bf16.mxu0 0
      %680 = vmatpush1.bf16.msra.mxu0 0
      %681 = vmatprep.subr.bf16.mxu0 0
      %682 = vmatpush1.bf16.msra.mxu0 0
      %683 = vmatprep.mubr.bf16.mxu0 0
      %684 = vmatmul.mubr.bf16.gmra.mrb[0].mxu0 %v643
      %v685 = vpop.f32.mrb[0].mxu0
      %v686 = vadd.f32 0.0, %v685
      %v687 = vpop.f32.mrb[0].mxu0
      %v688 = vpop.f32.mrb[0].mxu0
      %v689 = vadd.f32 0.0, %v688
      %v690 = vpop.f32.mrb[0].mxu0
      %691 = vmatprep.mubr.bf16.mxu0 0
      %692 = vmatmul.mubr.bf16.gmra.mrb[0].mxu0 %v646
      %v693 = vpop.f32.mrb[0].mxu0
      %v694 = vadd.f32 0.0, %v693
      %v695 = vpop.f32.mrb[0].mxu0
      %v696 = vpop.f32.mrb[0].mxu0
      %v697 = vpop.f32.mrb[0].mxu0
      %698 = vdwg.mxu0
      %v700 = vsel %vm323, %v479, 0
      %v703 = vsel %vm323, %v480, 0
      %v706 = vsel %vm424, %v481, 0
      %708 = vmatprep.subr.bf16.mxu0 0
      %709 = vmatpush1.bf16.msra.mxu0 %v706
      %710 = vmatprep.subr.bf16.mxu0 0
      %711 = vmatpush1.bf16.msra.mxu0 0
      %712 = vmatprep.subr.bf16.mxu0 0
      %713 = vmatpush1.bf16.msra.mxu0 0
      %714 = vmatprep.subr.bf16.mxu0 0
      %715 = vmatpush1.bf16.msra.mxu0 0
      %716 = vmatprep.subr.bf16.mxu0 0
      %717 = vmatpush1.bf16.msra.mxu0 0
      %718 = vmatprep.subr.bf16.mxu0 0
      %719 = vmatpush1.bf16.msra.mxu0 0
      %720 = vmatprep.subr.bf16.mxu0 0
      %721 = vmatpush1.bf16.msra.mxu0 0
      %722 = vmatprep.subr.bf16.mxu0 0
      %723 = vmatpush1.bf16.msra.mxu0 0
      %724 = vmatprep.subr.bf16.mxu0 0
      %725 = vmatpush1.bf16.msra.mxu0 0
      %726 = vmatprep.subr.bf16.mxu0 0
      %727 = vmatpush1.bf16.msra.mxu0 0
      %728 = vmatprep.subr.bf16.mxu0 0
      %729 = vmatpush1.bf16.msra.mxu0 0
      %730 = vmatprep.subr.bf16.mxu0 0
      %731 = vmatpush1.bf16.msra.mxu0 0
      %732 = vmatprep.subr.bf16.mxu0 0
      %733 = vmatpush1.bf16.msra.mxu0 0
      %734 = vmatprep.subr.bf16.mxu0 0
      %735 = vmatpush1.bf16.msra.mxu0 0
      %736 = vmatprep.subr.bf16.mxu0 0
      %737 = vmatpush1.bf16.msra.mxu0 0
      %738 = vmatprep.subr.bf16.mxu0 0
      %739 = vmatpush1.bf16.msra.mxu0 0
      %740 = vmatprep.mubr.bf16.mxu0 0
      %741 = vmatmul.mubr.bf16.gmra.mrb[0].mxu0 %v700
      %v742 = vpop.f32.mrb[0].mxu0
      %v743 = vadd.f32 %v686, %v742
      %v744 = vpop.f32.mrb[0].mxu0
      %v745 = vpop.f32.mrb[0].mxu0
      %v746 = vadd.f32 %v689, %v745
      %v747 = vpop.f32.mrb[0].mxu0
      %748 = vmatprep.mubr.bf16.mxu0 0
      %749 = vmatmul.mubr.bf16.gmra.mrb[0].mxu0 %v703
      %v750 = vpop.f32.mrb[0].mxu0
      %v751 = vadd.f32 %v694, %v750
      %v752 = vpop.f32.mrb[0].mxu0
      %v753 = vpop.f32.mrb[0].mxu0
      %v754 = vpop.f32.mrb[0].mxu0
      %755 = vdwg.mxu0
      %756 = vrot.lane.b32.xlu0 %v321, 112
      %v757 = vpop.permute.xlu0 %756
      %758 = vrot.lane.b32.xlu0 %v322, 112
      %v759 = vpop.permute.xlu0 %758
      %760 = vrot.lane.b32.xlu0 %v415, 112
      %v761 = vpop.permute.xlu0 %760
      %v763 = vsel %vm323, %v757, 0
      %v766 = vsel %vm323, %v759, 0
      %v769 = vsel %vm323, %v761, 0
      %771 = vmatprep.subr.bf16.mxu0 0
      %772 = vmatpush1.bf16.xpose.msra.mxu0 %v769
      %773 = vmatprep.subr.bf16.mxu0 0
      %774 = vmatpush1.bf16.xpose.msra.mxu0 0
      %775 = vmatprep.subr.bf16.mxu0 0
      %776 = vmatpush1.bf16.xpose.msra.mxu0 0
      %777 = vmatprep.subr.bf16.mxu0 0
      %778 = vmatpush1.bf16.xpose.msra.mxu0 0
      %779 = vmatprep.subr.bf16.mxu0 0
      %780 = vmatpush1.bf16.xpose.msra.mxu0 0
      %781 = vmatprep.subr.bf16.mxu0 0
      %782 = vmatpush1.bf16.xpose.msra.mxu0 0
      %783 = vmatprep.subr.bf16.mxu0 0
      %784 = vmatpush1.bf16.xpose.msra.mxu0 0
      %785 = vmatprep.subr.bf16.mxu0 0
      %786 = vmatpush1.bf16.xpose.msra.mxu0 0
      %787 = vmatprep.subr.bf16.mxu0 0
      %788 = vmatpush1.bf16.xpose.msra.mxu0 0
      %789 = vmatprep.subr.bf16.mxu0 0
      %790 = vmatpush1.bf16.xpose.msra.mxu0 0
      %791 = vmatprep.subr.bf16.mxu0 0
      %792 = vmatpush1.bf16.xpose.msra.mxu0 0
      %793 = vmatprep.subr.bf16.mxu0 0
      %794 = vmatpush1.bf16.xpose.msra.mxu0 0
      %795 = vmatprep.subr.bf16.mxu0 0
      %796 = vmatpush1.bf16.xpose.msra.mxu0 0
      %797 = vmatprep.subr.bf16.mxu0 0
      %798 = vmatpush1.bf16.xpose.msra.mxu0 0
      %799 = vmatprep.subr.bf16.mxu0 0
      %800 = vmatpush1.bf16.xpose.msra.mxu0 0
      %801 = vmatprep.subr.bf16.mxu0 0
      %802 = vmatpush1.bf16.xpose.msra.mxu0 0
      %803 = vmatprep.mubr.bf16.mxu0 0
      %804 = vmatmul.mubr.bf16.gmra.mrb[0].mxu0 %v763
      %v805 = vpop.f32.mrb[0].mxu0
      %v806 = vadd.f32 %v313, %v805
      %v807 = vpop.f32.mrb[0].mxu0
      %v808 = vpop.f32.mrb[0].mxu0
      %v809 = vadd.f32 %v313, %v808
      %v810 = vpop.f32.mrb[0].mxu0
      %811 = vmatprep.mubr.bf16.mxu0 0
      %812 = vmatmul.mubr.bf16.gmra.mrb[0].mxu0 %v766
      %v813 = vpop.f32.mrb[0].mxu0
      %v814 = vadd.f32 %v313, %v813
      %v815 = vpop.f32.mrb[0].mxu0
      %v816 = vpop.f32.mrb[0].mxu0
      %v817 = vpop.f32.mrb[0].mxu0
      %818 = vdwg.mxu0
      %v819 = vsel %vm323, %v806, -inf
      %820 = vmax.xlane.f32.xlu0 %v819
      %v821 = vpop.xlane.xlu0 %820
      %v822 = vsel %vm323, %v809, -inf
      %823 = vmax.xlane.f32.xlu0 %v822
      %v824 = vpop.xlane.xlu0 %823
      %v825 = vsel %vm323, %v814, -inf
      %826 = vmax.xlane.f32.xlu0 %v825
      %v827 = vpop.xlane.xlu0 %826
      %v828 = vsub.f32 %v806, %v821
      %v829 = vsub.f32 %v809, %v824
      %v830 = vsub.f32 %v814, %v827
      %v831 = vmul.f32 %v828, 1.442695
      %v832 = vpow.pop %v831
      %v833 = vmul.f32 %v829, 1.442695
      %v834 = vpow.pop %v833
      %v835 = vmul.f32 %v830, 1.442695
      %v836 = vpow.pop %v835
      %v837 = vsel %vm323, %v832, 0.0
      %838 = vadd.xlane.f32.xlu0 %v837
      %v839 = vpop.xlane.xlu0 %838
      %v840 = vsel %vm323, %v834, 0.0
      %841 = vadd.xlane.f32.xlu0 %v840
      %v842 = vpop.xlane.xlu0 %841
      %v843 = vsel %vm323, %v836, 0.0
      %844 = vadd.xlane.f32.xlu0 %v843
      %v845 = vpop.xlane.xlu0 %844
      %v846 = vrcp.pop %v839
      %v847 = vrcp.pop %v842
      %v848 = vrcp.pop %v845
      %v849 = vpack.c.bf16 %v834, %v832
      %v850 = vpack.c.bf16 %v836, %v836
      %851 = vrot.lane.b32.xlu0 %v415, 80
      %v852 = vpop.permute.xlu0 %851
      %v854 = vsel %vm323, %v849, 0
      %v857 = vsel %vm323, %v850, 0
      %v860 = vsel %vm424, %v852, 0
      %862 = vmatprep.subr.bf16.mxu0 0
      %863 = vmatpush1.bf16.msra.mxu0 %v860
      %864 = vmatprep.subr.bf16.mxu0 0
      %865 = vmatpush1.bf16.msra.mxu0 0
      %866 = vmatprep.subr.bf16.mxu0 0
      %867 = vmatpush1.bf16.msra.mxu0 0
      %868 = vmatprep.subr.bf16.mxu0 0
      %869 = vmatpush1.bf16.msra.mxu0 0
      %870 = vmatprep.subr.bf16.mxu0 0
      %871 = vmatpush1.bf16.msra.mxu0 0
      %872 = vmatprep.subr.bf16.mxu0 0
      %873 = vmatpush1.bf16.msra.mxu0 0
      %874 = vmatprep.subr.bf16.mxu0 0
      %875 = vmatpush1.bf16.msra.mxu0 0
      %876 = vmatprep.subr.bf16.mxu0 0
      %877 = vmatpush1.bf16.msra.mxu0 0
      %878 = vmatprep.subr.bf16.mxu0 0
      %879 = vmatpush1.bf16.msra.mxu0 0
      %880 = vmatprep.subr.bf16.mxu0 0
      %881 = vmatpush1.bf16.msra.mxu0 0
      %882 = vmatprep.subr.bf16.mxu0 0
      %883 = vmatpush1.bf16.msra.mxu0 0
      %884 = vmatprep.subr.bf16.mxu0 0
      %885 = vmatpush1.bf16.msra.mxu0 0
      %886 = vmatprep.subr.bf16.mxu0 0
      %887 = vmatpush1.bf16.msra.mxu0 0
      %888 = vmatprep.subr.bf16.mxu0 0
      %889 = vmatpush1.bf16.msra.mxu0 0
      %890 = vmatprep.subr.bf16.mxu0 0
      %891 = vmatpush1.bf16.msra.mxu0 0
      %892 = vmatprep.subr.bf16.mxu0 0
      %893 = vmatpush1.bf16.msra.mxu0 0
      %894 = vmatprep.mubr.bf16.mxu0 0
      %895 = vmatmul.mubr.bf16.gmra.mrb[0].mxu0 %v854
      %v896 = vpop.f32.mrb[0].mxu0
      %v897 = vadd.f32 0.0, %v896
      %v898 = vpop.f32.mrb[0].mxu0
      %v899 = vpop.f32.mrb[0].mxu0
      %v900 = vadd.f32 0.0, %v899
      %v901 = vpop.f32.mrb[0].mxu0
      %902 = vmatprep.mubr.bf16.mxu0 0
      %903 = vmatmul.mubr.bf16.gmra.mrb[0].mxu0 %v857
      %v904 = vpop.f32.mrb[0].mxu0
      %v905 = vadd.f32 0.0, %v904
      %v906 = vpop.f32.mrb[0].mxu0
      %v907 = vpop.f32.mrb[0].mxu0
      %v908 = vpop.f32.mrb[0].mxu0
      %909 = vdwg.mxu0
      %v910 = vmul.f32 %v897, %v846
      %v911 = vmul.f32 %v900, %v847
      %v912 = vmul.f32 %v905, %v848
      %v913 = vpack.c.bf16 %v911, %v910
      %v914 = vpack.c.bf16 %v912, %v912
      %v915 = vld [vmem:[%s3 + $0x8] sm:$0xf]
      %v917 = vsel %vm323, %v913, 0
      %v920 = vsel %vm323, %v914, 0
      %v923 = vsel %vm424, %v915, 0
      %925 = vmatprep.subr.bf16.mxu0 0
      %926 = vmatpush1.bf16.msra.mxu0 %v923
      %927 = vmatprep.subr.bf16.mxu0 0
      %928 = vmatpush1.bf16.msra.mxu0 0
      %929 = vmatprep.subr.bf16.mxu0 0
      %930 = vmatpush1.bf16.msra.mxu0 0
      %931 = vmatprep.subr.bf16.mxu0 0
      %932 = vmatpush1.bf16.msra.mxu0 0
      %933 = vmatprep.subr.bf16.mxu0 0
      %934 = vmatpush1.bf16.msra.mxu0 0
      %935 = vmatprep.subr.bf16.mxu0 0
      %936 = vmatpush1.bf16.msra.mxu0 0
      %937 = vmatprep.subr.bf16.mxu0 0
      %938 = vmatpush1.bf16.msra.mxu0 0
      %939 = vmatprep.subr.bf16.mxu0 0
      %940 = vmatpush1.bf16.msra.mxu0 0
      %941 = vmatprep.subr.bf16.mxu0 0
      %942 = vmatpush1.bf16.msra.mxu0 0
      %943 = vmatprep.subr.bf16.mxu0 0
      %944 = vmatpush1.bf16.msra.mxu0 0
      %945 = vmatprep.subr.bf16.mxu0 0
      %946 = vmatpush1.bf16.msra.mxu0 0
      %947 = vmatprep.subr.bf16.mxu0 0
      %948 = vmatpush1.bf16.msra.mxu0 0
      %949 = vmatprep.subr.bf16.mxu0 0
      %950 = vmatpush1.bf16.msra.mxu0 0
      %951 = vmatprep.subr.bf16.mxu0 0
      %952 = vmatpush1.bf16.msra.mxu0 0
      %953 = vmatprep.subr.bf16.mxu0 0
      %954 = vmatpush1.bf16.msra.mxu0 0
      %955 = vmatprep.subr.bf16.mxu0 0
      %956 = vmatpush1.bf16.msra.mxu0 0
      %957 = vmatprep.mubr.bf16.mxu0 0
      %958 = vmatmul.mubr.bf16.gmra.mrb[0].mxu0 %v917
      %v959 = vpop.f32.mrb[0].mxu0
      %v960 = vadd.f32 0.0, %v959
      %v961 = vpop.f32.mrb[0].mxu0
      %v962 = vpop.f32.mrb[0].mxu0
      %v963 = vadd.f32 0.0, %v962
      %v964 = vpop.f32.mrb[0].mxu0
      %965 = vmatprep.mubr.bf16.mxu0 0
      %966 = vmatmul.mubr.bf16.gmra.mrb[0].mxu0 %v920
      %v967 = vpop.f32.mrb[0].mxu0
      %v968 = vadd.f32 0.0, %v967
      %v969 = vpop.f32.mrb[0].mxu0
      %v970 = vpop.f32.mrb[0].mxu0
      %v971 = vpop.f32.mrb[0].mxu0
      %972 = vdwg.mxu0
      %v973 = vadd.f32 %v743, %v960
      %v974 = vadd.f32 %v746, %v963
      %v975 = vadd.f32 %v751, %v968
      %976 = vrot.lane.b32.xlu0 %v321, 104
      %v977 = vpop.permute.xlu0 %976
      %978 = vrot.lane.b32.xlu0 %v322, 104
      %v979 = vpop.permute.xlu0 %978
      %980 = vrot.lane.b32.xlu0 %v415, 104
      %v981 = vpop.permute.xlu0 %980
      %v983 = vsel %vm323, %v977, 0
      %v986 = vsel %vm323, %v979, 0
      %v989 = vsel %vm323, %v981, 0
      %991 = vmatprep.subr.bf16.mxu0 0
      %992 = vmatpush1.bf16.xpose.msra.mxu0 %v989
      %993 = vmatprep.subr.bf16.mxu0 0
      %994 = vmatpush1.bf16.xpose.msra.mxu0 0
      %995 = vmatprep.subr.bf16.mxu0 0
      %996 = vmatpush1.bf16.xpose.msra.mxu0 0
      %997 = vmatprep.subr.bf16.mxu0 0
      %998 = vmatpush1.bf16.xpose.msra.mxu0 0
      %999 = vmatprep.subr.bf16.mxu0 0
      %1000 = vmatpush1.bf16.xpose.msra.mxu0 0
      %1001 = vmatprep.subr.bf16.mxu0 0
      %1002 = vmatpush1.bf16.xpose.msra.mxu0 0
      %1003 = vmatprep.subr.bf16.mxu0 0
      %1004 = vmatpush1.bf16.xpose.msra.mxu0 0
      %1005 = vmatprep.subr.bf16.mxu0 0
      %1006 = vmatpush1.bf16.xpose.msra.mxu0 0
      %1007 = vmatprep.subr.bf16.mxu0 0
      %1008 = vmatpush1.bf16.xpose.msra.mxu0 0
      %1009 = vmatprep.subr.bf16.mxu0 0
      %1010 = vmatpush1.bf16.xpose.msra.mxu0 0
      %1011 = vmatprep.subr.bf16.mxu0 0
      %1012 = vmatpush1.bf16.xpose.msra.mxu0 0
      %1013 = vmatprep.subr.bf16.mxu0 0
      %1014 = vmatpush1.bf16.xpose.msra.mxu0 0
      %1015 = vmatprep.subr.bf16.mxu0 0
      %1016 = vmatpush1.bf16.xpose.msra.mxu0 0
      %1017 = vmatprep.subr.bf16.mxu0 0
      %1018 = vmatpush1.bf16.xpose.msra.mxu0 0
      %1019 = vmatprep.subr.bf16.mxu0 0
      %1020 = vmatpush1.bf16.xpose.msra.mxu0 0
      %1021 = vmatprep.subr.bf16.mxu0 0
      %1022 = vmatpush1.bf16.xpose.msra.mxu0 0
      %1023 = vmatprep.mubr.bf16.mxu0 0
      %1024 = vmatmul.mubr.bf16.gmra.mrb[0].mxu0 %v983
      %v1025 = vpop.f32.mrb[0].mxu0
      %v1026 = vadd.f32 %v313, %v1025
      %v1027 = vpop.f32.mrb[0].mxu0
      %v1028 = vpop.f32.mrb[0].mxu0
      %v1029 = vadd.f32 %v313, %v1028
      %v1030 = vpop.f32.mrb[0].mxu0
      %1031 = vmatprep.mubr.bf16.mxu0 0
      %1032 = vmatmul.mubr.bf16.gmra.mrb[0].mxu0 %v986
      %v1033 = vpop.f32.mrb[0].mxu0
      %v1034 = vadd.f32 %v313, %v1033
      %v1035 = vpop.f32.mrb[0].mxu0
      %v1036 = vpop.f32.mrb[0].mxu0
      %v1037 = vpop.f32.mrb[0].mxu0
      %1038 = vdwg.mxu0
      %v1039 = vsel %vm323, %v1026, -inf
      %1040 = vmax.xlane.f32.xlu0 %v1039
      %v1041 = vpop.xlane.xlu0 %1040
      %v1042 = vsel %vm323, %v1029, -inf
      %1043 = vmax.xlane.f32.xlu0 %v1042
      %v1044 = vpop.xlane.xlu0 %1043
      %v1045 = vsel %vm323, %v1034, -inf
      %1046 = vmax.xlane.f32.xlu0 %v1045
      %v1047 = vpop.xlane.xlu0 %1046
      %v1048 = vsub.f32 %v1026, %v1041
      %v1049 = vsub.f32 %v1029, %v1044
      %v1050 = vsub.f32 %v1034, %v1047
      %v1051 = vmul.f32 %v1048, 1.442695
      %v1052 = vpow.pop %v1051
      %v1053 = vmul.f32 %v1049, 1.442695
      %v1054 = vpow.pop %v1053
      %v1055 = vmul.f32 %v1050, 1.442695
      %v1056 = vpow.pop %v1055
      %v1057 = vsel %vm323, %v1052, 0.0
      %1058 = vadd.xlane.f32.xlu0 %v1057
      %v1059 = vpop.xlane.xlu0 %1058
      %v1060 = vsel %vm323, %v1054, 0.0
      %1061 = vadd.xlane.f32.xlu0 %v1060
      %v1062 = vpop.xlane.xlu0 %1061
      %v1063 = vsel %vm323, %v1056, 0.0
      %1064 = vadd.xlane.f32.xlu0 %v1063
      %v1065 = vpop.xlane.xlu0 %1064
      %v1066 = vrcp.pop %v1059
      %v1067 = vrcp.pop %v1062
      %v1068 = vrcp.pop %v1065
      %v1069 = vpack.c.bf16 %v1054, %v1052
      %v1070 = vpack.c.bf16 %v1056, %v1056
      %1071 = vrot.lane.b32.xlu0 %v415, 72
      %v1072 = vpop.permute.xlu0 %1071
      %v1074 = vsel %vm323, %v1069, 0
      %v1077 = vsel %vm323, %v1070, 0
      %v1080 = vsel %vm424, %v1072, 0
      %1082 = vmatprep.subr.bf16.mxu0 0
      %1083 = vmatpush1.bf16.msra.mxu0 %v1080
      %1084 = vmatprep.subr.bf16.mxu0 0
      %1085 = vmatpush1.bf16.msra.mxu0 0
      %1086 = vmatprep.subr.bf16.mxu0 0
      %1087 = vmatpush1.bf16.msra.mxu0 0
      %1088 = vmatprep.subr.bf16.mxu0 0
      %1089 = vmatpush1.bf16.msra.mxu0 0
      %1090 = vmatprep.subr.bf16.mxu0 0
      %1091 = vmatpush1.bf16.msra.mxu0 0
      %1092 = vmatprep.subr.bf16.mxu0 0
      %1093 = vmatpush1.bf16.msra.mxu0 0
      %1094 = vmatprep.subr.bf16.mxu0 0
      %1095 = vmatpush1.bf16.msra.mxu0 0
      %1096 = vmatprep.subr.bf16.mxu0 0
      %1097 = vmatpush1.bf16.msra.mxu0 0
      %1098 = vmatprep.subr.bf16.mxu0 0
      %1099 = vmatpush1.bf16.msra.mxu0 0
      %1100 = vmatprep.subr.bf16.mxu0 0
      %1101 = vmatpush1.bf16.msra.mxu0 0
      %1102 = vmatprep.subr.bf16.mxu0 0
      %1103 = vmatpush1.bf16.msra.mxu0 0
      %1104 = vmatprep.subr.bf16.mxu0 0
      %1105 = vmatpush1.bf16.msra.mxu0 0
      %1106 = vmatprep.subr.bf16.mxu0 0
      %1107 = vmatpush1.bf16.msra.mxu0 0
      %1108 = vmatprep.subr.bf16.mxu0 0
      %1109 = vmatpush1.bf16.msra.mxu0 0
      %1110 = vmatprep.subr.bf16.mxu0 0
      %1111 = vmatpush1.bf16.msra.mxu0 0
      %1112 = vmatprep.subr.bf16.mxu0 0
      %1113 = vmatpush1.bf16.msra.mxu0 0
      %1114 = vmatprep.mubr.bf16.mxu0 0
      %1115 = vmatmul.mubr.bf16.gmra.mrb[0].mxu0 %v1074
      %v1116 = vpop.f32.mrb[0].mxu0
      %v1117 = vadd.f32 0.0, %v1116
      %v1118 = vpop.f32.mrb[0].mxu0
      %v1119 = vpop.f32.mrb[0].mxu0
      %v1120 = vadd.f32 0.0, %v1119
      %v1121 = vpop.f32.mrb[0].mxu0
      %1122 = vmatprep.mubr.bf16.mxu0 0
      %1123 = vmatmul.mubr.bf16.gmra.mrb[0].mxu0 %v1077
      %v1124 = vpop.f32.mrb[0].mxu0
      %v1125 = vadd.f32 0.0, %v1124
      %v1126 = vpop.f32.mrb[0].mxu0
      %v1127 = vpop.f32.mrb[0].mxu0
      %v1128 = vpop.f32.mrb[0].mxu0
      %1129 = vdwg.mxu0
      %v1130 = vmul.f32 %v1117, %v1066
      %v1131 = vmul.f32 %v1120, %v1067
      %v1132 = vmul.f32 %v1125, %v1068
      %v1133 = vpack.c.bf16 %v1131, %v1130
      %v1134 = vpack.c.bf16 %v1132, %v1132
      %v1135 = vld [vmem:[%s3 + $0xc] sm:$0xf]
      %v1137 = vsel %vm323, %v1133, 0
      %v1140 = vsel %vm323, %v1134, 0
      %v1143 = vsel %vm424, %v1135, 0
      %1145 = vmatprep.subr.bf16.mxu0 0
      %1146 = vmatpush1.bf16.msra.mxu0 %v1143
      %1147 = vmatprep.subr.bf16.mxu0 0
      %1148 = vmatpush1.bf16.msra.mxu0 0
      %1149 = vmatprep.subr.bf16.mxu0 0
      %1150 = vmatpush1.bf16.msra.mxu0 0
      %1151 = vmatprep.subr.bf16.mxu0 0
      %1152 = vmatpush1.bf16.msra.mxu0 0
      %1153 = vmatprep.subr.bf16.mxu0 0
      %1154 = vmatpush1.bf16.msra.mxu0 0
      %1155 = vmatprep.subr.bf16.mxu0 0
      %1156 = vmatpush1.bf16.msra.mxu0 0
      %1157 = vmatprep.subr.bf16.mxu0 0
      %1158 = vmatpush1.bf16.msra.mxu0 0
      %1159 = vmatprep.subr.bf16.mxu0 0
      %1160 = vmatpush1.bf16.msra.mxu0 0
      %1161 = vmatprep.subr.bf16.mxu0 0
      %1162 = vmatpush1.bf16.msra.mxu0 0
      %1163 = vmatprep.subr.bf16.mxu0 0
      %1164 = vmatpush1.bf16.msra.mxu0 0
      %1165 = vmatprep.subr.bf16.mxu0 0
      %1166 = vmatpush1.bf16.msra.mxu0 0
      %1167 = vmatprep.subr.bf16.mxu0 0
      %1168 = vmatpush1.bf16.msra.mxu0 0
      %1169 = vmatprep.subr.bf16.mxu0 0
      %1170 = vmatpush1.bf16.msra.mxu0 0
      %1171 = vmatprep.subr.bf16.mxu0 0
      %1172 = vmatpush1.bf16.msra.mxu0 0
      %1173 = vmatprep.subr.bf16.mxu0 0
      %1174 = vmatpush1.bf16.msra.mxu0 0
      %1175 = vmatprep.subr.bf16.mxu0 0
      %1176 = vmatpush1.bf16.msra.mxu0 0
      %1177 = vmatprep.mubr.bf16.mxu0 0
      %1178 = vmatmul.mubr.bf16.gmra.mrb[0].mxu0 %v1137
      %v1179 = vpop.f32.mrb[0].mxu0
      %v1180 = vadd.f32 0.0, %v1179
      %v1181 = vpop.f32.mrb[0].mxu0
      %v1182 = vpop.f32.mrb[0].mxu0
      %v1183 = vadd.f32 0.0, %v1182
      %v1184 = vpop.f32.mrb[0].mxu0
      %1185 = vmatprep.mubr.bf16.mxu0 0
      %1186 = vmatmul.mubr.bf16.gmra.mrb[0].mxu0 %v1140
      %v1187 = vpop.f32.mrb[0].mxu0
      %v1188 = vadd.f32 0.0, %v1187
      %v1189 = vpop.f32.mrb[0].mxu0
      %v1190 = vpop.f32.mrb[0].mxu0
      %v1191 = vpop.f32.mrb[0].mxu0
      %1192 = vdwg.mxu0
      %v1193 = vadd.f32 %v973, %v1180
      %v1194 = vadd.f32 %v974, %v1183
      %v1195 = vadd.f32 %v975, %v1188
      %v1196 = vld [vmem:[%s4] sm:$0x1]
      %v1198 = vlaneseq
      %v1199 = vshrl.u32 %v1198, 7
      %v1200 = vsub.s32 0, %v1199
      %v1201 = vrot.slane %v1196, %v1200
      %v1203 = vadd.f32 %v1193, %v1201
      %v1204 = vadd.f32 %v1194, %v1201
      %v1205 = vadd.f32 %v1195, %v1201
      %v1206 = vld [vmem:[%s297] sm:$0xff]
      %v1207 = vld [vmem:[%s297 + $0x8] sm:$0xff]
      %v1208 = vld [vmem:[%s297 + $0x10] sm:$0xff]
      %v1209 = vadd.f32 %v1203, %v1206
      %v1210 = vadd.f32 %v1204, %v1207
      %v1211 = vadd.f32 %v1205, %v1208
      %vm1212 = vcmask 261120
      %1213 = vst.msk [vmem:[%s302] sm:$0xff] %vm1212, %v1209
      %1214 = vst.msk [vmem:[%s302 + $0x8] sm:$0xff] %vm1212, %v1210
      %1215 = vst.msk [vmem:[%s302 + $0x10] sm:$0xff] %vm1212, %v1211
      %p1216 = scmp.lt.s32.totalorder %s17, 1
      %s1217 = scalar_select %p1216, %s17, 1
      %s1218 = smul.addr %s1217, 3
      %s1219 = smul.addr %s1218, 8
      %s1220 = scalar_lea.vmem %s6, %s1219
      // Predicated region
      $region45: #{prompted_vit_forward.21} parent=43 // pred_check
        %p1221 = pneg %p181
      $region46: #{prompted_vit_forward.21} parent=43 // pred_check_branch
        %1223 = sbr.rel (%p1221) target = $region48
      $region47: #{prompted_vit_forward.21} parent=43 // pred_region
        _
      $region48: #{prompted_vit_forward.21} parent=43 // pred_fallthru
        _
    $region44: #{prompted_vit_forward.21} parent=5 // pred_fallthru
      _
    %p1224 = scmp.le.s32.totalorder 2, %s12
    // Predicated region
    $region49: #{prompted_vit_forward.21} parent=5 // pred_check
      %p1225 = pneg %p1224
    $region50: #{prompted_vit_forward.21} parent=5 // pred_check_branch
      %1227 = sbr.rel (%p1225) target = $region52
    $region51: #{prompted_vit_forward.21} parent=5 // pred_region
      %s1228 = ssub.s32 %s12, 2
      // Predicated region
      $region53: #{prompted_vit_forward.21} parent=51 // pred_check
        %p1229 = pneg %p187
      $region54: #{prompted_vit_forward.21} parent=51 // pred_check_branch
        %1231 = sbr.rel (%p1229) target = $region56
      $region55: #{prompted_vit_forward.21} parent=51 // pred_region
        %p1232 = scmp.lt.s32.totalorder %s18, 1
        %s1233 = scalar_select %p1232, %s18, 1
        %s1234 = smul.addr %s1233, 3
        %s1235 = smul.addr %s1234, 8
        %s1236 = scalar_lea.vmem %s6, %s1235
      $region56: #{prompted_vit_forward.21} parent=51 // pred_fallthru
        _
    $region52: #{prompted_vit_forward.21} parent=5 // pred_fallthru
      _
  $region6: #{prompted_vit_forward.21} parent=0 // loop_footer
    %s16 = sadd.s32 1, %s12
  $region7: #{prompted_vit_forward.21} parent=0 // loop_footer_branch
    %11 = sbr.rel target = $region3
  $region8: #{prompted_vit_forward.21} parent=0 // loop_exit
    _

// kernel: prompted_vit_forward.22
$region0: #{prompted_vit_forward.22}
  #allocation0 [shape = 'u32[]', space=smem, size = 0x4, offset = 0x4, fixed_abs, tag = 'smem constant byte address 0x4 - core index']
  #allocation1 [shape = 'u32[144,128]{1,0:T(1,128)}', space=vmem, size = 0x12000, scoped, tag = 'internal scratch']
  #allocation2 [shape = 'bf16[48,32]{1,0:T(16,128)(2,1)}', space=vmem, size = 0x3000, scoped, tag = 'scratch operand']
  %s0 = inlined_call_operand.vmem [shape: f32[48,32], index: 0, kind: input, shape index: {}]
  %s1 = inlined_call_operand.vmem [shape: bf16[32,128], index: 1, kind: input, shape index: {}]
  %s2 = inlined_call_operand.vmem [shape: f32[1,128], index: 2, kind: input, shape index: {}]
  %s3 = inlined_call_operand.vmem [shape: f32[1,32], index: 3, kind: input, shape index: {}]
  %s4 = inlined_call_operand.vmem [shape: f32[1,32], index: 4, kind: input, shape index: {}]
  %s5 = inlined_call_operand.vmem [shape: bf16[48,128], index: 5, kind: output, shape index: {}]
  %s6 = sld [smem:[#allocation0]]
  $region34: #{prompted_vit_forward.22} parent=0
    _
  %s8 = ssub.s32 1, %s6
  %s9 = scalar_select 0, %s8, %s6
  // Predicated region
  $region2: #{prompted_vit_forward.22} parent=0 // pred_check
    _
  $region3: #{prompted_vit_forward.22} parent=0 // pred_check_branch
    %11 = sbr.rel (0) target = $region5
  $region4: #{prompted_vit_forward.22} parent=0 // pred_region
    _
  $region5: #{prompted_vit_forward.22} parent=0 // pred_fallthru
    _
  // Predicated region
  $region6: #{prompted_vit_forward.22} parent=0 // pred_check
    _
  $region7: #{prompted_vit_forward.22} parent=0 // pred_check_branch
    %13 = sbr.rel (0) target = $region9
  $region8: #{prompted_vit_forward.22} parent=0 // pred_region
    _
  $region9: #{prompted_vit_forward.22} parent=0 // pred_fallthru
    _
  // Predicated region
  $region10: #{prompted_vit_forward.22} parent=0 // pred_check
    _
  $region11: #{prompted_vit_forward.22} parent=0 // pred_check_branch
    %15 = sbr.rel (0) target = $region13
  $region12: #{prompted_vit_forward.22} parent=0 // pred_region
    _
  $region13: #{prompted_vit_forward.22} parent=0 // pred_fallthru
    _
  // Predicated region
  $region14: #{prompted_vit_forward.22} parent=0 // pred_check
    _
  $region15: #{prompted_vit_forward.22} parent=0 // pred_check_branch
    %17 = sbr.rel (0) target = $region17
  $region16: #{prompted_vit_forward.22} parent=0 // pred_region
    _
  $region17: #{prompted_vit_forward.22} parent=0 // pred_fallthru
    _
  // Predicated region
  $region18: #{prompted_vit_forward.22} parent=0 // pred_check
    _
  $region19: #{prompted_vit_forward.22} parent=0 // pred_check_branch
    %19 = sbr.rel (0) target = $region21
  $region20: #{prompted_vit_forward.22} parent=0 // pred_region
    _
  $region21: #{prompted_vit_forward.22} parent=0 // pred_fallthru
    _
  %p21 = scmp.eq.s32.totalorder 0, 0
  // Predicated region
  $region22: #{prompted_vit_forward.22} parent=0 // pred_check
    %p22 = pneg %p21
  $region23: #{prompted_vit_forward.22} parent=0 // pred_check_branch
    %24 = sbr.rel (%p22) target = $region25
  $region24: #{prompted_vit_forward.22} parent=0 // pred_region
    %v25 = vld [vmem:[%s0] sm:$0xff]
    %v26 = vld [vmem:[%s0 + $0x8] sm:$0xff]
    %v27 = vld [vmem:[%s0 + $0x10] sm:$0xff]
    %v28 = vld [vmem:[%s0 + $0x18] sm:$0xff]
    %v29 = vld [vmem:[%s0 + $0x20] sm:$0xff]
    %v30 = vld [vmem:[%s0 + $0x28] sm:$0xff]
    %vm31 = vcmask 261120
    %v32 = vsel %vm31, %v25, 0.0
    %33 = vadd.xlane.f32.xlu0 %v32
    %v34 = vpop.xlane.xlu0 %33
    %v35 = vsel %vm31, %v26, 0.0
    %36 = vadd.xlane.f32.xlu0 %v35
    %v37 = vpop.xlane.xlu0 %36
    %v38 = vsel %vm31, %v27, 0.0
    %39 = vadd.xlane.f32.xlu0 %v38
    %v40 = vpop.xlane.xlu0 %39
    %v41 = vsel %vm31, %v28, 0.0
    %42 = vadd.xlane.f32.xlu0 %v41
    %v43 = vpop.xlane.xlu0 %42
    %v44 = vsel %vm31, %v29, 0.0
    %45 = vadd.xlane.f32.xlu0 %v44
    %v46 = vpop.xlane.xlu0 %45
    %v47 = vsel %vm31, %v30, 0.0
    %48 = vadd.xlane.f32.xlu0 %v47
    %v49 = vpop.xlane.xlu0 %48
    %v50 = vrcp.pop 32.0
    %v51 = vmul.f32 %v34, %v50
    %v52 = vmul.f32 %v37, %v50
    %v53 = vmul.f32 %v40, %v50
    %v54 = vmul.f32 %v43, %v50
    %v55 = vmul.f32 %v46, %v50
    %v56 = vmul.f32 %v49, %v50
    %v57 = vsub.f32 %v25, %v51
    %v58 = vsub.f32 %v26, %v52
    %v59 = vsub.f32 %v27, %v53
    %v60 = vsub.f32 %v28, %v54
    %v61 = vsub.f32 %v29, %v55
    %v62 = vsub.f32 %v30, %v56
    %v63 = vmul.f32 %v57, %v57
    %v64 = vmul.f32 %v58, %v58
    %v65 = vmul.f32 %v59, %v59
    %v66 = vmul.f32 %v60, %v60
    %v67 = vmul.f32 %v61, %v61
    %v68 = vmul.f32 %v62, %v62
    %v69 = vsel %vm31, %v63, 0.0
    %70 = vadd.xlane.f32.xlu0 %v69
    %v71 = vpop.xlane.xlu0 %70
    %v72 = vsel %vm31, %v64, 0.0
    %73 = vadd.xlane.f32.xlu0 %v72
    %v74 = vpop.xlane.xlu0 %73
    %v75 = vsel %vm31, %v65, 0.0
    %76 = vadd.xlane.f32.xlu0 %v75
    %v77 = vpop.xlane.xlu0 %76
    %v78 = vsel %vm31, %v66, 0.0
    %79 = vadd.xlane.f32.xlu0 %v78
    %v80 = vpop.xlane.xlu0 %79
    %v81 = vsel %vm31, %v67, 0.0
    %82 = vadd.xlane.f32.xlu0 %v81
    %v83 = vpop.xlane.xlu0 %82
    %v84 = vsel %vm31, %v68, 0.0
    %85 = vadd.xlane.f32.xlu0 %v84
    %v86 = vpop.xlane.xlu0 %85
    %v87 = vmul.f32 %v71, %v50
    %v88 = vmul.f32 %v74, %v50
    %v89 = vmul.f32 %v77, %v50
    %v90 = vmul.f32 %v80, %v50
    %v91 = vmul.f32 %v83, %v50
    %v92 = vmul.f32 %v86, %v50
    %v93 = vadd.f32 %v87, 1e-05
    %v94 = vadd.f32 %v88, 1e-05
    %v95 = vadd.f32 %v89, 1e-05
    %v96 = vadd.f32 %v90, 1e-05
    %v97 = vadd.f32 %v91, 1e-05
    %v98 = vadd.f32 %v92, 1e-05
    %v99 = vrsqrt.pop %v93
    %v100 = vrsqrt.pop %v94
    %v101 = vrsqrt.pop %v95
    %v102 = vrsqrt.pop %v96
    %v103 = vrsqrt.pop %v97
    %v104 = vrsqrt.pop %v98
    %v105 = vmul.f32 %v57, %v99
    %v106 = vmul.f32 %v58, %v100
    %v107 = vmul.f32 %v59, %v101
    %v108 = vmul.f32 %v60, %v102
    %v109 = vmul.f32 %v61, %v103
    %v110 = vmul.f32 %v62, %v104
    %v111 = vld [vmem:[%s3] sm:$0x1]
    %v113 = vlaneseq
    %v114 = vshrl.u32 %v113, 7
    %v115 = vsub.s32 0, %v114
    %v116 = vrot.slane %v111, %v115
    %v118 = vmul.f32 %v105, %v116
    %v119 = vmul.f32 %v106, %v116
    %v120 = vmul.f32 %v107, %v116
    %v121 = vmul.f32 %v108, %v116
    %v122 = vmul.f32 %v109, %v116
    %v123 = vmul.f32 %v110, %v116
    %v124 = vld [vmem:[%s4] sm:$0x1]
    %v126 = vlaneseq
    %v127 = vshrl.u32 %v126, 7
    %v128 = vsub.s32 0, %v127
    %v129 = vrot.slane %v124, %v128
    %v131 = vadd.f32 %v118, %v129
    %v132 = vadd.f32 %v119, %v129
    %v133 = vadd.f32 %v120, %v129
    %v134 = vadd.f32 %v121, %v129
    %v135 = vadd.f32 %v122, %v129
    %v136 = vadd.f32 %v123, %v129
    %v137 = vpack.c.bf16 %v132, %v131
    %v138 = vpack.c.bf16 %v134, %v133
    %v139 = vpack.c.bf16 %v136, %v135
    %140 = vst.msk [vmem:[#allocation2] sm:$0xff] %vm31, %v137
    %141 = vst.msk [vmem:[#allocation2 + $0x8] sm:$0xff] %vm31, %v138
    %142 = vst.msk [vmem:[#allocation2 + $0x10] sm:$0xff] %vm31, %v139
  $region25: #{prompted_vit_forward.22} parent=0 // pred_fallthru
    _
  %v143 = vld [vmem:[#allocation2] sm:$0xff]
  %v144 = vld [vmem:[#allocation2 + $0x8] sm:$0xff]
  %v145 = vld [vmem:[#allocation2 + $0x10] sm:$0xff]
  %v146 = vld [vmem:[%s1] sm:$0xf]
  %v147 = vld [vmem:[%s1 + $0x4] sm:$0xf]
  %v148 = vld [vmem:[%s1 + $0x8] sm:$0xf]
  %v149 = vld [vmem:[%s1 + $0xc] sm:$0xf]
  %v150 = vld [vmem:[%s2] sm:$0x1]
  %v152 = vlaneseq
  %v153 = vshrl.u32 %v152, 7
  %v154 = vsub.s32 0, %v153
  %v155 = vrot.slane %v150, %v154
  %v161 = vunpack.c.l.b16 %v146
  %v162 = vunpack.c.l.b16 %v147
  %v163 = vunpack.c.l.b16 %v148
  %v164 = vunpack.c.l.b16 %v149
  %v165 = vpack.c.b16 %v162, %v161
  %v166 = vpack.c.b16 %v164, %v163
  %vm169 = vcmask 261120
  %v171 = vsel %vm169, %v143, 0
  %v174 = vsel %vm169, %v144, 0
  %v177 = vsel %vm169, %v145, 0
  %179 = vmatprep.subr.bf16.mxu0 0
  %180 = vmatpush1.bf16.msra.mxu0 %v165
  %181 = vmatprep.subr.bf16.mxu0 0
  %182 = vmatpush1.bf16.msra.mxu0 %v166
  %183 = vmatprep.subr.bf16.mxu0 0
  %184 = vmatpush1.bf16.msra.mxu0 0
  %185 = vmatprep.subr.bf16.mxu0 0
  %186 = vmatpush1.bf16.msra.mxu0 0
  %187 = vmatprep.subr.bf16.mxu0 0
  %188 = vmatpush1.bf16.msra.mxu0 0
  %189 = vmatprep.subr.bf16.mxu0 0
  %190 = vmatpush1.bf16.msra.mxu0 0
  %191 = vmatprep.subr.bf16.mxu0 0
  %192 = vmatpush1.bf16.msra.mxu0 0
  %193 = vmatprep.subr.bf16.mxu0 0
  %194 = vmatpush1.bf16.msra.mxu0 0
  %195 = vmatprep.subr.bf16.mxu0 0
  %196 = vmatpush1.bf16.msra.mxu0 0
  %197 = vmatprep.subr.bf16.mxu0 0
  %198 = vmatpush1.bf16.msra.mxu0 0
  %199 = vmatprep.subr.bf16.mxu0 0
  %200 = vmatpush1.bf16.msra.mxu0 0
  %201 = vmatprep.subr.bf16.mxu0 0
  %202 = vmatpush1.bf16.msra.mxu0 0
  %203 = vmatprep.subr.bf16.mxu0 0
  %204 = vmatpush1.bf16.msra.mxu0 0
  %205 = vmatprep.subr.bf16.mxu0 0
  %206 = vmatpush1.bf16.msra.mxu0 0
  %207 = vmatprep.subr.bf16.mxu0 0
  %208 = vmatpush1.bf16.msra.mxu0 0
  %209 = vmatprep.subr.bf16.mxu0 0
  %210 = vmatpush1.bf16.msra.mxu0 0
  %211 = vmatprep.mubr.bf16.mxu0 0
  %212 = vmatmul.mubr.bf16.gmra.mrb[0].mxu0 %v171
  %v213 = vpop.f32.mrb[0].mxu0
  %v214 = vadd.f32 %v155, %v213
  %v215 = vpop.f32.mrb[0].mxu0
  %v216 = vpop.f32.mrb[0].mxu0
  %v217 = vadd.f32 %v155, %v216
  %v218 = vpop.f32.mrb[0].mxu0
  %219 = vmatprep.mubr.bf16.mxu0 0
  %220 = vmatmul.mubr.bf16.gmra.mrb[0].mxu0 %v174
  %v221 = vpop.f32.mrb[0].mxu0
  %v222 = vadd.f32 %v155, %v221
  %v223 = vpop.f32.mrb[0].mxu0
  %v224 = vpop.f32.mrb[0].mxu0
  %v225 = vadd.f32 %v155, %v224
  %v226 = vpop.f32.mrb[0].mxu0
  %227 = vmatprep.mubr.bf16.mxu0 0
  %228 = vmatmul.mubr.bf16.gmra.mrb[0].mxu0 %v177
  %v229 = vpop.f32.mrb[0].mxu0
  %v230 = vadd.f32 %v155, %v229
  %v231 = vpop.f32.mrb[0].mxu0
  %v232 = vpop.f32.mrb[0].mxu0
  %v233 = vadd.f32 %v155, %v232
  %v234 = vpop.f32.mrb[0].mxu0
  %235 = vdwg.mxu0
  %v236 = vmul.f32 %v214, 0.5
  %v237 = vmul.f32 %v217, 0.5
  %v238 = vmul.f32 %v222, 0.5
  %v239 = vmul.f32 %v225, 0.5
  %v240 = vmul.f32 %v230, 0.5
  %v241 = vmul.f32 %v233, 0.5
  %v242 = vmul.f32 %v214, 0.70710677
  %v243 = vmul.f32 %v217, 0.70710677
  %v244 = vmul.f32 %v222, 0.70710677
  %v245 = vmul.f32 %v225, 0.70710677
  %v246 = vmul.f32 %v230, 0.70710677
  %v247 = vmul.f32 %v233, 0.70710677
  %v248 = vand.u32 2147483647, %v242
  %v249 = vand.u32 2147483647, %v243
  %v250 = vand.u32 2147483647, %v244
  %v251 = vand.u32 2147483647, %v245
  %v252 = vand.u32 2147483647, %v246
  %v253 = vand.u32 2147483647, %v247
  %v254 = vmul.f32 %v248, 0.3275911
  %v255 = vmul.f32 %v249, 0.3275911
  %v256 = vmul.f32 %v250, 0.3275911
  %v257 = vmul.f32 %v251, 0.3275911
  %v258 = vmul.f32 %v252, 0.3275911
  %v259 = vmul.f32 %v253, 0.3275911
  %v260 = vadd.f32 %v254, 1.0
  %v261 = vadd.f32 %v255, 1.0
  %v262 = vadd.f32 %v256, 1.0
  %v263 = vadd.f32 %v257, 1.0
  %v264 = vadd.f32 %v258, 1.0
  %v265 = vadd.f32 %v259, 1.0
  %v266 = vrcp.pop %v260
  %v267 = vmul.f32 1.0, %v266
  %v268 = vrcp.pop %v261
  %v269 = vmul.f32 1.0, %v268
  %v270 = vrcp.pop %v262
  %v271 = vmul.f32 1.0, %v270
  %v272 = vrcp.pop %v263
  %v273 = vmul.f32 1.0, %v272
  %v274 = vrcp.pop %v264
  %v275 = vmul.f32 1.0, %v274
  %v276 = vrcp.pop %v265
  %v277 = vmul.f32 1.0, %v276
  %v278 = vmul.f32 %v267, 1.0614054
  %v279 = vmul.f32 %v269, 1.0614054
  %v280 = vmul.f32 %v271, 1.0614054
  %v281 = vmul.f32 %v273, 1.0614054
  %v282 = vmul.f32 %v275, 1.0614054
  %v283 = vmul.f32 %v277, 1.0614054
  %v284 = vadd.f32 %v278, -1.4531521
  %v285 = vadd.f32 %v279, -1.4531521
  %v286 = vadd.f32 %v280, -1.4531521
  %v287 = vadd.f32 %v281, -1.4531521
  %v288 = vadd.f32 %v282, -1.4531521
  %v289 = vadd.f32 %v283, -1.4531521
  %v290 = vmul.f32 %v284, %v267
  %v291 = vmul.f32 %v285, %v269
  %v292 = vmul.f32 %v286, %v271
  %v293 = vmul.f32 %v287, %v273
  %v294 = vmul.f32 %v288, %v275
  %v295 = vmul.f32 %v289, %v277
  %v296 = vadd.f32 %v290, 1.4214138
  %v297 = vadd.f32 %v291, 1.4214138
  %v298 = vadd.f32 %v292, 1.4214138
  %v299 = vadd.f32 %v293, 1.4214138
  %v300 = vadd.f32 %v294, 1.4214138
  %v301 = vadd.f32 %v295, 1.4214138
  %v302 = vmul.f32 %v296, %v267
  %v303 = vmul.f32 %v297, %v269
  %v304 = vmul.f32 %v298, %v271
  %v305 = vmul.f32 %v299, %v273
  %v306 = vmul.f32 %v300, %v275
  %v307 = vmul.f32 %v301, %v277
  %v308 = vadd.f32 %v302, -0.28449672
  %v309 = vadd.f32 %v303, -0.28449672
  %v310 = vadd.f32 %v304, -0.28449672
  %v311 = vadd.f32 %v305, -0.28449672
  %v312 = vadd.f32 %v306, -0.28449672
  %v313 = vadd.f32 %v307, -0.28449672
  %v314 = vmul.f32 %v308, %v267
  %v315 = vmul.f32 %v309, %v269
  %v316 = vmul.f32 %v310, %v271
  %v317 = vmul.f32 %v311, %v273
  %v318 = vmul.f32 %v312, %v275
  %v319 = vmul.f32 %v313, %v277
  %v320 = vadd.f32 %v314, 0.2548296
  %v321 = vadd.f32 %v315, 0.2548296
  %v322 = vadd.f32 %v316, 0.2548296
  %v323 = vadd.f32 %v317, 0.2548296
  %v324 = vadd.f32 %v318, 0.2548296
  %v325 = vadd.f32 %v319, 0.2548296
  %v326 = vmul.f32 %v320, %v267
  %v327 = vmul.f32 %v321, %v269
  %v328 = vmul.f32 %v322, %v271
  %v329 = vmul.f32 %v323, %v273
  %v330 = vmul.f32 %v324, %v275
  %v331 = vmul.f32 %v325, %v277
  %v332 = vsub.f32 0.0, %v248
  %v333 = vsub.f32 0.0, %v249
  %v334 = vsub.f32 0.0, %v250
  %v335 = vsub.f32 0.0, %v251
  %v336 = vsub.f32 0.0, %v252
  %v337 = vsub.f32 0.0, %v253
  %v338 = vmul.f32 %v332, %v248
  %v339 = vmul.f32 %v333, %v249
  %v340 = vmul.f32 %v334, %v250
  %v341 = vmul.f32 %v335, %v251
  %v342 = vmul.f32 %v336, %v252
  %v343 = vmul.f32 %v337, %v253
  %v344 = vmul.f32 %v338, 1.442695
  %v345 = vpow.pop %v344
  %v346 = vmul.f32 %v339, 1.442695
  %v347 = vpow.pop %v346
  %v348 = vmul.f32 %v340, 1.442695
  %v349 = vpow.pop %v348
  %v350 = vmul.f32 %v341, 1.442695
  %v351 = vpow.pop %v350
  %v352 = vmul.f32 %v342, 1.442695
  %v353 = vpow.pop %v352
  %v354 = vmul.f32 %v343, 1.442695
  %v355 = vpow.pop %v354
  %v356 = vmul.f32 %v326, %v345
  %v357 = vmul.f32 %v327, %v347
  %v358 = vmul.f32 %v328, %v349
  %v359 = vmul.f32 %v329, %v351
  %v360 = vmul.f32 %v330, %v353
  %v361 = vmul.f32 %v331, %v355
  %v362 = vsub.f32 1.0, %v356
  %v363 = vsub.f32 1.0, %v357
  %v364 = vsub.f32 1.0, %v358
  %v365 = vsub.f32 1.0, %v359
  %v366 = vsub.f32 1.0, %v360
  %v367 = vsub.f32 1.0, %v361
  %vm368 = vcmp.ge.f32.partialorder %v242, 0.0
  %vm369 = vcmp.ge.f32.partialorder %v243, 0.0
  %vm370 = vcmp.ge.f32.partialorder %v244, 0.0
  %vm371 = vcmp.ge.f32.partialorder %v245, 0.0
  %vm372 = vcmp.ge.f32.partialorder %v246, 0.0
  %vm373 = vcmp.ge.f32.partialorder %v247, 0.0
  %v374 = vsub.f32 0.0, %v362
  %v375 = vsub.f32 0.0, %v363
  %v376 = vsub.f32 0.0, %v364
  %v377 = vsub.f32 0.0, %v365
  %v378 = vsub.f32 0.0, %v366
  %v379 = vsub.f32 0.0, %v367
  %v380 = vsel %vm368, %v362, %v374
  %v381 = vsel %vm369, %v363, %v375
  %v382 = vsel %vm370, %v364, %v376
  %v383 = vsel %vm371, %v365, %v377
  %v384 = vsel %vm372, %v366, %v378
  %v385 = vsel %vm373, %v367, %v379
  %v386 = vadd.f32 %v380, 1.0
  %v387 = vadd.f32 %v381, 1.0
  %v388 = vadd.f32 %v382, 1.0
  %v389 = vadd.f32 %v383, 1.0
  %v390 = vadd.f32 %v384, 1.0
  %v391 = vadd.f32 %v385, 1.0
  %v392 = vmul.f32 %v236, %v386
  %v393 = vmul.f32 %v237, %v387
  %v394 = vmul.f32 %v238, %v388
  %v395 = vmul.f32 %v239, %v389
  %v396 = vmul.f32 %v240, %v390
  %v397 = vmul.f32 %v241, %v391
  %v398 = vpack.c.bf16 %v393, %v392
  %v399 = vpack.c.bf16 %v395, %v394
  %v400 = vpack.c.bf16 %v397, %v396
  %v404 = vunpack.c.l.b16 %v398
  %v405 = vunpack.c.h.b16 %v398
  %v406 = vunpack.c.l.b16 %v399
  %v407 = vunpack.c.h.b16 %v399
  %v408 = vunpack.c.l.b16 %v400
  %v409 = vunpack.c.h.b16 %v400
  %v410 = vpack.c.b16 %v404, %v404
  %v411 = vpack.c.b16 %v405, %v405
  %v412 = vpack.c.b16 %v406, %v406
  %v413 = vpack.c.b16 %v407, %v407
  %v414 = vpack.c.b16 %v408, %v408
  %v415 = vpack.c.b16 %v409, %v409
  %422 = vst [vmem:[%s5] sm:$0xf] %v410
  %423 = vst [vmem:[%s5 + $0x4] sm:$0xf] %v411
  %424 = vst [vmem:[%s5 + $0x8] sm:$0xf] %v412
  %425 = vst [vmem:[%s5 + $0xc] sm:$0xf] %v413
  %426 = vst [vmem:[%s5 + $0x10] sm:$0xf] %v414
  %427 = vst [vmem:[%s5 + $0x14] sm:$0xf] %v415
  // Predicated region
  $region26: #{prompted_vit_forward.22} parent=0 // pred_check
    _
  $region27: #{prompted_vit_forward.22} parent=0 // pred_check_branch
    %429 = sbr.rel (0) target = $region29
  $region28: #{prompted_vit_forward.22} parent=0 // pred_region
    _
  $region29: #{prompted_vit_forward.22} parent=0 // pred_fallthru
    _
  // Predicated region
  $region30: #{prompted_vit_forward.22} parent=0 // pred_check
    _
  $region31: #{prompted_vit_forward.22} parent=0 // pred_check_branch
    %431 = sbr.rel (0) target = $region33
  $region32: #{prompted_vit_forward.22} parent=0 // pred_region
    _
  $region33: #{prompted_vit_forward.22} parent=0 // pred_fallthru
    _

// kernel: prompted_vit_forward.25
$region0: #{prompted_vit_forward.25}
  #allocation0 [shape = 'u32[]', space=smem, size = 0x4, offset = 0x4, fixed_abs, tag = 'smem constant byte address 0x4 - core index']
  #allocation1 [shape = 'u32[144,128]{1,0:T(1,128)}', space=vmem, size = 0x12000, scoped, tag = 'internal scratch']
  #allocation2 [shape = 'bf16[48,32]{1,0:T(16,128)(2,1)}', space=vmem, size = 0x3000, scoped, tag = 'scratch operand']
  %s0 = inlined_call_operand.vmem [shape: f32[48,32], index: 0, kind: input, shape index: {}]
  %s1 = inlined_call_operand.vmem [shape: bf16[32,96], index: 1, kind: input, shape index: {}]
  %s2 = inlined_call_operand.vmem [shape: f32[1,96], index: 2, kind: input, shape index: {}]
  %s3 = inlined_call_operand.vmem [shape: f32[1,32], index: 3, kind: input, shape index: {}]
  %s4 = inlined_call_operand.vmem [shape: f32[1,32], index: 4, kind: input, shape index: {}]
  %s5 = inlined_call_operand.vmem [shape: bf16[48,96], index: 5, kind: output, shape index: {}]
  %s6 = sld [smem:[#allocation0]]
  $region34: #{prompted_vit_forward.25} parent=0
    _
  %s8 = ssub.s32 1, %s6
  %s9 = scalar_select 0, %s8, %s6
  // Predicated region
  $region2: #{prompted_vit_forward.25} parent=0 // pred_check
    _
  $region3: #{prompted_vit_forward.25} parent=0 // pred_check_branch
    %11 = sbr.rel (0) target = $region5
  $region4: #{prompted_vit_forward.25} parent=0 // pred_region
    _
  $region5: #{prompted_vit_forward.25} parent=0 // pred_fallthru
    _
  // Predicated region
  $region6: #{prompted_vit_forward.25} parent=0 // pred_check
    _
  $region7: #{prompted_vit_forward.25} parent=0 // pred_check_branch
    %13 = sbr.rel (0) target = $region9
  $region8: #{prompted_vit_forward.25} parent=0 // pred_region
    _
  $region9: #{prompted_vit_forward.25} parent=0 // pred_fallthru
    _
  // Predicated region
  $region10: #{prompted_vit_forward.25} parent=0 // pred_check
    _
  $region11: #{prompted_vit_forward.25} parent=0 // pred_check_branch
    %15 = sbr.rel (0) target = $region13
  $region12: #{prompted_vit_forward.25} parent=0 // pred_region
    _
  $region13: #{prompted_vit_forward.25} parent=0 // pred_fallthru
    _
  // Predicated region
  $region14: #{prompted_vit_forward.25} parent=0 // pred_check
    _
  $region15: #{prompted_vit_forward.25} parent=0 // pred_check_branch
    %17 = sbr.rel (0) target = $region17
  $region16: #{prompted_vit_forward.25} parent=0 // pred_region
    _
  $region17: #{prompted_vit_forward.25} parent=0 // pred_fallthru
    _
  // Predicated region
  $region18: #{prompted_vit_forward.25} parent=0 // pred_check
    _
  $region19: #{prompted_vit_forward.25} parent=0 // pred_check_branch
    %19 = sbr.rel (0) target = $region21
  $region20: #{prompted_vit_forward.25} parent=0 // pred_region
    _
  $region21: #{prompted_vit_forward.25} parent=0 // pred_fallthru
    _
  %p21 = scmp.eq.s32.totalorder 0, 0
  // Predicated region
  $region22: #{prompted_vit_forward.25} parent=0 // pred_check
    %p22 = pneg %p21
  $region23: #{prompted_vit_forward.25} parent=0 // pred_check_branch
    %24 = sbr.rel (%p22) target = $region25
  $region24: #{prompted_vit_forward.25} parent=0 // pred_region
    %v25 = vld [vmem:[%s0] sm:$0xff]
    %v26 = vld [vmem:[%s0 + $0x8] sm:$0xff]
    %v27 = vld [vmem:[%s0 + $0x10] sm:$0xff]
    %v28 = vld [vmem:[%s0 + $0x18] sm:$0xff]
    %v29 = vld [vmem:[%s0 + $0x20] sm:$0xff]
    %v30 = vld [vmem:[%s0 + $0x28] sm:$0xff]
    %vm31 = vcmask 261120
    %v32 = vsel %vm31, %v25, 0.0
    %33 = vadd.xlane.f32.xlu0 %v32
    %v34 = vpop.xlane.xlu0 %33
    %v35 = vsel %vm31, %v26, 0.0
    %36 = vadd.xlane.f32.xlu0 %v35
    %v37 = vpop.xlane.xlu0 %36
    %v38 = vsel %vm31, %v27, 0.0
    %39 = vadd.xlane.f32.xlu0 %v38
    %v40 = vpop.xlane.xlu0 %39
    %v41 = vsel %vm31, %v28, 0.0
    %42 = vadd.xlane.f32.xlu0 %v41
    %v43 = vpop.xlane.xlu0 %42
    %v44 = vsel %vm31, %v29, 0.0
    %45 = vadd.xlane.f32.xlu0 %v44
    %v46 = vpop.xlane.xlu0 %45
    %v47 = vsel %vm31, %v30, 0.0
    %48 = vadd.xlane.f32.xlu0 %v47
    %v49 = vpop.xlane.xlu0 %48
    %v50 = vrcp.pop 32.0
    %v51 = vmul.f32 %v34, %v50
    %v52 = vmul.f32 %v37, %v50
    %v53 = vmul.f32 %v40, %v50
    %v54 = vmul.f32 %v43, %v50
    %v55 = vmul.f32 %v46, %v50
    %v56 = vmul.f32 %v49, %v50
    %v57 = vsub.f32 %v25, %v51
    %v58 = vsub.f32 %v26, %v52
    %v59 = vsub.f32 %v27, %v53
    %v60 = vsub.f32 %v28, %v54
    %v61 = vsub.f32 %v29, %v55
    %v62 = vsub.f32 %v30, %v56
    %v63 = vmul.f32 %v57, %v57
    %v64 = vmul.f32 %v58, %v58
    %v65 = vmul.f32 %v59, %v59
    %v66 = vmul.f32 %v60, %v60
    %v67 = vmul.f32 %v61, %v61
    %v68 = vmul.f32 %v62, %v62
    %v69 = vsel %vm31, %v63, 0.0
    %70 = vadd.xlane.f32.xlu0 %v69
    %v71 = vpop.xlane.xlu0 %70
    %v72 = vsel %vm31, %v64, 0.0
    %73 = vadd.xlane.f32.xlu0 %v72
    %v74 = vpop.xlane.xlu0 %73
    %v75 = vsel %vm31, %v65, 0.0
    %76 = vadd.xlane.f32.xlu0 %v75
    %v77 = vpop.xlane.xlu0 %76
    %v78 = vsel %vm31, %v66, 0.0
    %79 = vadd.xlane.f32.xlu0 %v78
    %v80 = vpop.xlane.xlu0 %79
    %v81 = vsel %vm31, %v67, 0.0
    %82 = vadd.xlane.f32.xlu0 %v81
    %v83 = vpop.xlane.xlu0 %82
    %v84 = vsel %vm31, %v68, 0.0
    %85 = vadd.xlane.f32.xlu0 %v84
    %v86 = vpop.xlane.xlu0 %85
    %v87 = vmul.f32 %v71, %v50
    %v88 = vmul.f32 %v74, %v50
    %v89 = vmul.f32 %v77, %v50
    %v90 = vmul.f32 %v80, %v50
    %v91 = vmul.f32 %v83, %v50
    %v92 = vmul.f32 %v86, %v50
    %v93 = vadd.f32 %v87, 1e-05
    %v94 = vadd.f32 %v88, 1e-05
    %v95 = vadd.f32 %v89, 1e-05
    %v96 = vadd.f32 %v90, 1e-05
    %v97 = vadd.f32 %v91, 1e-05
    %v98 = vadd.f32 %v92, 1e-05
    %v99 = vrsqrt.pop %v93
    %v100 = vrsqrt.pop %v94
    %v101 = vrsqrt.pop %v95
    %v102 = vrsqrt.pop %v96
    %v103 = vrsqrt.pop %v97
    %v104 = vrsqrt.pop %v98
    %v105 = vmul.f32 %v57, %v99
    %v106 = vmul.f32 %v58, %v100
    %v107 = vmul.f32 %v59, %v101
    %v108 = vmul.f32 %v60, %v102
    %v109 = vmul.f32 %v61, %v103
    %v110 = vmul.f32 %v62, %v104
    %v111 = vld [vmem:[%s3] sm:$0x1]
    %v113 = vlaneseq
    %v114 = vshrl.u32 %v113, 7
    %v115 = vsub.s32 0, %v114
    %v116 = vrot.slane %v111, %v115
    %v118 = vmul.f32 %v105, %v116
    %v119 = vmul.f32 %v106, %v116
    %v120 = vmul.f32 %v107, %v116
    %v121 = vmul.f32 %v108, %v116
    %v122 = vmul.f32 %v109, %v116
    %v123 = vmul.f32 %v110, %v116
    %v124 = vld [vmem:[%s4] sm:$0x1]
    %v126 = vlaneseq
    %v127 = vshrl.u32 %v126, 7
    %v128 = vsub.s32 0, %v127
    %v129 = vrot.slane %v124, %v128
    %v131 = vadd.f32 %v118, %v129
    %v132 = vadd.f32 %v119, %v129
    %v133 = vadd.f32 %v120, %v129
    %v134 = vadd.f32 %v121, %v129
    %v135 = vadd.f32 %v122, %v129
    %v136 = vadd.f32 %v123, %v129
    %v137 = vpack.c.bf16 %v132, %v131
    %v138 = vpack.c.bf16 %v134, %v133
    %v139 = vpack.c.bf16 %v136, %v135
    %140 = vst.msk [vmem:[#allocation2] sm:$0xff] %vm31, %v137
    %141 = vst.msk [vmem:[#allocation2 + $0x8] sm:$0xff] %vm31, %v138
    %142 = vst.msk [vmem:[#allocation2 + $0x10] sm:$0xff] %vm31, %v139
  $region25: #{prompted_vit_forward.25} parent=0 // pred_fallthru
    _
  %v143 = vld [vmem:[#allocation2] sm:$0xff]
  %v144 = vld [vmem:[#allocation2 + $0x8] sm:$0xff]
  %v145 = vld [vmem:[#allocation2 + $0x10] sm:$0xff]
  %v146 = vld [vmem:[%s1] sm:$0xf]
  %v147 = vld [vmem:[%s1 + $0x4] sm:$0xf]
  %v148 = vld [vmem:[%s1 + $0x8] sm:$0xf]
  %v149 = vld [vmem:[%s1 + $0xc] sm:$0xf]
  %v150 = vld [vmem:[%s2] sm:$0x1]
  %v152 = vlaneseq
  %v153 = vshrl.u32 %v152, 7
  %v154 = vsub.s32 0, %v153
  %v155 = vrot.slane %v150, %v154
  %v161 = vunpack.c.l.b16 %v146
  %v162 = vunpack.c.l.b16 %v147
  %v163 = vunpack.c.l.b16 %v148
  %v164 = vunpack.c.l.b16 %v149
  %v165 = vpack.c.b16 %v162, %v161
  %v166 = vpack.c.b16 %v164, %v163
  %vm169 = vcmask 261120
  %v171 = vsel %vm169, %v143, 0
  %v174 = vsel %vm169, %v144, 0
  %v177 = vsel %vm169, %v145, 0
  %179 = vmatprep.subr.bf16.mxu0 0
  %180 = vmatpush1.bf16.msra.mxu0 %v165
  %181 = vmatprep.subr.bf16.mxu0 0
  %182 = vmatpush1.bf16.msra.mxu0 %v166
  %183 = vmatprep.subr.bf16.mxu0 0
  %184 = vmatpush1.bf16.msra.mxu0 0
  %185 = vmatprep.subr.bf16.mxu0 0
  %186 = vmatpush1.bf16.msra.mxu0 0
  %187 = vmatprep.subr.bf16.mxu0 0
  %188 = vmatpush1.bf16.msra.mxu0 0
  %189 = vmatprep.subr.bf16.mxu0 0
  %190 = vmatpush1.bf16.msra.mxu0 0
  %191 = vmatprep.subr.bf16.mxu0 0
  %192 = vmatpush1.bf16.msra.mxu0 0
  %193 = vmatprep.subr.bf16.mxu0 0
  %194 = vmatpush1.bf16.msra.mxu0 0
  %195 = vmatprep.subr.bf16.mxu0 0
  %196 = vmatpush1.bf16.msra.mxu0 0
  %197 = vmatprep.subr.bf16.mxu0 0
  %198 = vmatpush1.bf16.msra.mxu0 0
  %199 = vmatprep.subr.bf16.mxu0 0
  %200 = vmatpush1.bf16.msra.mxu0 0
  %201 = vmatprep.subr.bf16.mxu0 0
  %202 = vmatpush1.bf16.msra.mxu0 0
  %203 = vmatprep.subr.bf16.mxu0 0
  %204 = vmatpush1.bf16.msra.mxu0 0
  %205 = vmatprep.subr.bf16.mxu0 0
  %206 = vmatpush1.bf16.msra.mxu0 0
  %207 = vmatprep.subr.bf16.mxu0 0
  %208 = vmatpush1.bf16.msra.mxu0 0
  %209 = vmatprep.subr.bf16.mxu0 0
  %210 = vmatpush1.bf16.msra.mxu0 0
  %211 = vmatprep.mubr.bf16.mxu0 0
  %212 = vmatmul.mubr.bf16.gmra.mrb[0].mxu0 %v171
  %v213 = vpop.f32.mrb[0].mxu0
  %v214 = vadd.f32 %v155, %v213
  %v215 = vpop.f32.mrb[0].mxu0
  %v216 = vpop.f32.mrb[0].mxu0
  %v217 = vadd.f32 %v155, %v216
  %v218 = vpop.f32.mrb[0].mxu0
  %219 = vmatprep.mubr.bf16.mxu0 0
  %220 = vmatmul.mubr.bf16.gmra.mrb[0].mxu0 %v174
  %v221 = vpop.f32.mrb[0].mxu0
  %v222 = vadd.f32 %v155, %v221
  %v223 = vpop.f32.mrb[0].mxu0
  %v224 = vpop.f32.mrb[0].mxu0
  %v225 = vadd.f32 %v155, %v224
  %v226 = vpop.f32.mrb[0].mxu0
  %227 = vmatprep.mubr.bf16.mxu0 0
  %228 = vmatmul.mubr.bf16.gmra.mrb[0].mxu0 %v177
  %v229 = vpop.f32.mrb[0].mxu0
  %v230 = vadd.f32 %v155, %v229
  %v231 = vpop.f32.mrb[0].mxu0
  %v232 = vpop.f32.mrb[0].mxu0
  %v233 = vadd.f32 %v155, %v232
  %v234 = vpop.f32.mrb[0].mxu0
  %235 = vdwg.mxu0
  %v236 = vpack.c.bf16 %v217, %v214
  %v237 = vpack.c.bf16 %v225, %v222
  %v238 = vpack.c.bf16 %v233, %v230
  %v242 = vunpack.c.l.b16 %v236
  %v243 = vunpack.c.h.b16 %v236
  %v244 = vunpack.c.l.b16 %v237
  %v245 = vunpack.c.h.b16 %v237
  %v246 = vunpack.c.l.b16 %v238
  %v247 = vunpack.c.h.b16 %v238
  %v248 = vpack.c.b16 %v242, %v242
  %v249 = vpack.c.b16 %v243, %v243
  %v250 = vpack.c.b16 %v244, %v244
  %v251 = vpack.c.b16 %v245, %v245
  %v252 = vpack.c.b16 %v246, %v246
  %v253 = vpack.c.b16 %v247, %v247
  %vm260 = vcmask 781312
  %261 = vst.msk [vmem:[%s5] sm:$0xf] %vm260, %v248
  %262 = vst.msk [vmem:[%s5 + $0x4] sm:$0xf] %vm260, %v249
  %263 = vst.msk [vmem:[%s5 + $0x8] sm:$0xf] %vm260, %v250
  %264 = vst.msk [vmem:[%s5 + $0xc] sm:$0xf] %vm260, %v251
  %265 = vst.msk [vmem:[%s5 + $0x10] sm:$0xf] %vm260, %v252
  %266 = vst.msk [vmem:[%s5 + $0x14] sm:$0xf] %vm260, %v253
  // Predicated region
  $region26: #{prompted_vit_forward.25} parent=0 // pred_check
    _
  $region27: #{prompted_vit_forward.25} parent=0 // pred_check_branch
    %268 = sbr.rel (0) target = $region29
  $region28: #{prompted_vit_forward.25} parent=0 // pred_region
    _
  $region29: #{prompted_vit_forward.25} parent=0 // pred_fallthru
    _
  // Predicated region
  $region30: #{prompted_vit_forward.25} parent=0 // pred_check
    _
  $region31: #{prompted_vit_forward.25} parent=0 // pred_check_branch
    %270 = sbr.rel (0) target = $region33
  $region32: #{prompted_vit_forward.25} parent=0 // pred_region
    _
  $region33: #{prompted_vit_forward.25} parent=0 // pred_fallthru
    _

// kernel: prompted_vit_forward.26
$region0: #{prompted_vit_forward.26}
  #allocation0 [shape = 'u32[]', space=smem, size = 0x4, offset = 0x4, fixed_abs, tag = 'smem constant byte address 0x4 - core index']
  #allocation1 [shape = 'u32[144,128]{1,0:T(1,128)}', space=vmem, size = 0x12000, scoped, tag = 'internal scratch']
  %s0 = inlined_call_operand.vmem [shape: bf16[2,24,96], index: 0, kind: input, shape index: {}]
  %s1 = inlined_call_operand.vmem [shape: bf16[32,32], index: 1, kind: input, shape index: {}]
  %s2 = inlined_call_operand.vmem [shape: f32[1,32], index: 2, kind: input, shape index: {}]
  %s3 = inlined_call_operand.vmem [shape: f32[2,24,32], index: 3, kind: input, shape index: {}]
  %s4 = inlined_call_operand.vmem [shape: f32[2,24,32], index: 4, kind: output, shape index: {}]
  %s5 = sld [smem:[#allocation0]]
  $region49: #{prompted_vit_forward.26} parent=0
    _
  %s7 = ssub.s32 1, %s5
  %s8 = scalar_select 0, %s7, %s5
  loop: start=0, step=1, limit=4
  $region2: #{prompted_vit_forward.26} parent=0 // loop_pre_header
    _
  $region3: #{prompted_vit_forward.26} parent=0 // loop_header
    %s10 = sphi 0, %s14
    %p11 = scmp.ge.s32.totalorder %s10, 4
    %s20 = sphi 0, %s22
    %s23 = sphi 0, %s20
    %s24 = sphi 0, %s23
    %s40 = sphi 0, %s24
    %s44 = sphi 0, %s44
    %s46 = sphi 0, %s44
    %s47 = sphi 0, %s46
    %s61 = sphi 0, %s47
    %s65 = sphi 0, %s65
    %s67 = sphi 0, %s65
    %s68 = sphi 0, %s67
    %s82 = sphi 0, %s68
    %s88 = sphi 0, %s90
    %s91 = sphi 0, %s88
    %s92 = sphi 0, %s91
    %s108 = sphi 0, %s92
    %s114 = sphi 0, %s116
    %s117 = sphi 0, %s114
    %s118 = sphi 0, %s117
    %s134 = sphi 0, %s118
  $region4: #{prompted_vit_forward.26} parent=0 // loop_header_branch
    %13 = sbr.rel (%p11) target = $region8
  $region5: #{prompted_vit_forward.26} parent=0 // loop_body
    %s15 = ssub.s32 %s10, 1
    %s16 = ssub.s32 %s10, 2
    %s17 = sadd.s32 %s10, 1
    %s18 = ssub.s32 %s10, %s17
    %p19 = scmp.eq.s32.totalorder %s18, 0
    %s21 = sadd.s32 %s20, 1
    %s22 = scalar_select %p19, %s20, %s21
    %p25 = pneg %p19
    %p26 = scmp.eq.s32.totalorder %s10, 1
    %p27 = por %p25, %p26
    %p28 = scmp.ne.s32.totalorder %s20, %s23
    %p29 = scmp.eq.s32.totalorder %s10, 0
    %p30 = por %p28, %p29
    %p31 = scmp.ne.s32.totalorder %s20, %s23
    %p32 = scmp.eq.s32.totalorder %s15, 1
    %p33 = por %p31, %p32
    %p34 = scmp.ne.s32.totalorder %s23, %s24
    %p35 = scmp.eq.s32.totalorder %s15, 0
    %p36 = por %p34, %p35
    %p37 = scmp.ne.s32.totalorder %s23, %s24
    %p38 = scmp.eq.s32.totalorder %s16, 1
    %p39 = por %p37, %p38
    %p41 = scmp.ne.s32.totalorder %s24, %s40
    %p42 = scmp.eq.s32.totalorder %s16, 0
    %p43 = por %p41, %p42
    %s45 = sadd.s32 %s44, 1
    %p48 = scmp.eq.s32.totalorder %s10, 1
    %p49 = scmp.ne.s32.totalorder %s44, %s46
    %p50 = scmp.eq.s32.totalorder %s10, 0
    %p51 = por %p49, %p50
    %p52 = scmp.ne.s32.totalorder %s44, %s46
    %p53 = scmp.eq.s32.totalorder %s15, 1
    %p54 = por %p52, %p53
    %p55 = scmp.ne.s32.totalorder %s46, %s47
    %p56 = scmp.eq.s32.totalorder %s15, 0
    %p57 = por %p55, %p56
    %p58 = scmp.ne.s32.totalorder %s46, %s47
    %p59 = scmp.eq.s32.totalorder %s16, 1
    %p60 = por %p58, %p59
    %p62 = scmp.ne.s32.totalorder %s47, %s61
    %p63 = scmp.eq.s32.totalorder %s16, 0
    %p64 = por %p62, %p63
    %s66 = sadd.s32 %s65, 1
    %p69 = scmp.eq.s32.totalorder %s10, 1
    %p70 = scmp.ne.s32.totalorder %s65, %s67
    %p71 = scmp.eq.s32.totalorder %s10, 0
    %p72 = por %p70, %p71
    %p73 = scmp.ne.s32.totalorder %s65, %s67
    %p74 = scmp.eq.s32.totalorder %s15, 1
    %p75 = por %p73, %p74
    %p76 = scmp.ne.s32.totalorder %s67, %s68
    %p77 = scmp.eq.s32.totalorder %s15, 0
    %p78 = por %p76, %p77
    %p79 = scmp.ne.s32.totalorder %s67, %s68
    %p80 = scmp.eq.s32.totalorder %s16, 1
    %p81 = por %p79, %p80
    %p83 = scmp.ne.s32.totalorder %s68, %s82
    %p84 = scmp.eq.s32.totalorder %s16, 0
    %p85 = por %p83, %p84
    %s86 = ssub.s32 %s10, %s17
    %p87 = scmp.eq.s32.totalorder %s86, 0
    %s89 = sadd.s32 %s88, 1
    %s90 = scalar_select %p87, %s88, %s89
    %p93 = pneg %p87
    %p94 = scmp.eq.s32.totalorder %s10, 1
    %p95 = por %p93, %p94
    %p96 = scmp.ne.s32.totalorder %s88, %s91
    %p97 = scmp.eq.s32.totalorder %s10, 0
    %p98 = por %p96, %p97
    %p99 = scmp.ne.s32.totalorder %s88, %s91
    %p100 = scmp.eq.s32.totalorder %s15, 1
    %p101 = por %p99, %p100
    %p102 = scmp.ne.s32.totalorder %s91, %s92
    %p103 = scmp.eq.s32.totalorder %s15, 0
    %p104 = por %p102, %p103
    %p105 = scmp.ne.s32.totalorder %s91, %s92
    %p106 = scmp.eq.s32.totalorder %s16, 1
    %p107 = por %p105, %p106
    %p109 = scmp.ne.s32.totalorder %s92, %s108
    %p110 = scmp.eq.s32.totalorder %s16, 0
    %p111 = por %p109, %p110
    %s112 = ssub.s32 %s10, %s17
    %p113 = scmp.eq.s32.totalorder %s112, 0
    %s115 = sadd.s32 %s114, 1
    %s116 = scalar_select %p113, %s114, %s115
    %p119 = pneg %p113
    %p120 = scmp.eq.s32.totalorder %s10, 1
    %p121 = por %p119, %p120
    %p122 = scmp.ne.s32.totalorder %s114, %s117
    %p123 = scmp.eq.s32.totalorder %s10, 0
    %p124 = por %p122, %p123
    %p125 = scmp.ne.s32.totalorder %s114, %s117
    %p126 = scmp.eq.s32.totalorder %s15, 1
    %p127 = por %p125, %p126
    %p128 = scmp.ne.s32.totalorder %s117, %s118
    %p129 = scmp.eq.s32.totalorder %s15, 0
    %p130 = por %p128, %p129
    %p131 = scmp.ne.s32.totalorder %s117, %s118
    %p132 = scmp.eq.s32.totalorder %s16, 1
    %p133 = por %p131, %p132
    %p135 = scmp.ne.s32.totalorder %s118, %s134
    %p136 = scmp.eq.s32.totalorder %s16, 0
    %p137 = por %p135, %p136
    %p138 = scmp.le.s32.totalorder 1, %s10
    %p139 = scmp.lt.s32.totalorder %s10, 3
    %p140 = pnand %p138, %p139
    %p141 = pneg %p140
    // Predicated region
    $region9: #{prompted_vit_forward.26} parent=5 // pred_check
      _
    $region10: #{prompted_vit_forward.26} parent=5 // pred_check_branch
      %143 = sbr.rel (%p140) target = $region12
    $region11: #{prompted_vit_forward.26} parent=5 // pred_region
      %s144 = ssub.s32 %s10, 1
      // Predicated region
      $region13: #{prompted_vit_forward.26} parent=11 // pred_check
        %p145 = pneg %p57
      $region14: #{prompted_vit_forward.26} parent=11 // pred_check_branch
        %147 = sbr.rel (%p145) target = $region16
      $region15: #{prompted_vit_forward.26} parent=11 // pred_region
        _
      $region16: #{prompted_vit_forward.26} parent=11 // pred_fallthru
        _
      // Predicated region
      $region17: #{prompted_vit_forward.26} parent=11 // pred_check
        %p148 = pneg %p78
      $region18: #{prompted_vit_forward.26} parent=11 // pred_check_branch
        %150 = sbr.rel (%p148) target = $region20
      $region19: #{prompted_vit_forward.26} parent=11 // pred_region
        _
      $region20: #{prompted_vit_forward.26} parent=11 // pred_fallthru
        _
    $region12: #{prompted_vit_forward.26} parent=5 // pred_fallthru
      _
    %p151 = scmp.lt.s32.totalorder %s10, 2
    // Predicated region
    $region21: #{prompted_vit_forward.26} parent=5 // pred_check
      %p152 = pneg %p151
    $region22: #{prompted_vit_forward.26} parent=5 // pred_check_branch
      %154 = sbr.rel (%p152) target = $region24
    $region23: #{prompted_vit_forward.26} parent=5 // pred_region
      // Predicated region
      $region25: #{prompted_vit_forward.26} parent=23 // pred_check
        %p155 = pneg %p30
      $region26: #{prompted_vit_forward.26} parent=23 // pred_check_branch
        %157 = sbr.rel (%p155) target = $region28
      $region27: #{prompted_vit_forward.26} parent=23 // pred_region
        %p158 = scmp.lt.s32.totalorder %s10, 1
        %s159 = scalar_select %p158, %s10, 1
        %s160 = smul.addr %s159, 3
        %s161 = smul.addr %s160, 4
        %s162 = scalar_lea.vmem %s0, %s161
      $region28: #{prompted_vit_forward.26} parent=23 // pred_fallthru
        _
      // Predicated region
      $region29: #{prompted_vit_forward.26} parent=23 // pred_check
        %p163 = pneg %p98
      $region30: #{prompted_vit_forward.26} parent=23 // pred_check_branch
        %165 = sbr.rel (%p163) target = $region32
      $region31: #{prompted_vit_forward.26} parent=23 // pred_region
        %p166 = scmp.lt.s32.totalorder %s10, 1
        %s167 = scalar_select %p166, %s10, 1
        %s168 = smul.addr %s167, 3
        %s169 = smul.addr %s168, 8
        %s170 = scalar_lea.vmem %s3, %s169
      $region32: #{prompted_vit_forward.26} parent=23 // pred_fallthru
        _
    $region24: #{prompted_vit_forward.26} parent=5 // pred_fallthru
      _
    %p171 = scmp.le.s32.totalorder 1, %s10
    %p172 = scmp.lt.s32.totalorder %s10, 3
    %p173 = pnand %p171, %p172
    %p174 = pneg %p173
    // Predicated region
    $region33: #{prompted_vit_forward.26} parent=5 // pred_check
      _
    $region34: #{prompted_vit_forward.26} parent=5 // pred_check_branch
      %176 = sbr.rel (%p173) target = $region36
    $region35: #{prompted_vit_forward.26} parent=5 // pred_region
      %s177 = ssub.s32 %s10, 1
      %p178 = scmp.lt.s32.totalorder %s15, 1
      %s179 = scalar_select %p178, %s15, 1
      %s180 = smul.addr %s179, 3
      %s181 = smul.addr %s180, 4
      %s182 = scalar_lea.vmem %s0, %s181
      %p183 = pneg %p36
      %p184 = pneg %p33
      %p185 = pneg %p57
      %p186 = pneg %p54
      %p187 = pneg %p78
      %p188 = pneg %p75
      %p189 = scmp.lt.s32.totalorder %s15, 1
      %s190 = scalar_select %p189, %s15, 1
      %s191 = smul.addr %s190, 3
      %s192 = smul.addr %s191, 8
      %s193 = scalar_lea.vmem %s3, %s192
      %p194 = pneg %p104
      %p195 = pneg %p101
      %p196 = pneg %p130
      %p197 = pneg %p127
      %p198 = scmp.lt.s32.totalorder %s15, 1
      %s199 = scalar_select %p198, %s15, 1
      %s200 = smul.addr %s199, 3
      %s201 = smul.addr %s200, 8
      %s202 = scalar_lea.vmem %s4, %s201
      %p203 = scmp.lt.s32.totalorder %s15, 1
      %s204 = scalar_select %p203, %s15, 1
      %s205 = smul.addr %s204, 3
      %s206 = smul.addr %s205, 4
      %s207 = scalar_lea.vmem %s0, %s206
      %p208 = scmp.lt.s32.totalorder %s15, 1
      %s209 = scalar_select %p208, %s15, 1
      %s210 = smul.addr %s209, 3
      %s211 = smul.addr %s210, 8
      %s212 = scalar_lea.vmem %s3, %s211
      %p213 = scmp.lt.s32.totalorder %s15, 1
      %s214 = scalar_select %p213, %s15, 1
      %s215 = smul.addr %s214, 3
      %s216 = smul.addr %s215, 8
      %s217 = scalar_lea.vmem %s4, %s216
      %v219 = vlaneseq
      %v220 = vand.u32 %v219, 127
      %vm221 = vcmp.lt.s32.totalorder %v220, 17
      %v222 = vsel %vm221, 0.0, -1e+30
      %v223 = vld [vmem:[%s207] sm:$0xf]
      %v224 = vld [vmem:[%s207 + $0x4] sm:$0xf]
      %v225 = vld [vmem:[%s207 + $0x8] sm:$0xf]
      %v229 = vunpack.c.l.b16 %v223
      %v230 = vunpack.c.l.b16 %v224
      %v231 = vunpack.c.l.b16 %v225
      %v232 = vpack.c.b16 %v230, %v229
      %v233 = vpack.c.b16 %v231, %v231
      %234 = vrot.lane.b32.xlu0 %v232, 96
      %v235 = vpop.permute.xlu0 %234
      %236 = vrot.lane.b32.xlu0 %v233, 96
      %v237 = vpop.permute.xlu0 %236
      %vm238 = vcmask 64512
      %v240 = vsel %vm238, %v232, 0
      %v243 = vsel %vm238, %v233, 0
      %v246 = vsel %vm238, %v235, 0
      %v249 = vsel %vm238, %v237, 0
      %251 = vmatprep.subr.bf16.mxu0 0
      %252 = vmatpush1.bf16.xpose.msra.mxu0 %v246
      %253 = vmatprep.subr.bf16.mxu0 0
      %254 = vmatpush1.bf16.xpose.msra.mxu0 %v249
      %255 = vmatprep.subr.bf16.mxu0 0
      %256 = vmatpush1.bf16.xpose.msra.mxu0 0
      %257 = vmatprep.subr.bf16.mxu0 0
      %258 = vmatpush1.bf16.xpose.msra.mxu0 0
      %259 = vmatprep.subr.bf16.mxu0 0
      %260 = vmatpush1.bf16.xpose.msra.mxu0 0
      %261 = vmatprep.subr.bf16.mxu0 0
      %262 = vmatpush1.bf16.xpose.msra.mxu0 0
      %263 = vmatprep.subr.bf16.mxu0 0
      %264 = vmatpush1.bf16.xpose.msra.mxu0 0
      %265 = vmatprep.subr.bf16.mxu0 0
      %266 = vmatpush1.bf16.xpose.msra.mxu0 0
      %267 = vmatprep.subr.bf16.mxu0 0
      %268 = vmatpush1.bf16.xpose.msra.mxu0 0
      %269 = vmatprep.subr.bf16.mxu0 0
      %270 = vmatpush1.bf16.xpose.msra.mxu0 0
      %271 = vmatprep.subr.bf16.mxu0 0
      %272 = vmatpush1.bf16.xpose.msra.mxu0 0
      %273 = vmatprep.subr.bf16.mxu0 0
      %274 = vmatpush1.bf16.xpose.msra.mxu0 0
      %275 = vmatprep.subr.bf16.mxu0 0
      %276 = vmatpush1.bf16.xpose.msra.mxu0 0
      %277 = vmatprep.subr.bf16.mxu0 0
      %278 = vmatpush1.bf16.xpose.msra.mxu0 0
      %279 = vmatprep.subr.bf16.mxu0 0
      %280 = vmatpush1.bf16.xpose.msra.mxu0 0
      %281 = vmatprep.subr.bf16.mxu0 0
      %282 = vmatpush1.bf16.xpose.msra.mxu0 0
      %283 = vmatprep.mubr.bf16.mxu0 0
      %284 = vmatmul.mubr.bf16.gmra.mrb[0].mxu0 %v240
      %v285 = vpop.f32.mrb[0].mxu0
      %v286 = vadd.f32 %v222, %v285
      %v287 = vpop.f32.mrb[0].mxu0
      %v288 = vpop.f32.mrb[0].mxu0
      %v289 = vadd.f32 %v222, %v288
      %v290 = vpop.f32.mrb[0].mxu0
      %291 = vmatprep.mubr.bf16.mxu0 0
      %292 = vmatmul.mubr.bf16.gmra.mrb[0].mxu0 %v243
      %v293 = vpop.f32.mrb[0].mxu0
      %v294 = vadd.f32 %v222, %v293
      %v295 = vpop.f32.mrb[0].mxu0
      %v296 = vpop.f32.mrb[0].mxu0
      %v297 = vpop.f32.mrb[0].mxu0
      %298 = vdwg.mxu0
      %vm299 = vcmask 195584
      %v300 = vsel %vm299, %v286, -inf
      %301 = vmax.xlane.f32.xlu0 %v300
      %v302 = vpop.xlane.xlu0 %301
      %v303 = vsel %vm299, %v289, -inf
      %304 = vmax.xlane.f32.xlu0 %v303
      %v305 = vpop.xlane.xlu0 %304
      %v306 = vsel %vm299, %v294, -inf
      %307 = vmax.xlane.f32.xlu0 %v306
      %v308 = vpop.xlane.xlu0 %307
      %v309 = vsub.f32 %v286, %v302
      %v310 = vsub.f32 %v289, %v305
      %v311 = vsub.f32 %v294, %v308
      %v312 = vmul.f32 %v309, 1.442695
      %v313 = vpow.pop %v312
      %v314 = vmul.f32 %v310, 1.442695
      %v315 = vpow.pop %v314
      %v316 = vmul.f32 %v311, 1.442695
      %v317 = vpow.pop %v316
      %v318 = vsel %vm299, %v313, 0.0
      %319 = vadd.xlane.f32.xlu0 %v318
      %v320 = vpop.xlane.xlu0 %319
      %v321 = vsel %vm299, %v315, 0.0
      %322 = vadd.xlane.f32.xlu0 %v321
      %v323 = vpop.xlane.xlu0 %322
      %v324 = vsel %vm299, %v317, 0.0
      %325 = vadd.xlane.f32.xlu0 %v324
      %v326 = vpop.xlane.xlu0 %325
      %v327 = vrcp.pop %v320
      %v328 = vrcp.pop %v323
      %v329 = vrcp.pop %v326
      %v330 = vpack.c.bf16 %v315, %v313
      %v331 = vpack.c.bf16 %v317, %v317
      %332 = vrot.lane.b32.xlu0 %v232, 64
      %v333 = vpop.permute.xlu0 %332
      %334 = vrot.lane.b32.xlu0 %v233, 64
      %v335 = vpop.permute.xlu0 %334
      %v338 = vsel %vm299, %v330, 0
      %v341 = vsel %vm299, %v331, 0
      %vm343 = vcmask 1043456
      %v345 = vsel %vm343, %v335, 0
      %347 = vmatprep.subr.bf16.mxu0 0
      %348 = vmatpush1.bf16.msra.mxu0 %v333
      %349 = vmatprep.subr.bf16.mxu0 0
      %350 = vmatpush1.bf16.msra.mxu0 %v345
      %351 = vmatprep.subr.bf16.mxu0 0
      %352 = vmatpush1.bf16.msra.mxu0 0
      %353 = vmatprep.subr.bf16.mxu0 0
      %354 = vmatpush1.bf16.msra.mxu0 0
      %355 = vmatprep.subr.bf16.mxu0 0
      %356 = vmatpush1.bf16.msra.mxu0 0
      %357 = vmatprep.subr.bf16.mxu0 0
      %358 = vmatpush1.bf16.msra.mxu0 0
      %359 = vmatprep.subr.bf16.mxu0 0
      %360 = vmatpush1.bf16.msra.mxu0 0
      %361 = vmatprep.subr.bf16.mxu0 0
      %362 = vmatpush1.bf16.msra.mxu0 0
      %363 = vmatprep.subr.bf16.mxu0 0
      %364 = vmatpush1.bf16.msra.mxu0 0
      %365 = vmatprep.subr.bf16.mxu0 0
      %366 = vmatpush1.bf16.msra.mxu0 0
      %367 = vmatprep.subr.bf16.mxu0 0
      %368 = vmatpush1.bf16.msra.mxu0 0
      %369 = vmatprep.subr.bf16.mxu0 0
      %370 = vmatpush1.bf16.msra.mxu0 0
      %371 = vmatprep.subr.bf16.mxu0 0
      %372 = vmatpush1.bf16.msra.mxu0 0
      %373 = vmatprep.subr.bf16.mxu0 0
      %374 = vmatpush1.bf16.msra.mxu0 0
      %375 = vmatprep.subr.bf16.mxu0 0
      %376 = vmatpush1.bf16.msra.mxu0 0
      %377 = vmatprep.subr.bf16.mxu0 0
      %378 = vmatpush1.bf16.msra.mxu0 0
      %379 = vmatprep.mubr.bf16.mxu0 0
      %380 = vmatmul.mubr.bf16.gmra.mrb[0].mxu0 %v338
      %v381 = vpop.f32.mrb[0].mxu0
      %v382 = vadd.f32 0.0, %v381
      %v383 = vpop.f32.mrb[0].mxu0
      %v384 = vpop.f32.mrb[0].mxu0
      %v385 = vadd.f32 0.0, %v384
      %v386 = vpop.f32.mrb[0].mxu0
      %387 = vmatprep.mubr.bf16.mxu0 0
      %388 = vmatmul.mubr.bf16.gmra.mrb[0].mxu0 %v341
      %v389 = vpop.f32.mrb[0].mxu0
      %v390 = vadd.f32 0.0, %v389
      %v391 = vpop.f32.mrb[0].mxu0
      %v392 = vpop.f32.mrb[0].mxu0
      %v393 = vpop.f32.mrb[0].mxu0
      %394 = vdwg.mxu0
      %v395 = vmul.f32 %v382, %v327
      %v396 = vmul.f32 %v385, %v328
      %v397 = vmul.f32 %v390, %v329
      %v398 = vpack.c.bf16 %v396, %v395
      %v399 = vpack.c.bf16 %v397, %v397
      %v400 = vld [vmem:[%s1] sm:$0xf]
      %401 = vrot.lane.b32.xlu0 %v232, 120
      %v402 = vpop.permute.xlu0 %401
      %403 = vrot.lane.b32.xlu0 %v233, 120
      %v404 = vpop.permute.xlu0 %403
      %405 = vrot.lane.b32.xlu0 %v232, 88
      %v406 = vpop.permute.xlu0 %405
      %407 = vrot.lane.b32.xlu0 %v233, 88
      %v408 = vpop.permute.xlu0 %407
      %v410 = vsel %vm238, %v402, 0
      %v413 = vsel %vm238, %v404, 0
      %v416 = vsel %vm238, %v406, 0
      %v419 = vsel %vm238, %v408, 0
      %421 = vmatprep.subr.bf16.mxu0 0
      %422 = vmatpush1.bf16.xpose.msra.mxu0 %v416
      %423 = vmatprep.subr.bf16.mxu0 0
      %424 = vmatpush1.bf16.xpose.msra.mxu0 %v419
      %425 = vmatprep.subr.bf16.mxu0 0
      %426 = vmatpush1.bf16.xpose.msra.mxu0 0
      %427 = vmatprep.subr.bf16.mxu0 0
      %428 = vmatpush1.bf16.xpose.msra.mxu0 0
      %429 = vmatprep.subr.bf16.mxu0 0
      %430 = vmatpush1.bf16.xpose.msra.mxu0 0
      %431 = vmatprep.subr.bf16.mxu0 0
      %432 = vmatpush1.bf16.xpose.msra.mxu0 0
      %433 = vmatprep.subr.bf16.mxu0 0
      %434 = vmatpush1.bf16.xpose.msra.mxu0 0
      %435 = vmatprep.subr.bf16.mxu0 0
      %436 = vmatpush1.bf16.xpose.msra.mxu0 0
      %437 = vmatprep.subr.bf16.mxu0 0
      %438 = vmatpush1.bf16.xpose.msra.mxu0 0
      %439 = vmatprep.subr.bf16.mxu0 0
      %440 = vmatpush1.bf16.xpose.msra.mxu0 0
      %441 = vmatprep.subr.bf16.mxu0 0
      %442 = vmatpush1.bf16.xpose.msra.mxu0 0
      %443 = vmatprep.subr.bf16.mxu0 0
      %444 = vmatpush1.bf16.xpose.msra.mxu0 0
      %445 = vmatprep.subr.bf16.mxu0 0
      %446 = vmatpush1.bf16.xpose.msra.mxu0 0
      %447 = vmatprep.subr.bf16.mxu0 0
      %448 = vmatpush1.bf16.xpose.msra.mxu0 0
      %449 = vmatprep.subr.bf16.mxu0 0
      %450 = vmatpush1.bf16.xpose.msra.mxu0 0
      %451 = vmatprep.subr.bf16.mxu0 0
      %452 = vmatpush1.bf16.xpose.msra.mxu0 0
      %453 = vmatprep.mubr.bf16.mxu0 0
      %454 = vmatmul.mubr.bf16.gmra.mrb[0].mxu0 %v410
      %v455 = vpop.f32.mrb[0].mxu0
      %v456 = vadd.f32 %v222, %v455
      %v457 = vpop.f32.mrb[0].mxu0
      %v458 = vpop.f32.mrb[0].mxu0
      %v459 = vadd.f32 %v222, %v458
      %v460 = vpop.f32.mrb[0].mxu0
      %461 = vmatprep.mubr.bf16.mxu0 0
      %462 = vmatmul.mubr.bf16.gmra.mrb[0].mxu0 %v413
      %v463 = vpop.f32.mrb[0].mxu0
      %v464 = vadd.f32 %v222, %v463
      %v465 = vpop.f32.mrb[0].mxu0
      %v466 = vpop.f32.mrb[0].mxu0
      %v467 = vpop.f32.mrb[0].mxu0
      %468 = vdwg.mxu0
      %v469 = vsel %vm299, %v456, -inf
      %470 = vmax.xlane.f32.xlu0 %v469
      %v471 = vpop.xlane.xlu0 %470
      %v472 = vsel %vm299, %v459, -inf
      %473 = vmax.xlane.f32.xlu0 %v472
      %v474 = vpop.xlane.xlu0 %473
      %v475 = vsel %vm299, %v464, -inf
      %476 = vmax.xlane.f32.xlu0 %v475
      %v477 = vpop.xlane.xlu0 %476
      %v478 = vsub.f32 %v456, %v471
      %v479 = vsub.f32 %v459, %v474
      %v480 = vsub.f32 %v464, %v477
      %v481 = vmul.f32 %v478, 1.442695
      %v482 = vpow.pop %v481
      %v483 = vmul.f32 %v479, 1.442695
      %v484 = vpow.pop %v483
      %v485 = vmul.f32 %v480, 1.442695
      %v486 = vpow.pop %v485
      %v487 = vsel %vm299, %v482, 0.0
      %488 = vadd.xlane.f32.xlu0 %v487
      %v489 = vpop.xlane.xlu0 %488
      %v490 = vsel %vm299, %v484, 0.0
      %491 = vadd.xlane.f32.xlu0 %v490
      %v492 = vpop.xlane.xlu0 %491
      %v493 = vsel %vm299, %v486, 0.0
      %494 = vadd.xlane.f32.xlu0 %v493
      %v495 = vpop.xlane.xlu0 %494
      %v496 = vrcp.pop %v489
      %v497 = vrcp.pop %v492
      %v498 = vrcp.pop %v495
      %v499 = vpack.c.bf16 %v484, %v482
      %v500 = vpack.c.bf16 %v486, %v486
      %501 = vrot.lane.b32.xlu0 %v232, 56
      %v502 = vpop.permute.xlu0 %501
      %503 = vrot.lane.b32.xlu0 %v233, 56
      %v504 = vpop.permute.xlu0 %503
      %v507 = vsel %vm299, %v499, 0
      %v510 = vsel %vm299, %v500, 0
      %v513 = vsel %vm343, %v504, 0
      %515 = vmatprep.subr.bf16.mxu0 0
      %516 = vmatpush1.bf16.msra.mxu0 %v502
      %517 = vmatprep.subr.bf16.mxu0 0
      %518 = vmatpush1.bf16.msra.mxu0 %v513
      %519 = vmatprep.subr.bf16.mxu0 0
      %520 = vmatpush1.bf16.msra.mxu0 0
      %521 = vmatprep.subr.bf16.mxu0 0
      %522 = vmatpush1.bf16.msra.mxu0 0
      %523 = vmatprep.subr.bf16.mxu0 0
      %524 = vmatpush1.bf16.msra.mxu0 0
      %525 = vmatprep.subr.bf16.mxu0 0
      %526 = vmatpush1.bf16.msra.mxu0 0
      %527 = vmatprep.subr.bf16.mxu0 0
      %528 = vmatpush1.bf16.msra.mxu0 0
      %529 = vmatprep.subr.bf16.mxu0 0
      %530 = vmatpush1.bf16.msra.mxu0 0
      %531 = vmatprep.subr.bf16.mxu0 0
      %532 = vmatpush1.bf16.msra.mxu0 0
      %533 = vmatprep.subr.bf16.mxu0 0
      %534 = vmatpush1.bf16.msra.mxu0 0
      %535 = vmatprep.subr.bf16.mxu0 0
      %536 = vmatpush1.bf16.msra.mxu0 0
      %537 = vmatprep.subr.bf16.mxu0 0
      %538 = vmatpush1.bf16.msra.mxu0 0
      %539 = vmatprep.subr.bf16.mxu0 0
      %540 = vmatpush1.bf16.msra.mxu0 0
      %541 = vmatprep.subr.bf16.mxu0 0
      %542 = vmatpush1.bf16.msra.mxu0 0
      %543 = vmatprep.subr.bf16.mxu0 0
      %544 = vmatpush1.bf16.msra.mxu0 0
      %545 = vmatprep.subr.bf16.mxu0 0
      %546 = vmatpush1.bf16.msra.mxu0 0
      %547 = vmatprep.mubr.bf16.mxu0 0
      %548 = vmatmul.mubr.bf16.gmra.mrb[0].mxu0 %v507
      %v549 = vpop.f32.mrb[0].mxu0
      %v550 = vadd.f32 0.0, %v549
      %v551 = vpop.f32.mrb[0].mxu0
      %v552 = vpop.f32.mrb[0].mxu0
      %v553 = vadd.f32 0.0, %v552
      %v554 = vpop.f32.mrb[0].mxu0
      %555 = vmatprep.mubr.bf16.mxu0 0
      %556 = vmatmul.mubr.bf16.gmra.mrb[0].mxu0 %v510
      %v557 = vpop.f32.mrb[0].mxu0
      %v558 = vadd.f32 0.0, %v557
      %v559 = vpop.f32.mrb[0].mxu0
      %v560 = vpop.f32.mrb[0].mxu0
      %v561 = vpop.f32.mrb[0].mxu0
      %562 = vdwg.mxu0
      %v563 = vmul.f32 %v550, %v496
      %v564 = vmul.f32 %v553, %v497
      %v565 = vmul.f32 %v558, %v498
      %v566 = vpack.c.bf16 %v564, %v563
      %v567 = vpack.c.bf16 %v565, %v565
      %v568 = vld [vmem:[%s1 + $0x4] sm:$0xf]
      %v570 = vsel %vm238, %v566, 0
      %v573 = vsel %vm238, %v567, 0
      %v576 = vsel %vm343, %v568, 0
      %578 = vmatprep.subr.bf16.mxu0 0
      %579 = vmatpush1.bf16.msra.mxu0 %v576
      %580 = vmatprep.subr.bf16.mxu0 0
      %581 = vmatpush1.bf16.msra.mxu0 0
      %582 = vmatprep.subr.bf16.mxu0 0
      %583 = vmatpush1.bf16.msra.mxu0 0
      %584 = vmatprep.subr.bf16.mxu0 0
      %585 = vmatpush1.bf16.msra.mxu0 0
      %586 = vmatprep.subr.bf16.mxu0 0
      %587 = vmatpush1.bf16.msra.mxu0 0
      %588 = vmatprep.subr.bf16.mxu0 0
      %589 = vmatpush1.bf16.msra.mxu0 0
      %590 = vmatprep.subr.bf16.mxu0 0
      %591 = vmatpush1.bf16.msra.mxu0 0
      %592 = vmatprep.subr.bf16.mxu0 0
      %593 = vmatpush1.bf16.msra.mxu0 0
      %594 = vmatprep.subr.bf16.mxu0 0
      %595 = vmatpush1.bf16.msra.mxu0 0
      %596 = vmatprep.subr.bf16.mxu0 0
      %597 = vmatpush1.bf16.msra.mxu0 0
      %598 = vmatprep.subr.bf16.mxu0 0
      %599 = vmatpush1.bf16.msra.mxu0 0
      %600 = vmatprep.subr.bf16.mxu0 0
      %601 = vmatpush1.bf16.msra.mxu0 0
      %602 = vmatprep.subr.bf16.mxu0 0
      %603 = vmatpush1.bf16.msra.mxu0 0
      %604 = vmatprep.subr.bf16.mxu0 0
      %605 = vmatpush1.bf16.msra.mxu0 0
      %606 = vmatprep.subr.bf16.mxu0 0
      %607 = vmatpush1.bf16.msra.mxu0 0
      %608 = vmatprep.subr.bf16.mxu0 0
      %609 = vmatpush1.bf16.msra.mxu0 0
      %610 = vmatprep.mubr.bf16.mxu0 0
      %611 = vmatmul.mubr.bf16.gmra.mrb[0].mxu0 %v570
      %v612 = vpop.f32.mrb[0].mxu0
      %v613 = vadd.f32 0.0, %v612
      %v614 = vpop.f32.mrb[0].mxu0
      %v615 = vpop.f32.mrb[0].mxu0
      %v616 = vadd.f32 0.0, %v615
      %v617 = vpop.f32.mrb[0].mxu0
      %618 = vmatprep.mubr.bf16.mxu0 0
      %619 = vmatmul.mubr.bf16.gmra.mrb[0].mxu0 %v573
      %v620 = vpop.f32.mrb[0].mxu0
      %v621 = vadd.f32 0.0, %v620
      %v622 = vpop.f32.mrb[0].mxu0
      %v623 = vpop.f32.mrb[0].mxu0
      %v624 = vpop.f32.mrb[0].mxu0
      %625 = vdwg.mxu0
      %v627 = vsel %vm238, %v398, 0
      %v630 = vsel %vm238, %v399, 0
      %v633 = vsel %vm343, %v400, 0
      %635 = vmatprep.subr.bf16.mxu0 0
      %636 = vmatpush1.bf16.msra.mxu0 %v633
      %637 = vmatprep.subr.bf16.mxu0 0
      %638 = vmatpush1.bf16.msra.mxu0 0
      %639 = vmatprep.subr.bf16.mxu0 0
      %640 = vmatpush1.bf16.msra.mxu0 0
      %641 = vmatprep.subr.bf16.mxu0 0
      %642 = vmatpush1.bf16.msra.mxu0 0
      %643 = vmatprep.subr.bf16.mxu0 0
      %644 = vmatpush1.bf16.msra.mxu0 0
      %645 = vmatprep.subr.bf16.mxu0 0
      %646 = vmatpush1.bf16.msra.mxu0 0
      %647 = vmatprep.subr.bf16.mxu0 0
      %648 = vmatpush1.bf16.msra.mxu0 0
      %649 = vmatprep.subr.bf16.mxu0 0
      %650 = vmatpush1.bf16.msra.mxu0 0
      %651 = vmatprep.subr.bf16.mxu0 0
      %652 = vmatpush1.bf16.msra.mxu0 0
      %653 = vmatprep.subr.bf16.mxu0 0
      %654 = vmatpush1.bf16.msra.mxu0 0
      %655 = vmatprep.subr.bf16.mxu0 0
      %656 = vmatpush1.bf16.msra.mxu0 0
      %657 = vmatprep.subr.bf16.mxu0 0
      %658 = vmatpush1.bf16.msra.mxu0 0
      %659 = vmatprep.subr.bf16.mxu0 0
      %660 = vmatpush1.bf16.msra.mxu0 0
      %661 = vmatprep.subr.bf16.mxu0 0
      %662 = vmatpush1.bf16.msra.mxu0 0
      %663 = vmatprep.subr.bf16.mxu0 0
      %664 = vmatpush1.bf16.msra.mxu0 0
      %665 = vmatprep.subr.bf16.mxu0 0
      %666 = vmatpush1.bf16.msra.mxu0 0
      %667 = vmatprep.mubr.bf16.mxu0 0
      %668 = vmatmul.mubr.bf16.gmra.mrb[0].mxu0 %v627
      %v669 = vpop.f32.mrb[0].mxu0
      %v670 = vadd.f32 %v613, %v669
      %v671 = vpop.f32.mrb[0].mxu0
      %v672 = vpop.f32.mrb[0].mxu0
      %v673 = vadd.f32 %v616, %v672
      %v674 = vpop.f32.mrb[0].mxu0
      %675 = vmatprep.mubr.bf16.mxu0 0
      %676 = vmatmul.mubr.bf16.gmra.mrb[0].mxu0 %v630
      %v677 = vpop.f32.mrb[0].mxu0
      %v678 = vadd.f32 %v621, %v677
      %v679 = vpop.f32.mrb[0].mxu0
      %v680 = vpop.f32.mrb[0].mxu0
      %v681 = vpop.f32.mrb[0].mxu0
      %682 = vdwg.mxu0
      %683 = vrot.lane.b32.xlu0 %v232, 112
      %v684 = vpop.permute.xlu0 %683
      %685 = vrot.lane.b32.xlu0 %v233, 112
      %v686 = vpop.permute.xlu0 %685
      %687 = vrot.lane.b32.xlu0 %v232, 80
      %v688 = vpop.permute.xlu0 %687
      %689 = vrot.lane.b32.xlu0 %v233, 80
      %v690 = vpop.permute.xlu0 %689
      %v692 = vsel %vm238, %v684, 0
      %v695 = vsel %vm238, %v686, 0
      %v698 = vsel %vm238, %v688, 0
      %v701 = vsel %vm238, %v690, 0
      %703 = vmatprep.subr.bf16.mxu0 0
      %704 = vmatpush1.bf16.xpose.msra.mxu0 %v698
      %705 = vmatprep.subr.bf16.mxu0 0
      %706 = vmatpush1.bf16.xpose.msra.mxu0 %v701
      %707 = vmatprep.subr.bf16.mxu0 0
      %708 = vmatpush1.bf16.xpose.msra.mxu0 0
      %709 = vmatprep.subr.bf16.mxu0 0
      %710 = vmatpush1.bf16.xpose.msra.mxu0 0
      %711 = vmatprep.subr.bf16.mxu0 0
      %712 = vmatpush1.bf16.xpose.msra.mxu0 0
      %713 = vmatprep.subr.bf16.mxu0 0
      %714 = vmatpush1.bf16.xpose.msra.mxu0 0
      %715 = vmatprep.subr.bf16.mxu0 0
      %716 = vmatpush1.bf16.xpose.msra.mxu0 0
      %717 = vmatprep.subr.bf16.mxu0 0
      %718 = vmatpush1.bf16.xpose.msra.mxu0 0
      %719 = vmatprep.subr.bf16.mxu0 0
      %720 = vmatpush1.bf16.xpose.msra.mxu0 0
      %721 = vmatprep.subr.bf16.mxu0 0
      %722 = vmatpush1.bf16.xpose.msra.mxu0 0
      %723 = vmatprep.subr.bf16.mxu0 0
      %724 = vmatpush1.bf16.xpose.msra.mxu0 0
      %725 = vmatprep.subr.bf16.mxu0 0
      %726 = vmatpush1.bf16.xpose.msra.mxu0 0
      %727 = vmatprep.subr.bf16.mxu0 0
      %728 = vmatpush1.bf16.xpose.msra.mxu0 0
      %729 = vmatprep.subr.bf16.mxu0 0
      %730 = vmatpush1.bf16.xpose.msra.mxu0 0
      %731 = vmatprep.subr.bf16.mxu0 0
      %732 = vmatpush1.bf16.xpose.msra.mxu0 0
      %733 = vmatprep.subr.bf16.mxu0 0
      %734 = vmatpush1.bf16.xpose.msra.mxu0 0
      %735 = vmatprep.mubr.bf16.mxu0 0
      %736 = vmatmul.mubr.bf16.gmra.mrb[0].mxu0 %v692
      %v737 = vpop.f32.mrb[0].mxu0
      %v738 = vadd.f32 %v222, %v737
      %v739 = vpop.f32.mrb[0].mxu0
      %v740 = vpop.f32.mrb[0].mxu0
      %v741 = vadd.f32 %v222, %v740
      %v742 = vpop.f32.mrb[0].mxu0
      %743 = vmatprep.mubr.bf16.mxu0 0
      %744 = vmatmul.mubr.bf16.gmra.mrb[0].mxu0 %v695
      %v745 = vpop.f32.mrb[0].mxu0
      %v746 = vadd.f32 %v222, %v745
      %v747 = vpop.f32.mrb[0].mxu0
      %v748 = vpop.f32.mrb[0].mxu0
      %v749 = vpop.f32.mrb[0].mxu0
      %750 = vdwg.mxu0
      %v751 = vsel %vm299, %v738, -inf
      %752 = vmax.xlane.f32.xlu0 %v751
      %v753 = vpop.xlane.xlu0 %752
      %v754 = vsel %vm299, %v741, -inf
      %755 = vmax.xlane.f32.xlu0 %v754
      %v756 = vpop.xlane.xlu0 %755
      %v757 = vsel %vm299, %v746, -inf
      %758 = vmax.xlane.f32.xlu0 %v757
      %v759 = vpop.xlane.xlu0 %758
      %v760 = vsub.f32 %v738, %v753
      %v761 = vsub.f32 %v741, %v756
      %v762 = vsub.f32 %v746, %v759
      %v763 = vmul.f32 %v760, 1.442695
      %v764 = vpow.pop %v763
      %v765 = vmul.f32 %v761, 1.442695
      %v766 = vpow.pop %v765
      %v767 = vmul.f32 %v762, 1.442695
      %v768 = vpow.pop %v767
      %v769 = vsel %vm299, %v764, 0.0
      %770 = vadd.xlane.f32.xlu0 %v769
      %v771 = vpop.xlane.xlu0 %770
      %v772 = vsel %vm299, %v766, 0.0
      %773 = vadd.xlane.f32.xlu0 %v772
      %v774 = vpop.xlane.xlu0 %773
      %v775 = vsel %vm299, %v768, 0.0
      %776 = vadd.xlane.f32.xlu0 %v775
      %v777 = vpop.xlane.xlu0 %776
      %v778 = vrcp.pop %v771
      %v779 = vrcp.pop %v774
      %v780 = vrcp.pop %v777
      %v781 = vpack.c.bf16 %v766, %v764
      %v782 = vpack.c.bf16 %v768, %v768
      %783 = vrot.lane.b32.xlu0 %v232, 48
      %v784 = vpop.permute.xlu0 %783
      %785 = vrot.lane.b32.xlu0 %v233, 48
      %v786 = vpop.permute.xlu0 %785
      %v789 = vsel %vm299, %v781, 0
      %v792 = vsel %vm299, %v782, 0
      %v795 = vsel %vm343, %v786, 0
      %797 = vmatprep.subr.bf16.mxu0 0
      %798 = vmatpush1.bf16.msra.mxu0 %v784
      %799 = vmatprep.subr.bf16.mxu0 0
      %800 = vmatpush1.bf16.msra.mxu0 %v795
      %801 = vmatprep.subr.bf16.mxu0 0
      %802 = vmatpush1.bf16.msra.mxu0 0
      %803 = vmatprep.subr.bf16.mxu0 0
      %804 = vmatpush1.bf16.msra.mxu0 0
      %805 = vmatprep.subr.bf16.mxu0 0
      %806 = vmatpush1.bf16.msra.mxu0 0
      %807 = vmatprep.subr.bf16.mxu0 0
      %808 = vmatpush1.bf16.msra.mxu0 0
      %809 = vmatprep.subr.bf16.mxu0 0
      %810 = vmatpush1.bf16.msra.mxu0 0
      %811 = vmatprep.subr.bf16.mxu0 0
      %812 = vmatpush1.bf16.msra.mxu0 0
      %813 = vmatprep.subr.bf16.mxu0 0
      %814 = vmatpush1.bf16.msra.mxu0 0
      %815 = vmatprep.subr.bf16.mxu0 0
      %816 = vmatpush1.bf16.msra.mxu0 0
      %817 = vmatprep.subr.bf16.mxu0 0
      %818 = vmatpush1.bf16.msra.mxu0 0
      %819 = vmatprep.subr.bf16.mxu0 0
      %820 = vmatpush1.bf16.msra.mxu0 0
      %821 = vmatprep.subr.bf16.mxu0 0
      %822 = vmatpush1.bf16.msra.mxu0 0
      %823 = vmatprep.subr.bf16.mxu0 0
      %824 = vmatpush1.bf16.msra.mxu0 0
      %825 = vmatprep.subr.bf16.mxu0 0
      %826 = vmatpush1.bf16.msra.mxu0 0
      %827 = vmatprep.subr.bf16.mxu0 0
      %828 = vmatpush1.bf16.msra.mxu0 0
      %829 = vmatprep.mubr.bf16.mxu0 0
      %830 = vmatmul.mubr.bf16.gmra.mrb[0].mxu0 %v789
      %v831 = vpop.f32.mrb[0].mxu0
      %v832 = vadd.f32 0.0, %v831
      %v833 = vpop.f32.mrb[0].mxu0
      %v834 = vpop.f32.mrb[0].mxu0
      %v835 = vadd.f32 0.0, %v834
      %v836 = vpop.f32.mrb[0].mxu0
      %837 = vmatprep.mubr.bf16.mxu0 0
      %838 = vmatmul.mubr.bf16.gmra.mrb[0].mxu0 %v792
      %v839 = vpop.f32.mrb[0].mxu0
      %v840 = vadd.f32 0.0, %v839
      %v841 = vpop.f32.mrb[0].mxu0
      %v842 = vpop.f32.mrb[0].mxu0
      %v843 = vpop.f32.mrb[0].mxu0
      %844 = vdwg.mxu0
      %v845 = vmul.f32 %v832, %v778
      %v846 = vmul.f32 %v835, %v779
      %v847 = vmul.f32 %v840, %v780
      %v848 = vpack.c.bf16 %v846, %v845
      %v849 = vpack.c.bf16 %v847, %v847
      %v850 = vld [vmem:[%s1 + $0x8] sm:$0xf]
      %v852 = vsel %vm238, %v848, 0
      %v855 = vsel %vm238, %v849, 0
      %v858 = vsel %vm343, %v850, 0
      %860 = vmatprep.subr.bf16.mxu0 0
      %861 = vmatpush1.bf16.msra.mxu0 %v858
      %862 = vmatprep.subr.bf16.mxu0 0
      %863 = vmatpush1.bf16.msra.mxu0 0
      %864 = vmatprep.subr.bf16.mxu0 0
      %865 = vmatpush1.bf16.msra.mxu0 0
      %866 = vmatprep.subr.bf16.mxu0 0
      %867 = vmatpush1.bf16.msra.mxu0 0
      %868 = vmatprep.subr.bf16.mxu0 0
      %869 = vmatpush1.bf16.msra.mxu0 0
      %870 = vmatprep.subr.bf16.mxu0 0
      %871 = vmatpush1.bf16.msra.mxu0 0
      %872 = vmatprep.subr.bf16.mxu0 0
      %873 = vmatpush1.bf16.msra.mxu0 0
      %874 = vmatprep.subr.bf16.mxu0 0
      %875 = vmatpush1.bf16.msra.mxu0 0
      %876 = vmatprep.subr.bf16.mxu0 0
      %877 = vmatpush1.bf16.msra.mxu0 0
      %878 = vmatprep.subr.bf16.mxu0 0
      %879 = vmatpush1.bf16.msra.mxu0 0
      %880 = vmatprep.subr.bf16.mxu0 0
      %881 = vmatpush1.bf16.msra.mxu0 0
      %882 = vmatprep.subr.bf16.mxu0 0
      %883 = vmatpush1.bf16.msra.mxu0 0
      %884 = vmatprep.subr.bf16.mxu0 0
      %885 = vmatpush1.bf16.msra.mxu0 0
      %886 = vmatprep.subr.bf16.mxu0 0
      %887 = vmatpush1.bf16.msra.mxu0 0
      %888 = vmatprep.subr.bf16.mxu0 0
      %889 = vmatpush1.bf16.msra.mxu0 0
      %890 = vmatprep.subr.bf16.mxu0 0
      %891 = vmatpush1.bf16.msra.mxu0 0
      %892 = vmatprep.mubr.bf16.mxu0 0
      %893 = vmatmul.mubr.bf16.gmra.mrb[0].mxu0 %v852
      %v894 = vpop.f32.mrb[0].mxu0
      %v895 = vadd.f32 0.0, %v894
      %v896 = vpop.f32.mrb[0].mxu0
      %v897 = vpop.f32.mrb[0].mxu0
      %v898 = vadd.f32 0.0, %v897
      %v899 = vpop.f32.mrb[0].mxu0
      %900 = vmatprep.mubr.bf16.mxu0 0
      %901 = vmatmul.mubr.bf16.gmra.mrb[0].mxu0 %v855
      %v902 = vpop.f32.mrb[0].mxu0
      %v903 = vadd.f32 0.0, %v902
      %v904 = vpop.f32.mrb[0].mxu0
      %v905 = vpop.f32.mrb[0].mxu0
      %v906 = vpop.f32.mrb[0].mxu0
      %907 = vdwg.mxu0
      %v908 = vadd.f32 %v670, %v895
      %v909 = vadd.f32 %v673, %v898
      %v910 = vadd.f32 %v678, %v903
      %911 = vrot.lane.b32.xlu0 %v232, 104
      %v912 = vpop.permute.xlu0 %911
      %913 = vrot.lane.b32.xlu0 %v233, 104
      %v914 = vpop.permute.xlu0 %913
      %915 = vrot.lane.b32.xlu0 %v232, 72
      %v916 = vpop.permute.xlu0 %915
      %917 = vrot.lane.b32.xlu0 %v233, 72
      %v918 = vpop.permute.xlu0 %917
      %v920 = vsel %vm238, %v912, 0
      %v923 = vsel %vm238, %v914, 0
      %v926 = vsel %vm238, %v916, 0
      %v929 = vsel %vm238, %v918, 0
      %931 = vmatprep.subr.bf16.mxu0 0
      %932 = vmatpush1.bf16.xpose.msra.mxu0 %v926
      %933 = vmatprep.subr.bf16.mxu0 0
      %934 = vmatpush1.bf16.xpose.msra.mxu0 %v929
      %935 = vmatprep.subr.bf16.mxu0 0
      %936 = vmatpush1.bf16.xpose.msra.mxu0 0
      %937 = vmatprep.subr.bf16.mxu0 0
      %938 = vmatpush1.bf16.xpose.msra.mxu0 0
      %939 = vmatprep.subr.bf16.mxu0 0
      %940 = vmatpush1.bf16.xpose.msra.mxu0 0
      %941 = vmatprep.subr.bf16.mxu0 0
      %942 = vmatpush1.bf16.xpose.msra.mxu0 0
      %943 = vmatprep.subr.bf16.mxu0 0
      %944 = vmatpush1.bf16.xpose.msra.mxu0 0
      %945 = vmatprep.subr.bf16.mxu0 0
      %946 = vmatpush1.bf16.xpose.msra.mxu0 0
      %947 = vmatprep.subr.bf16.mxu0 0
      %948 = vmatpush1.bf16.xpose.msra.mxu0 0
      %949 = vmatprep.subr.bf16.mxu0 0
      %950 = vmatpush1.bf16.xpose.msra.mxu0 0
      %951 = vmatprep.subr.bf16.mxu0 0
      %952 = vmatpush1.bf16.xpose.msra.mxu0 0
      %953 = vmatprep.subr.bf16.mxu0 0
      %954 = vmatpush1.bf16.xpose.msra.mxu0 0
      %955 = vmatprep.subr.bf16.mxu0 0
      %956 = vmatpush1.bf16.xpose.msra.mxu0 0
      %957 = vmatprep.subr.bf16.mxu0 0
      %958 = vmatpush1.bf16.xpose.msra.mxu0 0
      %959 = vmatprep.subr.bf16.mxu0 0
      %960 = vmatpush1.bf16.xpose.msra.mxu0 0
      %961 = vmatprep.subr.bf16.mxu0 0
      %962 = vmatpush1.bf16.xpose.msra.mxu0 0
      %963 = vmatprep.mubr.bf16.mxu0 0
      %964 = vmatmul.mubr.bf16.gmra.mrb[0].mxu0 %v920
      %v965 = vpop.f32.mrb[0].mxu0
      %v966 = vadd.f32 %v222, %v965
      %v967 = vpop.f32.mrb[0].mxu0
      %v968 = vpop.f32.mrb[0].mxu0
      %v969 = vadd.f32 %v222, %v968
      %v970 = vpop.f32.mrb[0].mxu0
      %971 = vmatprep.mubr.bf16.mxu0 0
      %972 = vmatmul.mubr.bf16.gmra.mrb[0].mxu0 %v923
      %v973 = vpop.f32.mrb[0].mxu0
      %v974 = vadd.f32 %v222, %v973
      %v975 = vpop.f32.mrb[0].mxu0
      %v976 = vpop.f32.mrb[0].mxu0
      %v977 = vpop.f32.mrb[0].mxu0
      %978 = vdwg.mxu0
      %v979 = vsel %vm299, %v966, -inf
      %980 = vmax.xlane.f32.xlu0 %v979
      %v981 = vpop.xlane.xlu0 %980
      %v982 = vsel %vm299, %v969, -inf
      %983 = vmax.xlane.f32.xlu0 %v982
      %v984 = vpop.xlane.xlu0 %983
      %v985 = vsel %vm299, %v974, -inf
      %986 = vmax.xlane.f32.xlu0 %v985
      %v987 = vpop.xlane.xlu0 %986
      %v988 = vsub.f32 %v966, %v981
      %v989 = vsub.f32 %v969, %v984
      %v990 = vsub.f32 %v974, %v987
      %v991 = vmul.f32 %v988, 1.442695
      %v992 = vpow.pop %v991
      %v993 = vmul.f32 %v989, 1.442695
      %v994 = vpow.pop %v993
      %v995 = vmul.f32 %v990, 1.442695
      %v996 = vpow.pop %v995
      %v997 = vsel %vm299, %v992, 0.0
      %998 = vadd.xlane.f32.xlu0 %v997
      %v999 = vpop.xlane.xlu0 %998
      %v1000 = vsel %vm299, %v994, 0.0
      %1001 = vadd.xlane.f32.xlu0 %v1000
      %v1002 = vpop.xlane.xlu0 %1001
      %v1003 = vsel %vm299, %v996, 0.0
      %1004 = vadd.xlane.f32.xlu0 %v1003
      %v1005 = vpop.xlane.xlu0 %1004
      %v1006 = vrcp.pop %v999
      %v1007 = vrcp.pop %v1002
      %v1008 = vrcp.pop %v1005
      %v1009 = vpack.c.bf16 %v994, %v992
      %v1010 = vpack.c.bf16 %v996, %v996
      %1011 = vrot.lane.b32.xlu0 %v232, 40
      %v1012 = vpop.permute.xlu0 %1011
      %1013 = vrot.lane.b32.xlu0 %v233, 40
      %v1014 = vpop.permute.xlu0 %1013
      %v1017 = vsel %vm299, %v1009, 0
      %v1020 = vsel %vm299, %v1010, 0
      %v1023 = vsel %vm343, %v1014, 0
      %1025 = vmatprep.subr.bf16.mxu0 0
      %1026 = vmatpush1.bf16.msra.mxu0 %v1012
      %1027 = vmatprep.subr.bf16.mxu0 0
      %1028 = vmatpush1.bf16.msra.mxu0 %v1023
      %1029 = vmatprep.subr.bf16.mxu0 0
      %1030 = vmatpush1.bf16.msra.mxu0 0
      %1031 = vmatprep.subr.bf16.mxu0 0
      %1032 = vmatpush1.bf16.msra.mxu0 0
      %1033 = vmatprep.subr.bf16.mxu0 0
      %1034 = vmatpush1.bf16.msra.mxu0 0
      %1035 = vmatprep.subr.bf16.mxu0 0
      %1036 = vmatpush1.bf16.msra.mxu0 0
      %1037 = vmatprep.subr.bf16.mxu0 0
      %1038 = vmatpush1.bf16.msra.mxu0 0
      %1039 = vmatprep.subr.bf16.mxu0 0
      %1040 = vmatpush1.bf16.msra.mxu0 0
      %1041 = vmatprep.subr.bf16.mxu0 0
      %1042 = vmatpush1.bf16.msra.mxu0 0
      %1043 = vmatprep.subr.bf16.mxu0 0
      %1044 = vmatpush1.bf16.msra.mxu0 0
      %1045 = vmatprep.subr.bf16.mxu0 0
      %1046 = vmatpush1.bf16.msra.mxu0 0
      %1047 = vmatprep.subr.bf16.mxu0 0
      %1048 = vmatpush1.bf16.msra.mxu0 0
      %1049 = vmatprep.subr.bf16.mxu0 0
      %1050 = vmatpush1.bf16.msra.mxu0 0
      %1051 = vmatprep.subr.bf16.mxu0 0
      %1052 = vmatpush1.bf16.msra.mxu0 0
      %1053 = vmatprep.subr.bf16.mxu0 0
      %1054 = vmatpush1.bf16.msra.mxu0 0
      %1055 = vmatprep.subr.bf16.mxu0 0
      %1056 = vmatpush1.bf16.msra.mxu0 0
      %1057 = vmatprep.mubr.bf16.mxu0 0
      %1058 = vmatmul.mubr.bf16.gmra.mrb[0].mxu0 %v1017
      %v1059 = vpop.f32.mrb[0].mxu0
      %v1060 = vadd.f32 0.0, %v1059
      %v1061 = vpop.f32.mrb[0].mxu0
      %v1062 = vpop.f32.mrb[0].mxu0
      %v1063 = vadd.f32 0.0, %v1062
      %v1064 = vpop.f32.mrb[0].mxu0
      %1065 = vmatprep.mubr.bf16.mxu0 0
      %1066 = vmatmul.mubr.bf16.gmra.mrb[0].mxu0 %v1020
      %v1067 = vpop.f32.mrb[0].mxu0
      %v1068 = vadd.f32 0.0, %v1067
      %v1069 = vpop.f32.mrb[0].mxu0
      %v1070 = vpop.f32.mrb[0].mxu0
      %v1071 = vpop.f32.mrb[0].mxu0
      %1072 = vdwg.mxu0
      %v1073 = vmul.f32 %v1060, %v1006
      %v1074 = vmul.f32 %v1063, %v1007
      %v1075 = vmul.f32 %v1068, %v1008
      %v1076 = vpack.c.bf16 %v1074, %v1073
      %v1077 = vpack.c.bf16 %v1075, %v1075
      %v1078 = vld [vmem:[%s1 + $0xc] sm:$0xf]
      %v1080 = vsel %vm238, %v1076, 0
      %v1083 = vsel %vm238, %v1077, 0
      %v1086 = vsel %vm343, %v1078, 0
      %1088 = vmatprep.subr.bf16.mxu0 0
      %1089 = vmatpush1.bf16.msra.mxu0 %v1086
      %1090 = vmatprep.subr.bf16.mxu0 0
      %1091 = vmatpush1.bf16.msra.mxu0 0
      %1092 = vmatprep.subr.bf16.mxu0 0
      %1093 = vmatpush1.bf16.msra.mxu0 0
      %1094 = vmatprep.subr.bf16.mxu0 0
      %1095 = vmatpush1.bf16.msra.mxu0 0
      %1096 = vmatprep.subr.bf16.mxu0 0
      %1097 = vmatpush1.bf16.msra.mxu0 0
      %1098 = vmatprep.subr.bf16.mxu0 0
      %1099 = vmatpush1.bf16.msra.mxu0 0
      %1100 = vmatprep.subr.bf16.mxu0 0
      %1101 = vmatpush1.bf16.msra.mxu0 0
      %1102 = vmatprep.subr.bf16.mxu0 0
      %1103 = vmatpush1.bf16.msra.mxu0 0
      %1104 = vmatprep.subr.bf16.mxu0 0
      %1105 = vmatpush1.bf16.msra.mxu0 0
      %1106 = vmatprep.subr.bf16.mxu0 0
      %1107 = vmatpush1.bf16.msra.mxu0 0
      %1108 = vmatprep.subr.bf16.mxu0 0
      %1109 = vmatpush1.bf16.msra.mxu0 0
      %1110 = vmatprep.subr.bf16.mxu0 0
      %1111 = vmatpush1.bf16.msra.mxu0 0
      %1112 = vmatprep.subr.bf16.mxu0 0
      %1113 = vmatpush1.bf16.msra.mxu0 0
      %1114 = vmatprep.subr.bf16.mxu0 0
      %1115 = vmatpush1.bf16.msra.mxu0 0
      %1116 = vmatprep.subr.bf16.mxu0 0
      %1117 = vmatpush1.bf16.msra.mxu0 0
      %1118 = vmatprep.subr.bf16.mxu0 0
      %1119 = vmatpush1.bf16.msra.mxu0 0
      %1120 = vmatprep.mubr.bf16.mxu0 0
      %1121 = vmatmul.mubr.bf16.gmra.mrb[0].mxu0 %v1080
      %v1122 = vpop.f32.mrb[0].mxu0
      %v1123 = vadd.f32 0.0, %v1122
      %v1124 = vpop.f32.mrb[0].mxu0
      %v1125 = vpop.f32.mrb[0].mxu0
      %v1126 = vadd.f32 0.0, %v1125
      %v1127 = vpop.f32.mrb[0].mxu0
      %1128 = vmatprep.mubr.bf16.mxu0 0
      %1129 = vmatmul.mubr.bf16.gmra.mrb[0].mxu0 %v1083
      %v1130 = vpop.f32.mrb[0].mxu0
      %v1131 = vadd.f32 0.0, %v1130
      %v1132 = vpop.f32.mrb[0].mxu0
      %v1133 = vpop.f32.mrb[0].mxu0
      %v1134 = vpop.f32.mrb[0].mxu0
      %1135 = vdwg.mxu0
      %v1136 = vadd.f32 %v908, %v1123
      %v1137 = vadd.f32 %v909, %v1126
      %v1138 = vadd.f32 %v910, %v1131
      %v1139 = vld [vmem:[%s2] sm:$0x1]
      %v1141 = vlaneseq
      %v1142 = vshrl.u32 %v1141, 7
      %v1143 = vsub.s32 0, %v1142
      %v1144 = vrot.slane %v1139, %v1143
      %v1146 = vadd.f32 %v1136, %v1144
      %v1147 = vadd.f32 %v1137, %v1144
      %v1148 = vadd.f32 %v1138, %v1144
      %v1149 = vld [vmem:[%s212] sm:$0xff]
      %v1150 = vld [vmem:[%s212 + $0x8] sm:$0xff]
      %v1151 = vld [vmem:[%s212 + $0x10] sm:$0xff]
      %v1152 = vadd.f32 %v1146, %v1149
      %v1153 = vadd.f32 %v1147, %v1150
      %v1154 = vadd.f32 %v1148, %v1151
      %vm1155 = vcmask 261120
      %1156 = vst.msk [vmem:[%s217] sm:$0xff] %vm1155, %v1152
      %1157 = vst.msk [vmem:[%s217 + $0x8] sm:$0xff] %vm1155, %v1153
      %1158 = vst.msk [vmem:[%s217 + $0x10] sm:$0xff] %vm1155, %v1154
      %p1159 = scmp.lt.s32.totalorder %s15, 1
      %s1160 = scalar_select %p1159, %s15, 1
      %s1161 = smul.addr %s1160, 3
      %s1162 = smul.addr %s1161, 8
      %s1163 = scalar_lea.vmem %s4, %s1162
      // Predicated region
      $region37: #{prompted_vit_forward.26} parent=35 // pred_check
        %p1164 = pneg %p127
      $region38: #{prompted_vit_forward.26} parent=35 // pred_check_branch
        %1166 = sbr.rel (%p1164) target = $region40
      $region39: #{prompted_vit_forward.26} parent=35 // pred_region
        _
      $region40: #{prompted_vit_forward.26} parent=35 // pred_fallthru
        _
    $region36: #{prompted_vit_forward.26} parent=5 // pred_fallthru
      _
    %p1167 = scmp.le.s32.totalorder 2, %s10
    // Predicated region
    $region41: #{prompted_vit_forward.26} parent=5 // pred_check
      %p1168 = pneg %p1167
    $region42: #{prompted_vit_forward.26} parent=5 // pred_check_branch
      %1170 = sbr.rel (%p1168) target = $region44
    $region43: #{prompted_vit_forward.26} parent=5 // pred_region
      %s1171 = ssub.s32 %s10, 2
      // Predicated region
      $region45: #{prompted_vit_forward.26} parent=43 // pred_check
        %p1172 = pneg %p133
      $region46: #{prompted_vit_forward.26} parent=43 // pred_check_branch
        %1174 = sbr.rel (%p1172) target = $region48
      $region47: #{prompted_vit_forward.26} parent=43 // pred_region
        %p1175 = scmp.lt.s32.totalorder %s16, 1
        %s1176 = scalar_select %p1175, %s16, 1
        %s1177 = smul.addr %s1176, 3
        %s1178 = smul.addr %s1177, 8
        %s1179 = scalar_lea.vmem %s4, %s1178
      $region48: #{prompted_vit_forward.26} parent=43 // pred_fallthru
        _
    $region44: #{prompted_vit_forward.26} parent=5 // pred_fallthru
      _
  $region6: #{prompted_vit_forward.26} parent=0 // loop_footer
    %s14 = sadd.s32 1, %s10
  $region7: #{prompted_vit_forward.26} parent=0 // loop_footer_branch
    %9 = sbr.rel target = $region3
  $region8: #{prompted_vit_forward.26} parent=0 // loop_exit
    _

// kernel: prompted_vit_forward.33
$region0: #{prompted_vit_forward.33}
  #allocation0 [shape = 'u32[]', space=smem, size = 0x4, offset = 0x4, fixed_abs, tag = 'smem constant byte address 0x4 - core index']
  #allocation1 [shape = 'u32[144,128]{1,0:T(1,128)}', space=vmem, size = 0x12000, scoped, tag = 'internal scratch']
  #allocation2 [shape = 'bf16[48,32]{1,0:T(16,128)(2,1)}', space=vmem, size = 0x3000, scoped, tag = 'scratch operand']
  %s0 = inlined_call_operand.vmem [shape: f32[48,32], index: 0, kind: input, shape index: {}]
  %s1 = inlined_call_operand.vmem [shape: bf16[32,16], index: 1, kind: input, shape index: {}]
  %s2 = inlined_call_operand.vmem [shape: f32[1,32], index: 2, kind: input, shape index: {}]
  %s3 = inlined_call_operand.vmem [shape: f32[1,32], index: 3, kind: input, shape index: {}]
  %s4 = inlined_call_operand.vmem [shape: f32[48,16], index: 4, kind: output, shape index: {}]
  %s5 = sld [smem:[#allocation0]]
  $region30: #{prompted_vit_forward.33} parent=0
    _
  %s7 = ssub.s32 1, %s5
  %s8 = scalar_select 0, %s7, %s5
  // Predicated region
  $region2: #{prompted_vit_forward.33} parent=0 // pred_check
    _
  $region3: #{prompted_vit_forward.33} parent=0 // pred_check_branch
    %10 = sbr.rel (0) target = $region5
  $region4: #{prompted_vit_forward.33} parent=0 // pred_region
    _
  $region5: #{prompted_vit_forward.33} parent=0 // pred_fallthru
    _
  // Predicated region
  $region6: #{prompted_vit_forward.33} parent=0 // pred_check
    _
  $region7: #{prompted_vit_forward.33} parent=0 // pred_check_branch
    %12 = sbr.rel (0) target = $region9
  $region8: #{prompted_vit_forward.33} parent=0 // pred_region
    _
  $region9: #{prompted_vit_forward.33} parent=0 // pred_fallthru
    _
  // Predicated region
  $region10: #{prompted_vit_forward.33} parent=0 // pred_check
    _
  $region11: #{prompted_vit_forward.33} parent=0 // pred_check_branch
    %14 = sbr.rel (0) target = $region13
  $region12: #{prompted_vit_forward.33} parent=0 // pred_region
    _
  $region13: #{prompted_vit_forward.33} parent=0 // pred_fallthru
    _
  // Predicated region
  $region14: #{prompted_vit_forward.33} parent=0 // pred_check
    _
  $region15: #{prompted_vit_forward.33} parent=0 // pred_check_branch
    %16 = sbr.rel (0) target = $region17
  $region16: #{prompted_vit_forward.33} parent=0 // pred_region
    _
  $region17: #{prompted_vit_forward.33} parent=0 // pred_fallthru
    _
  %p18 = scmp.eq.s32.totalorder 0, 0
  // Predicated region
  $region18: #{prompted_vit_forward.33} parent=0 // pred_check
    %p19 = pneg %p18
  $region19: #{prompted_vit_forward.33} parent=0 // pred_check_branch
    %21 = sbr.rel (%p19) target = $region21
  $region20: #{prompted_vit_forward.33} parent=0 // pred_region
    %v22 = vld [vmem:[%s0] sm:$0xff]
    %v23 = vld [vmem:[%s0 + $0x8] sm:$0xff]
    %v24 = vld [vmem:[%s0 + $0x10] sm:$0xff]
    %v25 = vld [vmem:[%s0 + $0x18] sm:$0xff]
    %v26 = vld [vmem:[%s0 + $0x20] sm:$0xff]
    %v27 = vld [vmem:[%s0 + $0x28] sm:$0xff]
    %vm28 = vcmask 261120
    %v29 = vsel %vm28, %v22, 0.0
    %30 = vadd.xlane.f32.xlu0 %v29
    %v31 = vpop.xlane.xlu0 %30
    %v32 = vsel %vm28, %v23, 0.0
    %33 = vadd.xlane.f32.xlu0 %v32
    %v34 = vpop.xlane.xlu0 %33
    %v35 = vsel %vm28, %v24, 0.0
    %36 = vadd.xlane.f32.xlu0 %v35
    %v37 = vpop.xlane.xlu0 %36
    %v38 = vsel %vm28, %v25, 0.0
    %39 = vadd.xlane.f32.xlu0 %v38
    %v40 = vpop.xlane.xlu0 %39
    %v41 = vsel %vm28, %v26, 0.0
    %42 = vadd.xlane.f32.xlu0 %v41
    %v43 = vpop.xlane.xlu0 %42
    %v44 = vsel %vm28, %v27, 0.0
    %45 = vadd.xlane.f32.xlu0 %v44
    %v46 = vpop.xlane.xlu0 %45
    %v47 = vrcp.pop 32.0
    %v48 = vmul.f32 %v31, %v47
    %v49 = vmul.f32 %v34, %v47
    %v50 = vmul.f32 %v37, %v47
    %v51 = vmul.f32 %v40, %v47
    %v52 = vmul.f32 %v43, %v47
    %v53 = vmul.f32 %v46, %v47
    %v54 = vsub.f32 %v22, %v48
    %v55 = vsub.f32 %v23, %v49
    %v56 = vsub.f32 %v24, %v50
    %v57 = vsub.f32 %v25, %v51
    %v58 = vsub.f32 %v26, %v52
    %v59 = vsub.f32 %v27, %v53
    %v60 = vmul.f32 %v54, %v54
    %v61 = vmul.f32 %v55, %v55
    %v62 = vmul.f32 %v56, %v56
    %v63 = vmul.f32 %v57, %v57
    %v64 = vmul.f32 %v58, %v58
    %v65 = vmul.f32 %v59, %v59
    %v66 = vsel %vm28, %v60, 0.0
    %67 = vadd.xlane.f32.xlu0 %v66
    %v68 = vpop.xlane.xlu0 %67
    %v69 = vsel %vm28, %v61, 0.0
    %70 = vadd.xlane.f32.xlu0 %v69
    %v71 = vpop.xlane.xlu0 %70
    %v72 = vsel %vm28, %v62, 0.0
    %73 = vadd.xlane.f32.xlu0 %v72
    %v74 = vpop.xlane.xlu0 %73
    %v75 = vsel %vm28, %v63, 0.0
    %76 = vadd.xlane.f32.xlu0 %v75
    %v77 = vpop.xlane.xlu0 %76
    %v78 = vsel %vm28, %v64, 0.0
    %79 = vadd.xlane.f32.xlu0 %v78
    %v80 = vpop.xlane.xlu0 %79
    %v81 = vsel %vm28, %v65, 0.0
    %82 = vadd.xlane.f32.xlu0 %v81
    %v83 = vpop.xlane.xlu0 %82
    %v84 = vmul.f32 %v68, %v47
    %v85 = vmul.f32 %v71, %v47
    %v86 = vmul.f32 %v74, %v47
    %v87 = vmul.f32 %v77, %v47
    %v88 = vmul.f32 %v80, %v47
    %v89 = vmul.f32 %v83, %v47
    %v90 = vadd.f32 %v84, 1e-05
    %v91 = vadd.f32 %v85, 1e-05
    %v92 = vadd.f32 %v86, 1e-05
    %v93 = vadd.f32 %v87, 1e-05
    %v94 = vadd.f32 %v88, 1e-05
    %v95 = vadd.f32 %v89, 1e-05
    %v96 = vrsqrt.pop %v90
    %v97 = vrsqrt.pop %v91
    %v98 = vrsqrt.pop %v92
    %v99 = vrsqrt.pop %v93
    %v100 = vrsqrt.pop %v94
    %v101 = vrsqrt.pop %v95
    %v102 = vmul.f32 %v54, %v96
    %v103 = vmul.f32 %v55, %v97
    %v104 = vmul.f32 %v56, %v98
    %v105 = vmul.f32 %v57, %v99
    %v106 = vmul.f32 %v58, %v100
    %v107 = vmul.f32 %v59, %v101
    %v108 = vld [vmem:[%s2] sm:$0x1]
    %v110 = vlaneseq
    %v111 = vshrl.u32 %v110, 7
    %v112 = vsub.s32 0, %v111
    %v113 = vrot.slane %v108, %v112
    %v115 = vmul.f32 %v102, %v113
    %v116 = vmul.f32 %v103, %v113
    %v117 = vmul.f32 %v104, %v113
    %v118 = vmul.f32 %v105, %v113
    %v119 = vmul.f32 %v106, %v113
    %v120 = vmul.f32 %v107, %v113
    %v121 = vld [vmem:[%s3] sm:$0x1]
    %v123 = vlaneseq
    %v124 = vshrl.u32 %v123, 7
    %v125 = vsub.s32 0, %v124
    %v126 = vrot.slane %v121, %v125
    %v128 = vadd.f32 %v115, %v126
    %v129 = vadd.f32 %v116, %v126
    %v130 = vadd.f32 %v117, %v126
    %v131 = vadd.f32 %v118, %v126
    %v132 = vadd.f32 %v119, %v126
    %v133 = vadd.f32 %v120, %v126
    %v134 = vpack.c.bf16 %v129, %v128
    %v135 = vpack.c.bf16 %v131, %v130
    %v136 = vpack.c.bf16 %v133, %v132
    %137 = vst.msk [vmem:[#allocation2] sm:$0xff] %vm28, %v134
    %138 = vst.msk [vmem:[#allocation2 + $0x8] sm:$0xff] %vm28, %v135
    %139 = vst.msk [vmem:[#allocation2 + $0x10] sm:$0xff] %vm28, %v136
  $region21: #{prompted_vit_forward.33} parent=0 // pred_fallthru
    _
  %v140 = vld [vmem:[#allocation2] sm:$0xff]
  %v141 = vld [vmem:[#allocation2 + $0x8] sm:$0xff]
  %v142 = vld [vmem:[#allocation2 + $0x10] sm:$0xff]
  %v143 = vld [vmem:[%s1] sm:$0xf]
  %v144 = vld [vmem:[%s1 + $0x4] sm:$0xf]
  %v145 = vld [vmem:[%s1 + $0x8] sm:$0xf]
  %v146 = vld [vmem:[%s1 + $0xc] sm:$0xf]
  %v151 = vunpack.c.l.b16 %v143
  %v152 = vunpack.c.l.b16 %v144
  %v153 = vunpack.c.l.b16 %v145
  %v154 = vunpack.c.l.b16 %v146
  %v155 = vpack.c.b16 %v152, %v151
  %v156 = vpack.c.b16 %v154, %v153
  %vm159 = vcmask 261120
  %v161 = vsel %vm159, %v140, 0
  %v164 = vsel %vm159, %v141, 0
  %v167 = vsel %vm159, %v142, 0
  %169 = vmatprep.subr.bf16.mxu0 0
  %170 = vmatpush1.bf16.msra.mxu0 %v155
  %171 = vmatprep.subr.bf16.mxu0 0
  %172 = vmatpush1.bf16.msra.mxu0 %v156
  %173 = vmatprep.subr.bf16.mxu0 0
  %174 = vmatpush1.bf16.msra.mxu0 0
  %175 = vmatprep.subr.bf16.mxu0 0
  %176 = vmatpush1.bf16.msra.mxu0 0
  %177 = vmatprep.subr.bf16.mxu0 0
  %178 = vmatpush1.bf16.msra.mxu0 0
  %179 = vmatprep.subr.bf16.mxu0 0
  %180 = vmatpush1.bf16.msra.mxu0 0
  %181 = vmatprep.subr.bf16.mxu0 0
  %182 = vmatpush1.bf16.msra.mxu0 0
  %183 = vmatprep.subr.bf16.mxu0 0
  %184 = vmatpush1.bf16.msra.mxu0 0
  %185 = vmatprep.subr.bf16.mxu0 0
  %186 = vmatpush1.bf16.msra.mxu0 0
  %187 = vmatprep.subr.bf16.mxu0 0
  %188 = vmatpush1.bf16.msra.mxu0 0
  %189 = vmatprep.subr.bf16.mxu0 0
  %190 = vmatpush1.bf16.msra.mxu0 0
  %191 = vmatprep.subr.bf16.mxu0 0
  %192 = vmatpush1.bf16.msra.mxu0 0
  %193 = vmatprep.subr.bf16.mxu0 0
  %194 = vmatpush1.bf16.msra.mxu0 0
  %195 = vmatprep.subr.bf16.mxu0 0
  %196 = vmatpush1.bf16.msra.mxu0 0
  %197 = vmatprep.subr.bf16.mxu0 0
  %198 = vmatpush1.bf16.msra.mxu0 0
  %199 = vmatprep.subr.bf16.mxu0 0
  %200 = vmatpush1.bf16.msra.mxu0 0
  %201 = vmatprep.mubr.bf16.mxu0 0
  %202 = vmatmul.mubr.bf16.gmra.mrb[0].mxu0 %v161
  %v203 = vpop.f32.mrb[0].mxu0
  %v204 = vadd.f32 0.0, %v203
  %v205 = vpop.f32.mrb[0].mxu0
  %v206 = vpop.f32.mrb[0].mxu0
  %v207 = vadd.f32 0.0, %v206
  %v208 = vpop.f32.mrb[0].mxu0
  %209 = vmatprep.mubr.bf16.mxu0 0
  %210 = vmatmul.mubr.bf16.gmra.mrb[0].mxu0 %v164
  %v211 = vpop.f32.mrb[0].mxu0
  %v212 = vadd.f32 0.0, %v211
  %v213 = vpop.f32.mrb[0].mxu0
  %v214 = vpop.f32.mrb[0].mxu0
  %v215 = vadd.f32 0.0, %v214
  %v216 = vpop.f32.mrb[0].mxu0
  %217 = vmatprep.mubr.bf16.mxu0 0
  %218 = vmatmul.mubr.bf16.gmra.mrb[0].mxu0 %v167
  %v219 = vpop.f32.mrb[0].mxu0
  %v220 = vadd.f32 0.0, %v219
  %v221 = vpop.f32.mrb[0].mxu0
  %v222 = vpop.f32.mrb[0].mxu0
  %v223 = vadd.f32 0.0, %v222
  %v224 = vpop.f32.mrb[0].mxu0
  %225 = vdwg.mxu0
  %vm226 = vcmask 130048
  %227 = vst.msk [vmem:[%s4] sm:$0xff] %vm226, %v204
  %228 = vst.msk [vmem:[%s4 + $0x8] sm:$0xff] %vm226, %v207
  %229 = vst.msk [vmem:[%s4 + $0x10] sm:$0xff] %vm226, %v212
  %230 = vst.msk [vmem:[%s4 + $0x18] sm:$0xff] %vm226, %v215
  %231 = vst.msk [vmem:[%s4 + $0x20] sm:$0xff] %vm226, %v220
  %232 = vst.msk [vmem:[%s4 + $0x28] sm:$0xff] %vm226, %v223
  // Predicated region
  $region22: #{prompted_vit_forward.33} parent=0 // pred_check
    _
  $region23: #{prompted_vit_forward.33} parent=0 // pred_check_branch
    %234 = sbr.rel (0) target = $region25
  $region24: #{prompted_vit_forward.33} parent=0 // pred_region
    _
  $region25: #{prompted_vit_forward.33} parent=0 // pred_fallthru
    _
  // Predicated region
  $region26: #{prompted_vit_forward.33} parent=0 // pred_check
    _
  $region27: #{prompted_vit_forward.33} parent=0 // pred_check_branch
    %236 = sbr.rel (0) target = $region29
  $region28: #{prompted_vit_forward.33} parent=0 // pred_region
    _
  $region29: #{prompted_vit_forward.33} parent=0 // pred_fallthru
    _

</llo_original>
